<compile_context>
chip_gen: v7x
topology: tpu7x:2x2x1
jax: 0.10.0
libtpu: 0.0.40
codegen_flags: <defaults>
</compile_context>

<pallas_src>
import functools

import jax
import jax.numpy as jnp
from jax import lax
from jax.experimental import pallas as pl
from jax.experimental.pallas import tpu as pltpu

_INV_SQRT2 = 0.7071067811865476
_LN_EPS = 1e-5


def _gelu_exact(x):
    # matches torch.nn.GELU() default (erf-based)
    return 0.5 * x * (1.0 + lax.erf(x * _INV_SQRT2))


def _round_up(x, m):
    return (x + m - 1) // m * m


def hybrid_kernel(num_layers, hp, two_e, *refs):
    """Refs (in order):
      gnn_flat (TB, 64*E) bf16, cnn_flat (TB, E*S) bf16, h0 (L, TB, Hp) f32,
      fwg_rep (64*E, 2E) bf16, fwc_rep (E*S, 2E) bf16,
      per layer l: wih_l (in_l, 3*Hp) bf16, whh_l (Hp, 3*Hp) bf16,
      bias_slab (3 + 2L, BW) f32, head_w (Hp, HEAD_PAD) bf16, head_b (1, HEAD_PAD) f32,
      outputs: head_slab (TB, HEAD_PAD) f32, h_new (L, TB, Hp) f32.
    """
    f32, bf16 = jnp.float32, jnp.bfloat16
    gw = 3 * hp

    gnn_ref, cnn_ref, h0_ref, fwg_ref, fwc_ref = refs[:5]
    layer_refs = refs[5:5 + 2 * num_layers]
    bias_ref, hw_ref, hb_ref = refs[5 + 2 * num_layers:8 + 2 * num_layers]
    head_ref, hnew_ref = refs[8 + 2 * num_layers:10 + 2 * num_layers]

    biases = bias_ref[...]                                        # (3+2L, BW) f32

    # ---- fusion Linear: mean pooling folded into replicated bf16 weights -------
    x = (jnp.dot(gnn_ref[...], fwg_ref[...], preferred_element_type=f32)
         + jnp.dot(cnn_ref[...], fwc_ref[...], preferred_element_type=f32)
         + biases[0:1, :two_e])
    x = _gelu_exact(x)
    mu = jnp.mean(x, axis=-1, keepdims=True)
    var = jnp.mean((x - mu) * (x - mu), axis=-1, keepdims=True)
    x = (x - mu) * lax.rsqrt(var + _LN_EPS)
    x = x * biases[1:2, :two_e] + biases[2:3, :two_e]

    # ---- stacked GRU (seq_len == 1); gates padded to 128-lane boundaries -------
    h_in = x
    for l in range(num_layers):
        wih_ref, whh_ref = layer_refs[2 * l], layer_refs[2 * l + 1]
        h_prev = h0_ref[l]                                        # (TB, Hp) f32
        gi = (jnp.dot(h_in.astype(bf16), wih_ref[...], preferred_element_type=f32)
              + biases[3 + 2 * l:4 + 2 * l, :gw])
        gh = (jnp.dot(h_prev.astype(bf16), whh_ref[...], preferred_element_type=f32)
              + biases[4 + 2 * l:5 + 2 * l, :gw])
        r = jax.nn.sigmoid(gi[:, 0:hp] + gh[:, 0:hp])             # vreg-aligned slices
        z = jax.nn.sigmoid(gi[:, hp:2 * hp] + gh[:, hp:2 * hp])
        n = jnp.tanh(gi[:, 2 * hp:3 * hp] + r * gh[:, 2 * hp:3 * hp])
        h_new = (1.0 - z) * n + z * h_prev                        # pad lanes stay 0
        hnew_ref[l] = h_new
        h_in = h_new

    # ---- fused heads [policy | value | material | pad] (tanh done in wrapper) --
    head_ref[...] = (jnp.dot(h_in.astype(bf16), hw_ref[...], preferred_element_type=f32)
                     + hb_ref[...])


def _full_spec(a):
    nd = a.ndim
    return pl.BlockSpec(a.shape, lambda b, nd=nd: (0,) * nd)


def _choose_tb(B, act_row_bytes):
    """Batch tile: fits a v7x-safe activation double-buffer budget, >=2 grid steps for B>=16."""
    if B <= 8:
        return B
    budget = 24 << 20                                    # double-buffered activation budget
    cap = max(8, min(1024, (budget // max(1, 2 * act_row_bytes)) // 8 * 8))
    tb = min(_round_up(pl.cdiv(B, 2), 8), cap)           # >=2 steps -> both v7x TensorCores
    return max(8, tb)


def hybrid_rnn_forward(params, gnn_out, cnn_out_map, hidden_state,
                       *, weight_dtype=jnp.bfloat16, act_dtype=jnp.bfloat16):
    B, N_SQ, E = gnn_out.shape
    S = cnn_out_map.shape[2] * cnn_out_map.shape[3]
    L, _, H = hidden_state.shape
    P = params["policy_w"].shape[1]
    two_e = 2 * E
    Hp = _round_up(H, 128)                               # lane-padded hidden width
    HEAD_PAD = _round_up(P + 2, 128)                     # lane-dense fused head width
    KG, KC = N_SQ * E, E * S
    f32 = jnp.float32

    # ---- wrapper-side layout plumbing (pure XLA, once per call) -----------------
    gnn_flat = gnn_out.reshape(B, KG).astype(act_dtype)              # pure reshape, bf16
    cnn_flat = cnn_out_map.reshape(B, KC).astype(act_dtype)

    # fusion weight split per stream with 1/64 and 1/S means folded in (powers of 2 -> exact),
    # rows replicated so the kernel's K=KG / K=KC dots also perform the pooling.
    fwg = jnp.tile(params["fuse_w"][:E, :] * (1.0 / N_SQ), (N_SQ, 1)).astype(weight_dtype)
    fwc = jnp.repeat(params["fuse_w"][E:, :] * (1.0 / S), S, axis=0).astype(weight_dtype)

    # hidden state lane-padded to Hp (pads remain zero through the GRU)
    hidden_pad = jnp.pad(hidden_state, ((0, 0), (0, 0), (0, Hp - H))).astype(f32)

    BW = max(two_e, 3 * Hp)

    def pad_row(v, w):
        v = v.reshape(1, -1).astype(f32)
        return jnp.pad(v, ((0, 0), (0, w - v.shape[1])))

    layer_ws, bias_rows = [], []
    bias_rows += [pad_row(params["fuse_b"], BW),
                  pad_row(params["ln_g"], BW),
                  pad_row(params["ln_b"], BW)]
    for l in range(L):
        wih, whh = params[f"wih{l}"], params[f"whh{l}"]
        in_l = wih.shape[0]
        row_pad = (Hp - in_l) if l > 0 else 0            # layer>0 input is the padded hidden
        wih_p = jnp.pad(wih.reshape(in_l, 3, H),
                        ((0, row_pad), (0, 0), (0, Hp - H))).reshape(in_l + row_pad, 3 * Hp)
        whh_p = jnp.pad(whh.reshape(H, 3, H),
                        ((0, Hp - H), (0, 0), (0, Hp - H))).reshape(Hp, 3 * Hp)
        layer_ws += [wih_p.astype(weight_dtype), whh_p.astype(weight_dtype)]
        bih_p = jnp.pad(params[f"bih{l}"].reshape(3, H), ((0, 0), (0, Hp - H))).reshape(1, 3 * Hp)
        bhh_p = jnp.pad(params[f"bhh{l}"].reshape(3, H), ((0, 0), (0, Hp - H))).reshape(1, 3 * Hp)
        bias_rows += [pad_row(bih_p, BW), pad_row(bhh_p, BW)]
    bias_slab = jnp.concatenate(bias_rows, axis=0)       # (3+2L, BW) f32

    # fused, lane-padded head: [policy | value | material | 0-pad]
    head_w = jnp.concatenate(
        [params["policy_w"], params["value_w"].T, params["mat_w"].T], axis=1)
    head_w = jnp.pad(head_w, ((0, Hp - H), (0, HEAD_PAD - (P + 2)))).astype(weight_dtype)
    head_b = jnp.concatenate(
        [params["policy_b"], params["value_b"], params["mat_b"]], axis=1)
    head_b = jnp.pad(head_b, ((0, 0), (0, HEAD_PAD - (P + 2)))).astype(f32)

    # ---- batch tiling / VMEM sizing ---------------------------------------------
    act_row_bytes = (KG + KC) * jnp.dtype(act_dtype).itemsize
    TB = _choose_tb(B, act_row_bytes)
    grid = (pl.cdiv(B, TB),)

    inputs = [gnn_flat, cnn_flat, hidden_pad, fwg, fwc, *layer_ws, bias_slab, head_w, head_b]
    in_specs = [
        pl.BlockSpec((TB, KG), lambda b: (b, 0)),
        pl.BlockSpec((TB, KC), lambda b: (b, 0)),
        pl.BlockSpec((L, TB, Hp), lambda b: (0, b, 0)),
    ] + [_full_spec(a) for a in inputs[3:]]

    out_shapes = (jax.ShapeDtypeStruct((B, HEAD_PAD), f32),
                  jax.ShapeDtypeStruct((L, B, Hp), f32))
    out_specs = (pl.BlockSpec((TB, HEAD_PAD), lambda b: (b, 0)),
                 pl.BlockSpec((L, TB, Hp), lambda b: (0, b, 0)))

    w_bytes = sum(int(a.size) * a.dtype.itemsize for a in inputs[3:])
    per_step_in = TB * act_row_bytes + L * TB * Hp * 4
    per_step_out = TB * HEAD_PAD * 4 + L * TB * Hp * 4
    est = 2 * (per_step_in + per_step_out) + 2 * w_bytes           # double-buffered estimate
    vmem_limit = int(min(64 << 20, max(32 << 20, 2 * est)))        # v7x-safe cap

    kernel = functools.partial(hybrid_kernel, L, Hp, two_e)
    head_slab, new_hidden_pad = pl.pallas_call(
        kernel,
        out_shape=out_shapes,
        grid=grid,
        in_specs=in_specs,
        out_specs=out_specs,
        compiler_params=pltpu.CompilerParams(
            dimension_semantics=("parallel",),
            vmem_limit_bytes=vmem_limit),
    )(*inputs)

    policy = head_slab[:, :P]
    value = jnp.tanh(head_slab[:, P:P + 1])              # value tanh applied in the wrapper
    material = head_slab[:, P + 1:P + 2]
    new_hidden = new_hidden_pad[:, :, :H]
    return policy, value, material, new_hidden


# -------------------------- pure-JAX reference --------------------------------
def reference_forward(params, gnn_out, cnn_out_map, hidden_state,
                      *, weight_dtype=jnp.bfloat16, act_dtype=jnp.bfloat16):
    # Mirrors the kernel's quantization (bf16 weights AND bf16 matmul activations,
    # f32 accumulation / elementwise math) so only summation order differs.
    def q(w):
        return w.astype(weight_dtype).astype(jnp.float32)

    def qa(x):
        return x.astype(act_dtype).astype(jnp.float32)

    def dot(a, b):
        return jnp.dot(a, b, precision=lax.Precision.HIGHEST)

    B, E = cnn_out_map.shape[0], cnn_out_map.shape[1]
    L, _, H = hidden_state.shape
    gnn_pooled = jnp.mean(qa(gnn_out), axis=1)
    cnn_pooled = jnp.mean(qa(cnn_out_map.reshape(B, E, -1)), axis=2)
    fused = jnp.concatenate([gnn_pooled, cnn_pooled], axis=-1)
    x = dot(fused, q(params["fuse_w"])) + params["fuse_b"]
    x = 0.5 * x * (1.0 + lax.erf(x * _INV_SQRT2))
    mu = jnp.mean(x, axis=-1, keepdims=True)
    var = jnp.mean((x - mu) ** 2, axis=-1, keepdims=True)
    x = (x - mu) / jnp.sqrt(var + _LN_EPS) * params["ln_g"] + params["ln_b"]
    h_in = x
    h_news = []
    for l in range(L):
        h_prev = hidden_state[l]
        gi = dot(qa(h_in), q(params[f"wih{l}"])) + params[f"bih{l}"]
        gh = dot(qa(h_prev), q(params[f"whh{l}"])) + params[f"bhh{l}"]
        r = jax.nn.sigmoid(gi[:, :H] + gh[:, :H])
        z = jax.nn.sigmoid(gi[:, H:2 * H] + gh[:, H:2 * H])
        n = jnp.tanh(gi[:, 2 * H:] + r * gh[:, 2 * H:])
        h_new = (1.0 - z) * n + z * h_prev
        h_news.append(h_new)
        h_in = h_new
    policy = dot(qa(h_in), q(params["policy_w"])) + params["policy_b"]
    value = jnp.tanh(jnp.sum(qa(h_in) * q(params["value_w"]), -1, keepdims=True)
                     + params["value_b"])
    mat = jnp.sum(qa(h_in) * q(params["mat_w"]), -1, keepdims=True) + params["mat_b"]
    return policy, value, mat, jnp.stack(h_news, axis=0)


# -------------------------- param construction --------------------------------
def make_params(key, embed_dim, rnn_hidden, num_layers, policy_size):
    fused_dim = 2 * embed_dim
    ks = list(jax.random.split(key, 8 + 4 * num_layers))
    k = iter(ks)

    def uni(key, shape, fan_in):
        bound = 1.0 / jnp.sqrt(float(fan_in))
        return jax.random.uniform(key, shape, jnp.float32, -bound, bound)

    p = {}
    p["fuse_w"] = uni(next(k), (fused_dim, fused_dim), fused_dim)
    p["fuse_b"] = uni(next(k), (1, fused_dim), fused_dim)
    p["ln_g"] = jnp.ones((1, fused_dim), jnp.float32)
    p["ln_b"] = jnp.zeros((1, fused_dim), jnp.float32)
    for l in range(num_layers):
        in_dim = fused_dim if l == 0 else rnn_hidden
        p[f"wih{l}"] = uni(next(k), (in_dim, 3 * rnn_hidden), rnn_hidden)
        p[f"whh{l}"] = uni(next(k), (rnn_hidden, 3 * rnn_hidden), rnn_hidden)
        p[f"bih{l}"] = uni(next(k), (1, 3 * rnn_hidden), rnn_hidden)
        p[f"bhh{l}"] = uni(next(k), (1, 3 * rnn_hidden), rnn_hidden)
    p["policy_w"] = uni(next(k), (rnn_hidden, policy_size), rnn_hidden)
    p["policy_b"] = uni(next(k), (1, policy_size), rnn_hidden)
    p["value_w"] = uni(next(k), (1, rnn_hidden), rnn_hidden)
    p["value_b"] = uni(next(k), (1, 1), rnn_hidden)
    p["mat_w"] = uni(next(k), (1, rnn_hidden), rnn_hidden)
    p["mat_b"] = uni(next(k), (1, 1), rnn_hidden)
    return p


if __name__ == "__main__":
    B = 32                      # small, but gives 2 grid steps (TB=16) -> exercises megacore path
    EMBED_DIM = 32
    RNN_HIDDEN = 32
    NUM_LAYERS = 2
    POLICY_SIZE = 64
    HC = WC = 8                 # 8x8 board feature map from the CNN

    root = jax.random.PRNGKey(0)
    kp, kg, kc, kh = jax.random.split(root, 4)

    params = make_params(kp, EMBED_DIM, RNN_HIDDEN, NUM_LAYERS, POLICY_SIZE)
    gnn_out = jax.random.normal(kg, (B, 64, EMBED_DIM), jnp.float32)
    cnn_out_map = jax.random.normal(kc, (B, EMBED_DIM, HC, WC), jnp.float32)
    hidden_state = jax.random.normal(kh, (NUM_LAYERS, B, RNN_HIDDEN), jnp.float32)

    outs = hybrid_rnn_forward(params, gnn_out, cnn_out_map, hidden_state)
    outs = jax.block_until_ready(outs)
    policy, value, material, new_hidden = outs

    ref = reference_forward(params, gnn_out, cnn_out_map, hidden_state)
    for got, exp in zip(outs, ref):
        assert got.shape == exp.shape, (got.shape, exp.shape)
        err = float(jnp.max(jnp.abs(got - exp)))
        assert jnp.allclose(got, exp, rtol=3e-3, atol=3e-3), err

    print("KERNEL_OK")
</pallas_src>

<mosaic_0001>
module attributes {stable_mosaic.version = 11 : i64} {
  func.func @hybrid_kernel(%arg0: i32, %arg1: memref<16x2048xbf16, #tpu.memory_space<vmem>>, %arg2: memref<16x2048xbf16, #tpu.memory_space<vmem>>, %arg3: memref<2x16x128xf32, #tpu.memory_space<vmem>>, %arg4: memref<2048x64xbf16, #tpu.memory_space<vmem>>, %arg5: memref<2048x64xbf16, #tpu.memory_space<vmem>>, %arg6: memref<64x384xbf16, #tpu.memory_space<vmem>>, %arg7: memref<128x384xbf16, #tpu.memory_space<vmem>>, %arg8: memref<128x384xbf16, #tpu.memory_space<vmem>>, %arg9: memref<128x384xbf16, #tpu.memory_space<vmem>>, %arg10: memref<7x384xf32, #tpu.memory_space<vmem>>, %arg11: memref<128x128xbf16, #tpu.memory_space<vmem>>, %arg12: memref<1x128xf32, #tpu.memory_space<vmem>>, %arg13: memref<16x128xf32, #tpu.memory_space<vmem>>, %arg14: memref<2x16x128xf32, #tpu.memory_space<vmem>>) attributes {dimension_semantics = [#tpu.dimension_semantics<parallel>], iteration_bounds = array<i64: 2>, scalar_prefetch = 0 : i64, scratch_operands = 0 : i64, tpu.core_type = #tpu.core_type<tc>, window_params = [{transform_indices = @transform_0, window_bounds = array<i64: 16, 2048>}, {transform_indices = @transform_1, window_bounds = array<i64: 16, 2048>}, {transform_indices = @transform_2, window_bounds = array<i64: 2, 16, 128>}, {pipeline_mode = #tpu.pipeline_mode<synchronous>, transform_indices = @transform_3, window_bounds = array<i64: 2048, 64>}, {pipeline_mode = #tpu.pipeline_mode<synchronous>, transform_indices = @transform_4, window_bounds = array<i64: 2048, 64>}, {pipeline_mode = #tpu.pipeline_mode<synchronous>, transform_indices = @transform_5, window_bounds = array<i64: 64, 384>}, {pipeline_mode = #tpu.pipeline_mode<synchronous>, transform_indices = @transform_6, window_bounds = array<i64: 128, 384>}, {pipeline_mode = #tpu.pipeline_mode<synchronous>, transform_indices = @transform_7, window_bounds = array<i64: 128, 384>}, {pipeline_mode = #tpu.pipeline_mode<synchronous>, transform_indices = @transform_8, window_bounds = array<i64: 128, 384>}, {pipeline_mode = #tpu.pipeline_mode<synchronous>, transform_indices = @transform_9, window_bounds = array<i64: 7, 384>}, {pipeline_mode = #tpu.pipeline_mode<synchronous>, transform_indices = @transform_10, window_bounds = array<i64: 128, 128>}, {pipeline_mode = #tpu.pipeline_mode<synchronous>, transform_indices = @transform_11, window_bounds = array<i64: 1, 128>}, {transform_indices = @transform_12, window_bounds = array<i64: 16, 128>}, {transform_indices = @transform_13, window_bounds = array<i64: 2, 16, 128>}]} {
    %c0 = arith.constant 0 : index
    %c0_0 = arith.constant 0 : index
    %0 = vector.load %arg10[%c0, %c0_0] : memref<7x384xf32, #tpu.memory_space<vmem>>, vector<7x384xf32>
    %c0_1 = arith.constant 0 : index
    %c0_2 = arith.constant 0 : index
    %1 = vector.load %arg1[%c0_1, %c0_2] : memref<16x2048xbf16, #tpu.memory_space<vmem>>, vector<16x2048xbf16>
    %c0_3 = arith.constant 0 : index
    %c0_4 = arith.constant 0 : index
    %2 = vector.load %arg4[%c0_3, %c0_4] : memref<2048x64xbf16, #tpu.memory_space<vmem>>, vector<2048x64xbf16>
    %cst = arith.constant dense<0.000000e+00> : vector<16x64xf32>
    %3 = tpu.matmul %1, %2, %cst {dimension_numbers = #tpu.dot_dimension_numbers<[1], [0], [0], [1], [0, 0, 1, 1], [], []>} : vector<16x2048xbf16>, vector<2048x64xbf16>, vector<16x64xf32> -> vector<16x64xf32>
    %c0_5 = arith.constant 0 : index
    %c0_6 = arith.constant 0 : index
    %4 = vector.load %arg2[%c0_5, %c0_6] : memref<16x2048xbf16, #tpu.memory_space<vmem>>, vector<16x2048xbf16>
    %c0_7 = arith.constant 0 : index
    %c0_8 = arith.constant 0 : index
    %5 = vector.load %arg5[%c0_7, %c0_8] : memref<2048x64xbf16, #tpu.memory_space<vmem>>, vector<2048x64xbf16>
    %cst_9 = arith.constant dense<0.000000e+00> : vector<16x64xf32>
    %6 = tpu.matmul %4, %5, %cst_9 {dimension_numbers = #tpu.dot_dimension_numbers<[1], [0], [0], [1], [0, 0, 1, 1], [], []>} : vector<16x2048xbf16>, vector<2048x64xbf16>, vector<16x64xf32> -> vector<16x64xf32>
    %7 = arith.addf %3, %6 : vector<16x64xf32>
    %8 = vector.extract_strided_slice %0 {offsets = [0, 0], sizes = [1, 64], strides = [1, 1]} : vector<7x384xf32> to vector<1x64xf32>
    %9 = vector.broadcast %8 : vector<1x64xf32> to vector<16x64xf32>
    %10 = arith.addf %7, %9 : vector<16x64xf32>
    %cst_10 = arith.constant 5.000000e-01 : f32
    %11 = vector.broadcast %cst_10 : f32 to vector<16x64xf32>
    %12 = arith.mulf %11, %10 : vector<16x64xf32>
    %cst_11 = arith.constant 0.707106769 : f32
    %13 = vector.broadcast %cst_11 : f32 to vector<16x64xf32>
    %14 = arith.mulf %10, %13 : vector<16x64xf32>
    %15 = math.erf %14 : vector<16x64xf32>
    %cst_12 = arith.constant 1.000000e+00 : f32
    %16 = vector.broadcast %cst_12 : f32 to vector<16x64xf32>
    %17 = arith.addf %16, %15 : vector<16x64xf32>
    %18 = arith.mulf %12, %17 : vector<16x64xf32>
    %cst_13 = arith.constant dense<0.000000e+00> : vector<16xf32>
    %19 = vector.multi_reduction <add>, %18, %cst_13 [1] : vector<16x64xf32> to vector<16xf32>
    %20 = vector.shape_cast %19 : vector<16xf32> to vector<16x1xf32>
    %cst_14 = arith.constant 6.400000e+01 : f32
    %21 = vector.broadcast %cst_14 : f32 to vector<16x1xf32>
    %22 = arith.divf %20, %21 : vector<16x1xf32>
    %23 = vector.broadcast %22 : vector<16x1xf32> to vector<16x64xf32>
    %24 = arith.subf %18, %23 : vector<16x64xf32>
    %25 = vector.broadcast %22 : vector<16x1xf32> to vector<16x64xf32>
    %26 = arith.subf %18, %25 : vector<16x64xf32>
    %27 = arith.mulf %24, %26 : vector<16x64xf32>
    %cst_15 = arith.constant dense<0.000000e+00> : vector<16xf32>
    %28 = vector.multi_reduction <add>, %27, %cst_15 [1] : vector<16x64xf32> to vector<16xf32>
    %29 = vector.shape_cast %28 : vector<16xf32> to vector<16x1xf32>
    %cst_16 = arith.constant 6.400000e+01 : f32
    %30 = vector.broadcast %cst_16 : f32 to vector<16x1xf32>
    %31 = arith.divf %29, %30 : vector<16x1xf32>
    %32 = vector.broadcast %22 : vector<16x1xf32> to vector<16x64xf32>
    %33 = arith.subf %18, %32 : vector<16x64xf32>
    %cst_17 = arith.constant 9.99999974E-6 : f32
    %34 = vector.broadcast %cst_17 : f32 to vector<16x1xf32>
    %35 = arith.addf %31, %34 : vector<16x1xf32>
    %36 = math.rsqrt %35 : vector<16x1xf32>
    %37 = vector.broadcast %36 : vector<16x1xf32> to vector<16x64xf32>
    %38 = arith.mulf %33, %37 : vector<16x64xf32>
    %39 = vector.extract_strided_slice %0 {offsets = [1, 0], sizes = [1, 64], strides = [1, 1]} : vector<7x384xf32> to vector<1x64xf32>
    %40 = vector.broadcast %39 : vector<1x64xf32> to vector<16x64xf32>
    %41 = arith.mulf %38, %40 : vector<16x64xf32>
    %42 = vector.extract_strided_slice %0 {offsets = [2, 0], sizes = [1, 64], strides = [1, 1]} : vector<7x384xf32> to vector<1x64xf32>
    %43 = vector.broadcast %42 : vector<1x64xf32> to vector<16x64xf32>
    %44 = arith.addf %41, %43 : vector<16x64xf32>
    %c0_18 = arith.constant 0 : index
    %c0_19 = arith.constant 0 : index
    %c0_20 = arith.constant 0 : index
    %45 = vector.load %arg3[%c0_18, %c0_19, %c0_20] : memref<2x16x128xf32, #tpu.memory_space<vmem>>, vector<1x16x128xf32>
    %46 = vector.shape_cast %45 : vector<1x16x128xf32> to vector<16x128xf32>
    %47 = arith.truncf %44 : vector<16x64xf32> to vector<16x64xbf16>
    %c0_21 = arith.constant 0 : index
    %c0_22 = arith.constant 0 : index
    %48 = vector.load %arg6[%c0_21, %c0_22] : memref<64x384xbf16, #tpu.memory_space<vmem>>, vector<64x384xbf16>
    %cst_23 = arith.constant dense<0.000000e+00> : vector<16x384xf32>
    %49 = tpu.matmul %47, %48, %cst_23 {dimension_numbers = #tpu.dot_dimension_numbers<[1], [0], [0], [1], [0, 0, 1, 1], [], []>} : vector<16x64xbf16>, vector<64x384xbf16>, vector<16x384xf32> -> vector<16x384xf32>
    %50 = vector.extract_strided_slice %0 {offsets = [3, 0], sizes = [1, 384], strides = [1, 1]} : vector<7x384xf32> to vector<1x384xf32>
    %51 = vector.broadcast %50 : vector<1x384xf32> to vector<16x384xf32>
    %52 = arith.addf %49, %51 : vector<16x384xf32>
    %53 = arith.truncf %46 : vector<16x128xf32> to vector<16x128xbf16>
    %c0_24 = arith.constant 0 : index
    %c0_25 = arith.constant 0 : index
    %54 = vector.load %arg7[%c0_24, %c0_25] : memref<128x384xbf16, #tpu.memory_space<vmem>>, vector<128x384xbf16>
    %cst_26 = arith.constant dense<0.000000e+00> : vector<16x384xf32>
    %55 = tpu.matmul %53, %54, %cst_26 {dimension_numbers = #tpu.dot_dimension_numbers<[1], [0], [0], [1], [0, 0, 1, 1], [], []>} : vector<16x128xbf16>, vector<128x384xbf16>, vector<16x384xf32> -> vector<16x384xf32>
    %56 = vector.extract_strided_slice %0 {offsets = [4, 0], sizes = [1, 384], strides = [1, 1]} : vector<7x384xf32> to vector<1x384xf32>
    %57 = vector.broadcast %56 : vector<1x384xf32> to vector<16x384xf32>
    %58 = arith.addf %55, %57 : vector<16x384xf32>
    %59 = vector.extract_strided_slice %52 {offsets = [0, 0], sizes = [16, 128], strides = [1, 1]} : vector<16x384xf32> to vector<16x128xf32>
    %60 = vector.extract_strided_slice %58 {offsets = [0, 0], sizes = [16, 128], strides = [1, 1]} : vector<16x384xf32> to vector<16x128xf32>
    %61 = arith.addf %59, %60 : vector<16x128xf32>
    %62 = arith.negf %61 : vector<16x128xf32>
    %63 = math.exp %62 : vector<16x128xf32>
    %cst_27 = arith.constant 1.000000e+00 : f32
    %64 = vector.broadcast %cst_27 : f32 to vector<16x128xf32>
    %65 = arith.addf %64, %63 : vector<16x128xf32>
    %66 = arith.divf %64, %65 : vector<16x128xf32>
    %67 = vector.extract_strided_slice %52 {offsets = [0, 128], sizes = [16, 128], strides = [1, 1]} : vector<16x384xf32> to vector<16x128xf32>
    %68 = vector.extract_strided_slice %58 {offsets = [0, 128], sizes = [16, 128], strides = [1, 1]} : vector<16x384xf32> to vector<16x128xf32>
    %69 = arith.addf %67, %68 : vector<16x128xf32>
    %70 = arith.negf %69 : vector<16x128xf32>
    %71 = math.exp %70 : vector<16x128xf32>
    %cst_28 = arith.constant 1.000000e+00 : f32
    %72 = vector.broadcast %cst_28 : f32 to vector<16x128xf32>
    %73 = arith.addf %72, %71 : vector<16x128xf32>
    %74 = arith.divf %72, %73 : vector<16x128xf32>
    %75 = vector.extract_strided_slice %52 {offsets = [0, 256], sizes = [16, 128], strides = [1, 1]} : vector<16x384xf32> to vector<16x128xf32>
    %76 = vector.extract_strided_slice %58 {offsets = [0, 256], sizes = [16, 128], strides = [1, 1]} : vector<16x384xf32> to vector<16x128xf32>
    %77 = arith.mulf %66, %76 : vector<16x128xf32>
    %78 = arith.addf %75, %77 : vector<16x128xf32>
    %79 = math.tanh %78 : vector<16x128xf32>
    %cst_29 = arith.constant 1.000000e+00 : f32
    %80 = vector.broadcast %cst_29 : f32 to vector<16x128xf32>
    %81 = arith.subf %80, %74 : vector<16x128xf32>
    %82 = arith.mulf %81, %79 : vector<16x128xf32>
    %83 = arith.mulf %74, %46 : vector<16x128xf32>
    %84 = arith.addf %82, %83 : vector<16x128xf32>
    %c0_30 = arith.constant 0 : index
    %c0_31 = arith.constant 0 : index
    %c0_32 = arith.constant 0 : index
    %85 = vector.load %arg14[%c0_30, %c0_31, %c0_32] : memref<2x16x128xf32, #tpu.memory_space<vmem>>, vector<1x16x128xf32>
    %86 = vector.shape_cast %85 : vector<1x16x128xf32> to vector<16x128xf32>
    %87 = vector.shape_cast %84 : vector<16x128xf32> to vector<1x16x128xf32>
    tpu.vector_store %arg14[%c0_30, %c0_31, %c0_32], %87 {strides = array<i32>} : memref<2x16x128xf32, #tpu.memory_space<vmem>>, vector<1x16x128xf32>,
    %c1 = arith.constant 1 : index
    %c0_33 = arith.constant 0 : index
    %c0_34 = arith.constant 0 : index
    %88 = vector.load %arg3[%c1, %c0_33, %c0_34] : memref<2x16x128xf32, #tpu.memory_space<vmem>>, vector<1x16x128xf32>
    %89 = vector.shape_cast %88 : vector<1x16x128xf32> to vector<16x128xf32>
    %90 = arith.truncf %84 : vector<16x128xf32> to vector<16x128xbf16>
    %c0_35 = arith.constant 0 : index
    %c0_36 = arith.constant 0 : index
    %91 = vector.load %arg8[%c0_35, %c0_36] : memref<128x384xbf16, #tpu.memory_space<vmem>>, vector<128x384xbf16>
    %cst_37 = arith.constant dense<0.000000e+00> : vector<16x384xf32>
    %92 = tpu.matmul %90, %91, %cst_37 {dimension_numbers = #tpu.dot_dimension_numbers<[1], [0], [0], [1], [0, 0, 1, 1], [], []>} : vector<16x128xbf16>, vector<128x384xbf16>, vector<16x384xf32> -> vector<16x384xf32>
    %93 = vector.extract_strided_slice %0 {offsets = [5, 0], sizes = [1, 384], strides = [1, 1]} : vector<7x384xf32> to vector<1x384xf32>
    %94 = vector.broadcast %93 : vector<1x384xf32> to vector<16x384xf32>
    %95 = arith.addf %92, %94 : vector<16x384xf32>
    %96 = arith.truncf %89 : vector<16x128xf32> to vector<16x128xbf16>
    %c0_38 = arith.constant 0 : index
    %c0_39 = arith.constant 0 : index
    %97 = vector.load %arg9[%c0_38, %c0_39] : memref<128x384xbf16, #tpu.memory_space<vmem>>, vector<128x384xbf16>
    %cst_40 = arith.constant dense<0.000000e+00> : vector<16x384xf32>
    %98 = tpu.matmul %96, %97, %cst_40 {dimension_numbers = #tpu.dot_dimension_numbers<[1], [0], [0], [1], [0, 0, 1, 1], [], []>} : vector<16x128xbf16>, vector<128x384xbf16>, vector<16x384xf32> -> vector<16x384xf32>
    %99 = vector.extract_strided_slice %0 {offsets = [6, 0], sizes = [1, 384], strides = [1, 1]} : vector<7x384xf32> to vector<1x384xf32>
    %100 = vector.broadcast %99 : vector<1x384xf32> to vector<16x384xf32>
    %101 = arith.addf %98, %100 : vector<16x384xf32>
    %102 = vector.extract_strided_slice %95 {offsets = [0, 0], sizes = [16, 128], strides = [1, 1]} : vector<16x384xf32> to vector<16x128xf32>
    %103 = vector.extract_strided_slice %101 {offsets = [0, 0], sizes = [16, 128], strides = [1, 1]} : vector<16x384xf32> to vector<16x128xf32>
    %104 = arith.addf %102, %103 : vector<16x128xf32>
    %105 = arith.negf %104 : vector<16x128xf32>
    %106 = math.exp %105 : vector<16x128xf32>
    %cst_41 = arith.constant 1.000000e+00 : f32
    %107 = vector.broadcast %cst_41 : f32 to vector<16x128xf32>
    %108 = arith.addf %107, %106 : vector<16x128xf32>
    %109 = arith.divf %107, %108 : vector<16x128xf32>
    %110 = vector.extract_strided_slice %95 {offsets = [0, 128], sizes = [16, 128], strides = [1, 1]} : vector<16x384xf32> to vector<16x128xf32>
    %111 = vector.extract_strided_slice %101 {offsets = [0, 128], sizes = [16, 128], strides = [1, 1]} : vector<16x384xf32> to vector<16x128xf32>
    %112 = arith.addf %110, %111 : vector<16x128xf32>
    %113 = arith.negf %112 : vector<16x128xf32>
    %114 = math.exp %113 : vector<16x128xf32>
    %cst_42 = arith.constant 1.000000e+00 : f32
    %115 = vector.broadcast %cst_42 : f32 to vector<16x128xf32>
    %116 = arith.addf %115, %114 : vector<16x128xf32>
    %117 = arith.divf %115, %116 : vector<16x128xf32>
    %118 = vector.extract_strided_slice %95 {offsets = [0, 256], sizes = [16, 128], strides = [1, 1]} : vector<16x384xf32> to vector<16x128xf32>
    %119 = vector.extract_strided_slice %101 {offsets = [0, 256], sizes = [16, 128], strides = [1, 1]} : vector<16x384xf32> to vector<16x128xf32>
    %120 = arith.mulf %109, %119 : vector<16x128xf32>
    %121 = arith.addf %118, %120 : vector<16x128xf32>
    %122 = math.tanh %121 : vector<16x128xf32>
    %cst_43 = arith.constant 1.000000e+00 : f32
    %123 = vector.broadcast %cst_43 : f32 to vector<16x128xf32>
    %124 = arith.subf %123, %117 : vector<16x128xf32>
    %125 = arith.mulf %124, %122 : vector<16x128xf32>
    %126 = arith.mulf %117, %89 : vector<16x128xf32>
    %127 = arith.addf %125, %126 : vector<16x128xf32>
    %c1_44 = arith.constant 1 : index
    %c0_45 = arith.constant 0 : index
    %c0_46 = arith.constant 0 : index
    %128 = vector.load %arg14[%c1_44, %c0_45, %c0_46] : memref<2x16x128xf32, #tpu.memory_space<vmem>>, vector<1x16x128xf32>
    %129 = vector.shape_cast %128 : vector<1x16x128xf32> to vector<16x128xf32>
    %130 = vector.shape_cast %127 : vector<16x128xf32> to vector<1x16x128xf32>
    tpu.vector_store %arg14[%c1_44, %c0_45, %c0_46], %130 {strides = array<i32>} : memref<2x16x128xf32, #tpu.memory_space<vmem>>, vector<1x16x128xf32>,
    %131 = arith.truncf %127 : vector<16x128xf32> to vector<16x128xbf16>
    %c0_47 = arith.constant 0 : index
    %c0_48 = arith.constant 0 : index
    %132 = vector.load %arg11[%c0_47, %c0_48] : memref<128x128xbf16, #tpu.memory_space<vmem>>, vector<128x128xbf16>
    %cst_49 = arith.constant dense<0.000000e+00> : vector<16x128xf32>
    %133 = tpu.matmul %131, %132, %cst_49 {dimension_numbers = #tpu.dot_dimension_numbers<[1], [0], [0], [1], [0, 0, 1, 1], [], []>} : vector<16x128xbf16>, vector<128x128xbf16>, vector<16x128xf32> -> vector<16x128xf32>
    %c0_50 = arith.constant 0 : index
    %c0_51 = arith.constant 0 : index
    %134 = vector.load %arg12[%c0_50, %c0_51] : memref<1x128xf32, #tpu.memory_space<vmem>>, vector<1x128xf32>
    %135 = vector.broadcast %134 : vector<1x128xf32> to vector<16x128xf32>
    %136 = arith.addf %133, %135 : vector<16x128xf32>
    %c0_52 = arith.constant 0 : index
    %c0_53 = arith.constant 0 : index
    %137 = vector.load %arg13[%c0_52, %c0_53] : memref<16x128xf32, #tpu.memory_space<vmem>>, vector<16x128xf32>
    tpu.vector_store %arg13[%c0_52, %c0_53], %136 {strides = array<i32>} : memref<16x128xf32, #tpu.memory_space<vmem>>, vector<16x128xf32>,
    return
  }
  func.func @transform_0(%arg0: i32) -> (i32, i32) {
    %c0_i32 = arith.constant 0 : i32
    %c0_i32_0 = arith.constant 0 : i32
    return %arg0, %c0_i32 : i32, i32
  }
  func.func @transform_1(%arg0: i32) -> (i32, i32) {
    %c0_i32 = arith.constant 0 : i32
    %c0_i32_0 = arith.constant 0 : i32
    return %arg0, %c0_i32 : i32, i32
  }
  func.func @transform_2(%arg0: i32) -> (i32, i32, i32) {
    %c0_i32 = arith.constant 0 : i32
    %c0_i32_0 = arith.constant 0 : i32
    %c0_i32_1 = arith.constant 0 : i32
    return %c0_i32, %arg0, %c0_i32_0 : i32, i32, i32
  }
  func.func @transform_3(%arg0: i32) -> (i32, i32) {
    %c0_i32 = arith.constant 0 : i32
    %c0_i32_0 = arith.constant 0 : i32
    %c0_i32_1 = arith.constant 0 : i32
    return %c0_i32, %c0_i32_0 : i32, i32
  }
  func.func @transform_4(%arg0: i32) -> (i32, i32) {
    %c0_i32 = arith.constant 0 : i32
    %c0_i32_0 = arith.constant 0 : i32
    %c0_i32_1 = arith.constant 0 : i32
    return %c0_i32, %c0_i32_0 : i32, i32
  }
  func.func @transform_5(%arg0: i32) -> (i32, i32) {
    %c0_i32 = arith.constant 0 : i32
    %c0_i32_0 = arith.constant 0 : i32
    %c0_i32_1 = arith.constant 0 : i32
    return %c0_i32, %c0_i32_0 : i32, i32
  }
  func.func @transform_6(%arg0: i32) -> (i32, i32) {
    %c0_i32 = arith.constant 0 : i32
    %c0_i32_0 = arith.constant 0 : i32
    %c0_i32_1 = arith.constant 0 : i32
    return %c0_i32, %c0_i32_0 : i32, i32
  }
  func.func @transform_7(%arg0: i32) -> (i32, i32) {
    %c0_i32 = arith.constant 0 : i32
    %c0_i32_0 = arith.constant 0 : i32
    %c0_i32_1 = arith.constant 0 : i32
    return %c0_i32, %c0_i32_0 : i32, i32
  }
  func.func @transform_8(%arg0: i32) -> (i32, i32) {
    %c0_i32 = arith.constant 0 : i32
    %c0_i32_0 = arith.constant 0 : i32
    %c0_i32_1 = arith.constant 0 : i32
    return %c0_i32, %c0_i32_0 : i32, i32
  }
  func.func @transform_9(%arg0: i32) -> (i32, i32) {
    %c0_i32 = arith.constant 0 : i32
    %c0_i32_0 = arith.constant 0 : i32
    %c0_i32_1 = arith.constant 0 : i32
    return %c0_i32, %c0_i32_0 : i32, i32
  }
  func.func @transform_10(%arg0: i32) -> (i32, i32) {
    %c0_i32 = arith.constant 0 : i32
    %c0_i32_0 = arith.constant 0 : i32
    %c0_i32_1 = arith.constant 0 : i32
    return %c0_i32, %c0_i32_0 : i32, i32
  }
  func.func @transform_11(%arg0: i32) -> (i32, i32) {
    %c0_i32 = arith.constant 0 : i32
    %c0_i32_0 = arith.constant 0 : i32
    %c0_i32_1 = arith.constant 0 : i32
    return %c0_i32, %c0_i32_0 : i32, i32
  }
  func.func @transform_12(%arg0: i32) -> (i32, i32) {
    %c0_i32 = arith.constant 0 : i32
    %c0_i32_0 = arith.constant 0 : i32
    return %arg0, %c0_i32 : i32, i32
  }
  func.func @transform_13(%arg0: i32) -> (i32, i32, i32) {
    %c0_i32 = arith.constant 0 : i32
    %c0_i32_0 = arith.constant 0 : i32
    %c0_i32_1 = arith.constant 0 : i32
    return %c0_i32, %arg0, %c0_i32_0 : i32, i32, i32
  }
}

</mosaic_0001>

<llo_original>
// kernel: tpu_custom_call.1
$region0: #{tpu_custom_call.1}
  #allocation0 [shape = 'u32[]', space=smem, size = 0x4, offset = 0x4, fixed_abs, tag = 'smem constant byte address 0x4 - core index']
  #allocation1 [shape = 'u32[144,128]{1,0:T(1,128)}', space=vmem, size = 0x12000, scoped, tag = 'internal scratch']
  #allocation7 [shape = 's32[]', space=sflag, size = 0x4, offset = 0, fixed_abs, tag = 'sflag constant byte address 0x0 - dummy sync flag']
  %s0 = inlined_call_operand.vmem [shape: bf16[32,2048], index: 0, kind: input, shape index: {}]
  %s1 = inlined_call_operand.vmem [shape: bf16[32,2048], index: 1, kind: input, shape index: {}]
  %s2 = inlined_call_operand.vmem [shape: f32[2,32,128], index: 2, kind: input, shape index: {}]
  %s3 = inlined_call_operand.vmem [shape: bf16[2048,64], index: 3, kind: input, shape index: {}]
  %s4 = inlined_call_operand.vmem [shape: bf16[2048,64], index: 4, kind: input, shape index: {}]
  %s5 = inlined_call_operand.vmem [shape: bf16[64,384], index: 5, kind: input, shape index: {}]
  %s6 = inlined_call_operand.vmem [shape: bf16[128,384], index: 6, kind: input, shape index: {}]
  %s7 = inlined_call_operand.vmem [shape: bf16[128,384], index: 7, kind: input, shape index: {}]
  %s8 = inlined_call_operand.vmem [shape: bf16[128,384], index: 8, kind: input, shape index: {}]
  %s9 = inlined_call_operand.vmem [shape: f32[7,384], index: 9, kind: input, shape index: {}]
  %s10 = inlined_call_operand.vmem [shape: bf16[128,128], index: 10, kind: input, shape index: {}]
  %s11 = inlined_call_operand.vmem [shape: f32[1,128], index: 11, kind: input, shape index: {}]
  %s12 = inlined_call_operand.hbm [shape: f32[32,128], index: 12, kind: output, shape index: {0}]
  %s13 = inlined_call_operand.hbm [shape: f32[2,32,128], index: 13, kind: output, shape index: {1}]
  %14 = xla_tuple %s12, %s13
  %s15 = sld [smem:[#allocation0]]
  $region127: #{tpu_custom_call.1} parent=0
    _
  %s17 = ssub.s32 1, %s15
  %s18 = scalar_select 0, %s17, %s15
  $region1: #{tpu_custom_call.1} parent=0
    #allocation2 [shape = 'u8[32768]{0}', space=vmem, size = 0x8000, scoped, tag = 'input window, operand 2']
    #allocation3 [shape = 'u8[16384]{0}', space=vmem, size = 0x4000, scoped, tag = 'output window, operand 0']
    #allocation4 [shape = 's32[2]{0}', space=sflag, size = 0x8, scoped, tag = 'scoped memory for tpu_custom_call.1']
    #allocation5 [shape = 'u8[32768]{0}', space=vmem, size = 0x8000, scoped, tag = 'output window, operand 1']
    #allocation6 [shape = 's32[2]{0}', space=sflag, size = 0x8, scoped, tag = 'scoped memory for tpu_custom_call.1']
    %19 = vsyncpa [#allocation4], 0
    %s20 = scalar_lea.sflag [#allocation4], 1
    %21 = vsyncpa %s20, 0
    %22 = vsyncpa [#allocation6], 0
    %s23 = scalar_lea.sflag [#allocation6], 1
    %24 = vsyncpa %s23, 0
    loop: start=0, step=1, limit=4
    $region2: #{tpu_custom_call.1} parent=1 // loop_pre_header
      _
    $region3: #{tpu_custom_call.1} parent=1 // loop_header
      %s26 = sphi 0, %s30
      %p27 = scmp.ge.s32.totalorder %s26, 4
      %s36 = sphi 0, %s38
      %s39 = sphi 0, %s36
      %s40 = sphi 0, %s39
      %s56 = sphi 0, %s40
      %s62 = sphi 0, %s64
      %s65 = sphi 0, %s62
      %s66 = sphi 0, %s65
      %s82 = sphi 0, %s66
      %s88 = sphi 0, %s90
      %s91 = sphi 0, %s88
      %s92 = sphi 0, %s91
      %s108 = sphi 0, %s92
      %s112 = sphi 0, %s112
      %s114 = sphi 0, %s112
      %s115 = sphi 0, %s114
      %s129 = sphi 0, %s115
      %s133 = sphi 0, %s133
      %s135 = sphi 0, %s133
      %s136 = sphi 0, %s135
      %s150 = sphi 0, %s136
      %s154 = sphi 0, %s154
      %s156 = sphi 0, %s154
      %s157 = sphi 0, %s156
      %s171 = sphi 0, %s157
      %s175 = sphi 0, %s175
      %s177 = sphi 0, %s175
      %s178 = sphi 0, %s177
      %s192 = sphi 0, %s178
      %s196 = sphi 0, %s196
      %s198 = sphi 0, %s196
      %s199 = sphi 0, %s198
      %s213 = sphi 0, %s199
      %s217 = sphi 0, %s217
      %s219 = sphi 0, %s217
      %s220 = sphi 0, %s219
      %s234 = sphi 0, %s220
      %s238 = sphi 0, %s238
      %s240 = sphi 0, %s238
      %s241 = sphi 0, %s240
      %s255 = sphi 0, %s241
      %s259 = sphi 0, %s259
      %s261 = sphi 0, %s259
      %s262 = sphi 0, %s261
      %s276 = sphi 0, %s262
      %s280 = sphi 0, %s280
      %s282 = sphi 0, %s280
      %s283 = sphi 0, %s282
      %s297 = sphi 0, %s283
      %s303 = sphi 0, %s305
      %s306 = sphi 0, %s303
      %s307 = sphi 0, %s306
      %s323 = sphi 0, %s307
      %s329 = sphi 0, %s331
      %s332 = sphi 0, %s329
      %s333 = sphi 0, %s332
      %s349 = sphi 0, %s333
    $region4: #{tpu_custom_call.1} parent=1 // loop_header_branch
      %29 = sbr.rel (%p27) target = $region8
    $region5: #{tpu_custom_call.1} parent=1 // loop_body
      %s31 = ssub.s32 %s26, 1
      %s32 = ssub.s32 %s26, 2
      %s33 = sadd.s32 %s26, 1
      %s34 = ssub.s32 %s26, %s33
      %p35 = scmp.eq.s32.totalorder %s34, 0
      %s37 = sadd.s32 %s36, 1
      %s38 = scalar_select %p35, %s36, %s37
      %p41 = pneg %p35
      %p42 = scmp.eq.s32.totalorder %s26, 1
      %p43 = por %p41, %p42
      %p44 = scmp.ne.s32.totalorder %s36, %s39
      %p45 = scmp.eq.s32.totalorder %s26, 0
      %p46 = por %p44, %p45
      %p47 = scmp.ne.s32.totalorder %s36, %s39
      %p48 = scmp.eq.s32.totalorder %s31, 1
      %p49 = por %p47, %p48
      %p50 = scmp.ne.s32.totalorder %s39, %s40
      %p51 = scmp.eq.s32.totalorder %s31, 0
      %p52 = por %p50, %p51
      %p53 = scmp.ne.s32.totalorder %s39, %s40
      %p54 = scmp.eq.s32.totalorder %s32, 1
      %p55 = por %p53, %p54
      %p57 = scmp.ne.s32.totalorder %s40, %s56
      %p58 = scmp.eq.s32.totalorder %s32, 0
      %p59 = por %p57, %p58
      %s60 = ssub.s32 %s26, %s33
      %p61 = scmp.eq.s32.totalorder %s60, 0
      %s63 = sadd.s32 %s62, 1
      %s64 = scalar_select %p61, %s62, %s63
      %p67 = pneg %p61
      %p68 = scmp.eq.s32.totalorder %s26, 1
      %p69 = por %p67, %p68
      %p70 = scmp.ne.s32.totalorder %s62, %s65
      %p71 = scmp.eq.s32.totalorder %s26, 0
      %p72 = por %p70, %p71
      %p73 = scmp.ne.s32.totalorder %s62, %s65
      %p74 = scmp.eq.s32.totalorder %s31, 1
      %p75 = por %p73, %p74
      %p76 = scmp.ne.s32.totalorder %s65, %s66
      %p77 = scmp.eq.s32.totalorder %s31, 0
      %p78 = por %p76, %p77
      %p79 = scmp.ne.s32.totalorder %s65, %s66
      %p80 = scmp.eq.s32.totalorder %s32, 1
      %p81 = por %p79, %p80
      %p83 = scmp.ne.s32.totalorder %s66, %s82
      %p84 = scmp.eq.s32.totalorder %s32, 0
      %p85 = por %p83, %p84
      %s86 = ssub.s32 %s26, %s33
      %p87 = scmp.eq.s32.totalorder %s86, 0
      %s89 = sadd.s32 %s88, 1
      %s90 = scalar_select %p87, %s88, %s89
      %p93 = pneg %p87
      %p94 = scmp.eq.s32.totalorder %s26, 1
      %p95 = por %p93, %p94
      %p96 = scmp.ne.s32.totalorder %s88, %s91
      %p97 = scmp.eq.s32.totalorder %s26, 0
      %p98 = por %p96, %p97
      %p99 = scmp.ne.s32.totalorder %s88, %s91
      %p100 = scmp.eq.s32.totalorder %s31, 1
      %p101 = por %p99, %p100
      %p102 = scmp.ne.s32.totalorder %s91, %s92
      %p103 = scmp.eq.s32.totalorder %s31, 0
      %p104 = por %p102, %p103
      %p105 = scmp.ne.s32.totalorder %s91, %s92
      %p106 = scmp.eq.s32.totalorder %s32, 1
      %p107 = por %p105, %p106
      %p109 = scmp.ne.s32.totalorder %s92, %s108
      %p110 = scmp.eq.s32.totalorder %s32, 0
      %p111 = por %p109, %p110
      %s113 = sadd.s32 %s112, 1
      %p116 = scmp.eq.s32.totalorder %s26, 1
      %p117 = scmp.ne.s32.totalorder %s112, %s114
      %p118 = scmp.eq.s32.totalorder %s26, 0
      %p119 = por %p117, %p118
      %p120 = scmp.ne.s32.totalorder %s112, %s114
      %p121 = scmp.eq.s32.totalorder %s31, 1
      %p122 = por %p120, %p121
      %p123 = scmp.ne.s32.totalorder %s114, %s115
      %p124 = scmp.eq.s32.totalorder %s31, 0
      %p125 = por %p123, %p124
      %p126 = scmp.ne.s32.totalorder %s114, %s115
      %p127 = scmp.eq.s32.totalorder %s32, 1
      %p128 = por %p126, %p127
      %p130 = scmp.ne.s32.totalorder %s115, %s129
      %p131 = scmp.eq.s32.totalorder %s32, 0
      %p132 = por %p130, %p131
      %s134 = sadd.s32 %s133, 1
      %p137 = scmp.eq.s32.totalorder %s26, 1
      %p138 = scmp.ne.s32.totalorder %s133, %s135
      %p139 = scmp.eq.s32.totalorder %s26, 0
      %p140 = por %p138, %p139
      %p141 = scmp.ne.s32.totalorder %s133, %s135
      %p142 = scmp.eq.s32.totalorder %s31, 1
      %p143 = por %p141, %p142
      %p144 = scmp.ne.s32.totalorder %s135, %s136
      %p145 = scmp.eq.s32.totalorder %s31, 0
      %p146 = por %p144, %p145
      %p147 = scmp.ne.s32.totalorder %s135, %s136
      %p148 = scmp.eq.s32.totalorder %s32, 1
      %p149 = por %p147, %p148
      %p151 = scmp.ne.s32.totalorder %s136, %s150
      %p152 = scmp.eq.s32.totalorder %s32, 0
      %p153 = por %p151, %p152
      %s155 = sadd.s32 %s154, 1
      %p158 = scmp.eq.s32.totalorder %s26, 1
      %p159 = scmp.ne.s32.totalorder %s154, %s156
      %p160 = scmp.eq.s32.totalorder %s26, 0
      %p161 = por %p159, %p160
      %p162 = scmp.ne.s32.totalorder %s154, %s156
      %p163 = scmp.eq.s32.totalorder %s31, 1
      %p164 = por %p162, %p163
      %p165 = scmp.ne.s32.totalorder %s156, %s157
      %p166 = scmp.eq.s32.totalorder %s31, 0
      %p167 = por %p165, %p166
      %p168 = scmp.ne.s32.totalorder %s156, %s157
      %p169 = scmp.eq.s32.totalorder %s32, 1
      %p170 = por %p168, %p169
      %p172 = scmp.ne.s32.totalorder %s157, %s171
      %p173 = scmp.eq.s32.totalorder %s32, 0
      %p174 = por %p172, %p173
      %s176 = sadd.s32 %s175, 1
      %p179 = scmp.eq.s32.totalorder %s26, 1
      %p180 = scmp.ne.s32.totalorder %s175, %s177
      %p181 = scmp.eq.s32.totalorder %s26, 0
      %p182 = por %p180, %p181
      %p183 = scmp.ne.s32.totalorder %s175, %s177
      %p184 = scmp.eq.s32.totalorder %s31, 1
      %p185 = por %p183, %p184
      %p186 = scmp.ne.s32.totalorder %s177, %s178
      %p187 = scmp.eq.s32.totalorder %s31, 0
      %p188 = por %p186, %p187
      %p189 = scmp.ne.s32.totalorder %s177, %s178
      %p190 = scmp.eq.s32.totalorder %s32, 1
      %p191 = por %p189, %p190
      %p193 = scmp.ne.s32.totalorder %s178, %s192
      %p194 = scmp.eq.s32.totalorder %s32, 0
      %p195 = por %p193, %p194
      %s197 = sadd.s32 %s196, 1
      %p200 = scmp.eq.s32.totalorder %s26, 1
      %p201 = scmp.ne.s32.totalorder %s196, %s198
      %p202 = scmp.eq.s32.totalorder %s26, 0
      %p203 = por %p201, %p202
      %p204 = scmp.ne.s32.totalorder %s196, %s198
      %p205 = scmp.eq.s32.totalorder %s31, 1
      %p206 = por %p204, %p205
      %p207 = scmp.ne.s32.totalorder %s198, %s199
      %p208 = scmp.eq.s32.totalorder %s31, 0
      %p209 = por %p207, %p208
      %p210 = scmp.ne.s32.totalorder %s198, %s199
      %p211 = scmp.eq.s32.totalorder %s32, 1
      %p212 = por %p210, %p211
      %p214 = scmp.ne.s32.totalorder %s199, %s213
      %p215 = scmp.eq.s32.totalorder %s32, 0
      %p216 = por %p214, %p215
      %s218 = sadd.s32 %s217, 1
      %p221 = scmp.eq.s32.totalorder %s26, 1
      %p222 = scmp.ne.s32.totalorder %s217, %s219
      %p223 = scmp.eq.s32.totalorder %s26, 0
      %p224 = por %p222, %p223
      %p225 = scmp.ne.s32.totalorder %s217, %s219
      %p226 = scmp.eq.s32.totalorder %s31, 1
      %p227 = por %p225, %p226
      %p228 = scmp.ne.s32.totalorder %s219, %s220
      %p229 = scmp.eq.s32.totalorder %s31, 0
      %p230 = por %p228, %p229
      %p231 = scmp.ne.s32.totalorder %s219, %s220
      %p232 = scmp.eq.s32.totalorder %s32, 1
      %p233 = por %p231, %p232
      %p235 = scmp.ne.s32.totalorder %s220, %s234
      %p236 = scmp.eq.s32.totalorder %s32, 0
      %p237 = por %p235, %p236
      %s239 = sadd.s32 %s238, 1
      %p242 = scmp.eq.s32.totalorder %s26, 1
      %p243 = scmp.ne.s32.totalorder %s238, %s240
      %p244 = scmp.eq.s32.totalorder %s26, 0
      %p245 = por %p243, %p244
      %p246 = scmp.ne.s32.totalorder %s238, %s240
      %p247 = scmp.eq.s32.totalorder %s31, 1
      %p248 = por %p246, %p247
      %p249 = scmp.ne.s32.totalorder %s240, %s241
      %p250 = scmp.eq.s32.totalorder %s31, 0
      %p251 = por %p249, %p250
      %p252 = scmp.ne.s32.totalorder %s240, %s241
      %p253 = scmp.eq.s32.totalorder %s32, 1
      %p254 = por %p252, %p253
      %p256 = scmp.ne.s32.totalorder %s241, %s255
      %p257 = scmp.eq.s32.totalorder %s32, 0
      %p258 = por %p256, %p257
      %s260 = sadd.s32 %s259, 1
      %p263 = scmp.eq.s32.totalorder %s26, 1
      %p264 = scmp.ne.s32.totalorder %s259, %s261
      %p265 = scmp.eq.s32.totalorder %s26, 0
      %p266 = por %p264, %p265
      %p267 = scmp.ne.s32.totalorder %s259, %s261
      %p268 = scmp.eq.s32.totalorder %s31, 1
      %p269 = por %p267, %p268
      %p270 = scmp.ne.s32.totalorder %s261, %s262
      %p271 = scmp.eq.s32.totalorder %s31, 0
      %p272 = por %p270, %p271
      %p273 = scmp.ne.s32.totalorder %s261, %s262
      %p274 = scmp.eq.s32.totalorder %s32, 1
      %p275 = por %p273, %p274
      %p277 = scmp.ne.s32.totalorder %s262, %s276
      %p278 = scmp.eq.s32.totalorder %s32, 0
      %p279 = por %p277, %p278
      %s281 = sadd.s32 %s280, 1
      %p284 = scmp.eq.s32.totalorder %s26, 1
      %p285 = scmp.ne.s32.totalorder %s280, %s282
      %p286 = scmp.eq.s32.totalorder %s26, 0
      %p287 = por %p285, %p286
      %p288 = scmp.ne.s32.totalorder %s280, %s282
      %p289 = scmp.eq.s32.totalorder %s31, 1
      %p290 = por %p288, %p289
      %p291 = scmp.ne.s32.totalorder %s282, %s283
      %p292 = scmp.eq.s32.totalorder %s31, 0
      %p293 = por %p291, %p292
      %p294 = scmp.ne.s32.totalorder %s282, %s283
      %p295 = scmp.eq.s32.totalorder %s32, 1
      %p296 = por %p294, %p295
      %p298 = scmp.ne.s32.totalorder %s283, %s297
      %p299 = scmp.eq.s32.totalorder %s32, 0
      %p300 = por %p298, %p299
      %s301 = ssub.s32 %s26, %s33
      %p302 = scmp.eq.s32.totalorder %s301, 0
      %s304 = sadd.s32 %s303, 1
      %s305 = scalar_select %p302, %s303, %s304
      %p308 = pneg %p302
      %p309 = scmp.eq.s32.totalorder %s26, 1
      %p310 = por %p308, %p309
      %p311 = scmp.ne.s32.totalorder %s303, %s306
      %p312 = scmp.eq.s32.totalorder %s26, 0
      %p313 = por %p311, %p312
      %p314 = scmp.ne.s32.totalorder %s303, %s306
      %p315 = scmp.eq.s32.totalorder %s31, 1
      %p316 = por %p314, %p315
      %p317 = scmp.ne.s32.totalorder %s306, %s307
      %p318 = scmp.eq.s32.totalorder %s31, 0
      %p319 = por %p317, %p318
      %p320 = scmp.ne.s32.totalorder %s306, %s307
      %p321 = scmp.eq.s32.totalorder %s32, 1
      %p322 = por %p320, %p321
      %p324 = scmp.ne.s32.totalorder %s307, %s323
      %p325 = scmp.eq.s32.totalorder %s32, 0
      %p326 = por %p324, %p325
      %s327 = ssub.s32 %s26, %s33
      %p328 = scmp.eq.s32.totalorder %s327, 0
      %s330 = sadd.s32 %s329, 1
      %s331 = scalar_select %p328, %s329, %s330
      %p334 = pneg %p328
      %p335 = scmp.eq.s32.totalorder %s26, 1
      %p336 = por %p334, %p335
      %p337 = scmp.ne.s32.totalorder %s329, %s332
      %p338 = scmp.eq.s32.totalorder %s26, 0
      %p339 = por %p337, %p338
      %p340 = scmp.ne.s32.totalorder %s329, %s332
      %p341 = scmp.eq.s32.totalorder %s31, 1
      %p342 = por %p340, %p341
      %p343 = scmp.ne.s32.totalorder %s332, %s333
      %p344 = scmp.eq.s32.totalorder %s31, 0
      %p345 = por %p343, %p344
      %p346 = scmp.ne.s32.totalorder %s332, %s333
      %p347 = scmp.eq.s32.totalorder %s32, 1
      %p348 = por %p346, %p347
      %p350 = scmp.ne.s32.totalorder %s333, %s349
      %p351 = scmp.eq.s32.totalorder %s32, 0
      %p352 = por %p350, %p351
      %p353 = scmp.le.s32.totalorder 1, %s26
      %p354 = scmp.lt.s32.totalorder %s26, 3
      %p355 = pnand %p353, %p354
      %p356 = pneg %p355
      // Predicated region
      $region9: #{tpu_custom_call.1} parent=5 // pred_check
        _
      $region10: #{tpu_custom_call.1} parent=5 // pred_check_branch
        %358 = sbr.rel (%p355) target = $region12
      $region11: #{tpu_custom_call.1} parent=5 // pred_region
        %s359 = ssub.s32 %s26, 1
        // Predicated region
        $region13: #{tpu_custom_call.1} parent=11 // pred_check
          %p360 = pneg %p125
        $region14: #{tpu_custom_call.1} parent=11 // pred_check_branch
          %362 = sbr.rel (%p360) target = $region16
        $region15: #{tpu_custom_call.1} parent=11 // pred_region
          _
        $region16: #{tpu_custom_call.1} parent=11 // pred_fallthru
          _
        // Predicated region
        $region17: #{tpu_custom_call.1} parent=11 // pred_check
          %p363 = pneg %p146
        $region18: #{tpu_custom_call.1} parent=11 // pred_check_branch
          %365 = sbr.rel (%p363) target = $region20
        $region19: #{tpu_custom_call.1} parent=11 // pred_region
          _
        $region20: #{tpu_custom_call.1} parent=11 // pred_fallthru
          _
        // Predicated region
        $region21: #{tpu_custom_call.1} parent=11 // pred_check
          %p366 = pneg %p167
        $region22: #{tpu_custom_call.1} parent=11 // pred_check_branch
          %368 = sbr.rel (%p366) target = $region24
        $region23: #{tpu_custom_call.1} parent=11 // pred_region
          _
        $region24: #{tpu_custom_call.1} parent=11 // pred_fallthru
          _
        // Predicated region
        $region25: #{tpu_custom_call.1} parent=11 // pred_check
          %p369 = pneg %p188
        $region26: #{tpu_custom_call.1} parent=11 // pred_check_branch
          %371 = sbr.rel (%p369) target = $region28
        $region27: #{tpu_custom_call.1} parent=11 // pred_region
          _
        $region28: #{tpu_custom_call.1} parent=11 // pred_fallthru
          _
        // Predicated region
        $region29: #{tpu_custom_call.1} parent=11 // pred_check
          %p372 = pneg %p209
        $region30: #{tpu_custom_call.1} parent=11 // pred_check_branch
          %374 = sbr.rel (%p372) target = $region32
        $region31: #{tpu_custom_call.1} parent=11 // pred_region
          _
        $region32: #{tpu_custom_call.1} parent=11 // pred_fallthru
          _
        // Predicated region
        $region33: #{tpu_custom_call.1} parent=11 // pred_check
          %p375 = pneg %p230
        $region34: #{tpu_custom_call.1} parent=11 // pred_check_branch
          %377 = sbr.rel (%p375) target = $region36
        $region35: #{tpu_custom_call.1} parent=11 // pred_region
          _
        $region36: #{tpu_custom_call.1} parent=11 // pred_fallthru
          _
        // Predicated region
        $region37: #{tpu_custom_call.1} parent=11 // pred_check
          %p378 = pneg %p251
        $region38: #{tpu_custom_call.1} parent=11 // pred_check_branch
          %380 = sbr.rel (%p378) target = $region40
        $region39: #{tpu_custom_call.1} parent=11 // pred_region
          _
        $region40: #{tpu_custom_call.1} parent=11 // pred_fallthru
          _
        // Predicated region
        $region41: #{tpu_custom_call.1} parent=11 // pred_check
          %p381 = pneg %p272
        $region42: #{tpu_custom_call.1} parent=11 // pred_check_branch
          %383 = sbr.rel (%p381) target = $region44
        $region43: #{tpu_custom_call.1} parent=11 // pred_region
          _
        $region44: #{tpu_custom_call.1} parent=11 // pred_fallthru
          _
        // Predicated region
        $region45: #{tpu_custom_call.1} parent=11 // pred_check
          %p384 = pneg %p293
        $region46: #{tpu_custom_call.1} parent=11 // pred_check_branch
          %386 = sbr.rel (%p384) target = $region48
        $region47: #{tpu_custom_call.1} parent=11 // pred_region
          _
        $region48: #{tpu_custom_call.1} parent=11 // pred_fallthru
          _
      $region12: #{tpu_custom_call.1} parent=5 // pred_fallthru
        _
      %p387 = scmp.lt.s32.totalorder %s26, 2
      // Predicated region
      $region49: #{tpu_custom_call.1} parent=5 // pred_check
        %p388 = pneg %p387
      $region50: #{tpu_custom_call.1} parent=5 // pred_check_branch
        %390 = sbr.rel (%p388) target = $region52
      $region51: #{tpu_custom_call.1} parent=5 // pred_region
        // Predicated region
        $region53: #{tpu_custom_call.1} parent=51 // pred_check
          %p391 = pneg %p46
        $region54: #{tpu_custom_call.1} parent=51 // pred_check_branch
          %393 = sbr.rel (%p391) target = $region56
        $region55: #{tpu_custom_call.1} parent=51 // pred_region
          %s394 = smul.u32 2, %s26
          %p395 = scmp.lt.s32.totalorder %s394, 3
          %s396 = scalar_select %p395, %s394, 3
          %s397 = smul.addr %s396, 16
          %s398 = smul.addr %s397, 4
          %s399 = scalar_lea.vmem %s0, %s398
          %s400 = smul.u32 2, %s26
        $region56: #{tpu_custom_call.1} parent=51 // pred_fallthru
          _
        // Predicated region
        $region57: #{tpu_custom_call.1} parent=51 // pred_check
          %p401 = pneg %p72
        $region58: #{tpu_custom_call.1} parent=51 // pred_check_branch
          %403 = sbr.rel (%p401) target = $region60
        $region59: #{tpu_custom_call.1} parent=51 // pred_region
          %s404 = smul.u32 2, %s26
          %p405 = scmp.lt.s32.totalorder %s404, 3
          %s406 = scalar_select %p405, %s404, 3
          %s407 = smul.addr %s406, 16
          %s408 = smul.addr %s407, 4
          %s409 = scalar_lea.vmem %s1, %s408
          %s410 = smul.u32 2, %s26
        $region60: #{tpu_custom_call.1} parent=51 // pred_fallthru
          _
        // Predicated region
        $region61: #{tpu_custom_call.1} parent=51 // pred_check
          %p411 = pneg %p98
        $region62: #{tpu_custom_call.1} parent=51 // pred_check_branch
          %413 = sbr.rel (%p411) target = $region64
        $region63: #{tpu_custom_call.1} parent=51 // pred_region
          %s414 = sand.u32 %s88, 1
          %s415 = sand.u32 %s88, 1
          %s416 = smul.addr %s415, 32
          %s417 = scalar_lea.vmem [#allocation2], %s416
          %s418 = smul.u32 2, %s26
          %s419 = smul.addr %s418, 8
          %s420 = scalar_lea.vmem %s2, %s419
          // Predicated region
          $region65: #{tpu_custom_call.1} parent=63 // pred_check
            _
          $region66: #{tpu_custom_call.1} parent=63 // pred_check_branch
            %422 = sbr.rel (0) target = $region68
          $region67: #{tpu_custom_call.1} parent=63 // pred_region
            // Predicated region
            $region69: #{tpu_custom_call.1} parent=67 // pred_check
              _
            $region70: #{tpu_custom_call.1} parent=67 // pred_check_branch
              %424 = sbr.rel (0) target = $region72
            $region71: #{tpu_custom_call.1} parent=67 // pred_region
              // Predicated region
              $region84: #{tpu_custom_call.1} parent=71 // pred_check
                _
              $region85: #{tpu_custom_call.1} parent=71 // pred_check_branch
                %445 = sbr.rel (0) target = $region87
              $region86: #{tpu_custom_call.1} parent=71 // pred_region
                loop: start=0, step=1, limit=1
                $region88: #{tpu_custom_call.1} parent=86 // loop_pre_header
                  _
                $region89: #{tpu_custom_call.1} parent=86 // loop_header
                  %s447 = sphi 0, %s451
                  %p448 = scmp.ge.s32.totalorder %s447, 1
                  %s452 = sphi %s420, %s420
                  %s453 = sphi %s417, %s417
                $region90: #{tpu_custom_call.1} parent=86 // loop_header_branch
                  %450 = sbr.rel (%p448) target = $region94
                $region91: #{tpu_custom_call.1} parent=86 // loop_body
                  %v454 = vld [vmem:[%s452] sm:$0xff]
                  %455 = vst [vmem:[%s453] sm:$0xff] %v454
                  %v456 = vld [vmem:[%s452 + $0x8] sm:$0xff]
                  %457 = vst [vmem:[%s453 + $0x8] sm:$0xff] %v456
                  %v458 = vld [vmem:[%s452 + $0x20] sm:$0xff]
                  %459 = vst [vmem:[%s453 + $0x10] sm:$0xff] %v458
                  %v460 = vld [vmem:[%s452 + $0x28] sm:$0xff]
                  %461 = vst [vmem:[%s453 + $0x18] sm:$0xff] %v460
                $region92: #{tpu_custom_call.1} parent=86 // loop_footer
                  %s451 = sadd.s32 1, %s447
                $region93: #{tpu_custom_call.1} parent=86 // loop_footer_branch
                  %446 = sbr.rel target = $region89
                $region94: #{tpu_custom_call.1} parent=86 // loop_exit
                  _
              $region87: #{tpu_custom_call.1} parent=71 // pred_fallthru
                _
              // Predicated region
              $region95: #{tpu_custom_call.1} parent=71 // pred_check
                _
              $region96: #{tpu_custom_call.1} parent=71 // pred_check_branch
                %463 = sbr.rel target = $region98
              $region97: #{tpu_custom_call.1} parent=71 // pred_region
                _
              $region98: #{tpu_custom_call.1} parent=71 // pred_fallthru
                _
            $region72: #{tpu_custom_call.1} parent=67 // pred_fallthru
              _
            // Predicated region
            $region73: #{tpu_custom_call.1} parent=67 // pred_check
              _
            $region74: #{tpu_custom_call.1} parent=67 // pred_check_branch
              %426 = sbr.rel target = $region76
            $region75: #{tpu_custom_call.1} parent=67 // pred_region
              loop: start=0, step=1, limit=1
              $region77: #{tpu_custom_call.1} parent=75 // loop_pre_header
                _
              $region78: #{tpu_custom_call.1} parent=75 // loop_header
                %s429 = sphi 0, %s433
                %p430 = scmp.ge.s32.totalorder %s429, 1
                %s434 = sphi %s420, %s420
                %s435 = sphi %s417, %s417
              $region79: #{tpu_custom_call.1} parent=75 // loop_header_branch
                %432 = sbr.rel (%p430) target = $region83
              $region80: #{tpu_custom_call.1} parent=75 // loop_body
                %v436 = vld [vmem:[%s434] sm:$0xff]
                %437 = vst [vmem:[%s435] sm:$0xff] %v436
                %v438 = vld [vmem:[%s434 + $0x8] sm:$0xff]
                %439 = vst [vmem:[%s435 + $0x8] sm:$0xff] %v438
                %v440 = vld [vmem:[%s434 + $0x20] sm:$0xff]
                %441 = vst [vmem:[%s435 + $0x10] sm:$0xff] %v440
                %v442 = vld [vmem:[%s434 + $0x28] sm:$0xff]
                %443 = vst [vmem:[%s435 + $0x18] sm:$0xff] %v442
              $region81: #{tpu_custom_call.1} parent=75 // loop_footer
                %s433 = sadd.s32 1, %s429
              $region82: #{tpu_custom_call.1} parent=75 // loop_footer_branch
                %428 = sbr.rel target = $region78
              $region83: #{tpu_custom_call.1} parent=75 // loop_exit
                _
            $region76: #{tpu_custom_call.1} parent=67 // pred_fallthru
              _
          $region68: #{tpu_custom_call.1} parent=63 // pred_fallthru
            _
          %464 = vnop
        $region64: #{tpu_custom_call.1} parent=51 // pred_fallthru
          _
      $region52: #{tpu_custom_call.1} parent=5 // pred_fallthru
        _
      %p465 = scmp.le.s32.totalorder 1, %s26
      %p466 = scmp.lt.s32.totalorder %s26, 3
      %p467 = pnand %p465, %p466
      %p468 = pneg %p467
      // Predicated region
      $region99: #{tpu_custom_call.1} parent=5 // pred_check
        _
      $region100: #{tpu_custom_call.1} parent=5 // pred_check_branch
        %470 = sbr.rel (%p467) target = $region102
      $region101: #{tpu_custom_call.1} parent=5 // pred_region
        %s471 = ssub.s32 %s26, 1
        %s472 = sand.u32 %s91, 1
        %s473 = sand.u32 %s91, 1
        %s474 = smul.addr %s473, 32
        %s475 = scalar_lea.vmem [#allocation2], %s474
        // Predicated region
        $region103: #{tpu_custom_call.1} parent=101 // pred_check
          %p476 = pneg %p104
        $region104: #{tpu_custom_call.1} parent=101 // pred_check_branch
          %478 = sbr.rel (%p476) target = $region106
        $region105: #{tpu_custom_call.1} parent=101 // pred_region
          _
        $region106: #{tpu_custom_call.1} parent=101 // pred_fallthru
          _
        %s479 = smul.u32 2, %s31
        %p480 = scmp.lt.s32.totalorder %s479, 3
        %s481 = scalar_select %p480, %s479, 3
        %s482 = smul.addr %s481, 16
        %s483 = smul.addr %s482, 4
        %s484 = scalar_lea.vmem %s0, %s483
        %p485 = pneg %p52
        %p486 = pneg %p49
        %s487 = smul.u32 2, %s31
        %p488 = scmp.lt.s32.totalorder %s487, 3
        %s489 = scalar_select %p488, %s487, 3
        %s490 = smul.addr %s489, 16
        %s491 = smul.addr %s490, 4
        %s492 = scalar_lea.vmem %s1, %s491
        %p493 = pneg %p78
        %p494 = pneg %p75
        %s495 = sand.u32 %s91, 1
        %s496 = sand.u32 %s91, 1
        %s497 = smul.addr %s496, 32
        %s498 = scalar_lea.vmem [#allocation2], %s497
        %p499 = pneg %p104
        %p500 = pneg %p101
        %p501 = pneg %p125
        %p502 = pneg %p122
        %p503 = pneg %p146
        %p504 = pneg %p143
        %p505 = pneg %p167
        %p506 = pneg %p164
        %p507 = pneg %p188
        %p508 = pneg %p185
        %p509 = pneg %p209
        %p510 = pneg %p206
        %p511 = pneg %p230
        %p512 = pneg %p227
        %p513 = pneg %p251
        %p514 = pneg %p248
        %p515 = pneg %p272
        %p516 = pneg %p269
        %p517 = pneg %p293
        %p518 = pneg %p290
        %p519 = pneg %p319
        %p520 = pneg %p316
        %s521 = sand.u32 %s306, 1
        %s522 = scalar_lea.sflag [#allocation4], %s521
        %s523 = sand.u32 %s306, 1
        %s524 = smul.addr %s523, 16
        %s525 = scalar_lea.vmem [#allocation3], %s524
        %p526 = pneg %p345
        %p527 = pneg %p342
        %s528 = sand.u32 %s332, 1
        %s529 = scalar_lea.sflag [#allocation6], %s528
        %s530 = sand.u32 %s332, 1
        %s531 = smul.addr %s530, 32
        %s532 = scalar_lea.vmem [#allocation5], %s531
        %s533 = smul.u32 2, %s31
        %p534 = scmp.lt.s32.totalorder %s533, 3
        %s535 = scalar_select %p534, %s533, 3
        %s536 = smul.addr %s535, 16
        %s537 = smul.addr %s536, 4
        %s538 = scalar_lea.vmem %s0, %s537
        %s539 = smul.u32 2, %s31
        %s540 = smul.u32 2, %s31
        %p541 = scmp.lt.s32.totalorder %s540, 3
        %s542 = scalar_select %p541, %s540, 3
        %s543 = smul.addr %s542, 16
        %s544 = smul.addr %s543, 4
        %s545 = scalar_lea.vmem %s1, %s544
        %s546 = smul.u32 2, %s31
        %s547 = smul.u32 2, %s31
        %s548 = smul.u32 2, %s31
        %s549 = smul.u32 2, %s31
        %v551 = vld [vmem:[%s9] sm:$0x7f]
        %v552 = vld [vmem:[%s9 + $0x8] sm:$0x7f]
        %v553 = vld [vmem:[%s9 + $0x10] sm:$0x7f]
        %v554 = vld [vmem:[%s538] sm:$0xff]
        %v555 = vld [vmem:[%s538 + $0x8] sm:$0xff]
        %v556 = vld [vmem:[%s538 + $0x10] sm:$0xff]
        %v557 = vld [vmem:[%s538 + $0x18] sm:$0xff]
        %v558 = vld [vmem:[%s538 + $0x20] sm:$0xff]
        %v559 = vld [vmem:[%s538 + $0x28] sm:$0xff]
        %v560 = vld [vmem:[%s538 + $0x30] sm:$0xff]
        %v561 = vld [vmem:[%s538 + $0x38] sm:$0xff]
        %v562 = vld [vmem:[%s538 + $0x40] sm:$0xff]
        %v563 = vld [vmem:[%s538 + $0x48] sm:$0xff]
        %v564 = vld [vmem:[%s538 + $0x50] sm:$0xff]
        %v565 = vld [vmem:[%s538 + $0x58] sm:$0xff]
        %v566 = vld [vmem:[%s538 + $0x60] sm:$0xff]
        %v567 = vld [vmem:[%s538 + $0x68] sm:$0xff]
        %v568 = vld [vmem:[%s538 + $0x70] sm:$0xff]
        %v569 = vld [vmem:[%s538 + $0x78] sm:$0xff]
        %v570 = vld [vmem:[%s3] sm:$0xf]
        %v571 = vld [vmem:[%s3 + $0x4] sm:$0xf]
        %v572 = vld [vmem:[%s3 + $0x8] sm:$0xf]
        %v573 = vld [vmem:[%s3 + $0xc] sm:$0xf]
        %v574 = vld [vmem:[%s3 + $0x10] sm:$0xf]
        %v575 = vld [vmem:[%s3 + $0x14] sm:$0xf]
        %v576 = vld [vmem:[%s3 + $0x18] sm:$0xf]
        %v577 = vld [vmem:[%s3 + $0x1c] sm:$0xf]
        %v578 = vld [vmem:[%s3 + $0x20] sm:$0xf]
        %v579 = vld [vmem:[%s3 + $0x24] sm:$0xf]
        %v580 = vld [vmem:[%s3 + $0x28] sm:$0xf]
        %v581 = vld [vmem:[%s3 + $0x2c] sm:$0xf]
        %v582 = vld [vmem:[%s3 + $0x30] sm:$0xf]
        %v583 = vld [vmem:[%s3 + $0x34] sm:$0xf]
        %v584 = vld [vmem:[%s3 + $0x38] sm:$0xf]
        %v585 = vld [vmem:[%s3 + $0x3c] sm:$0xf]
        %v586 = vld [vmem:[%s3 + $0x40] sm:$0xf]
        %v587 = vld [vmem:[%s3 + $0x44] sm:$0xf]
        %v588 = vld [vmem:[%s3 + $0x48] sm:$0xf]
        %v589 = vld [vmem:[%s3 + $0x4c] sm:$0xf]
        %v590 = vld [vmem:[%s3 + $0x50] sm:$0xf]
        %v591 = vld [vmem:[%s3 + $0x54] sm:$0xf]
        %v592 = vld [vmem:[%s3 + $0x58] sm:$0xf]
        %v593 = vld [vmem:[%s3 + $0x5c] sm:$0xf]
        %v594 = vld [vmem:[%s3 + $0x60] sm:$0xf]
        %v595 = vld [vmem:[%s3 + $0x64] sm:$0xf]
        %v596 = vld [vmem:[%s3 + $0x68] sm:$0xf]
        %v597 = vld [vmem:[%s3 + $0x6c] sm:$0xf]
        %v598 = vld [vmem:[%s3 + $0x70] sm:$0xf]
        %v599 = vld [vmem:[%s3 + $0x74] sm:$0xf]
        %v600 = vld [vmem:[%s3 + $0x78] sm:$0xf]
        %v601 = vld [vmem:[%s3 + $0x7c] sm:$0xf]
        %v602 = vld [vmem:[%s3 + $0x80] sm:$0xf]
        %v603 = vld [vmem:[%s3 + $0x84] sm:$0xf]
        %v604 = vld [vmem:[%s3 + $0x88] sm:$0xf]
        %v605 = vld [vmem:[%s3 + $0x8c] sm:$0xf]
        %v606 = vld [vmem:[%s3 + $0x90] sm:$0xf]
        %v607 = vld [vmem:[%s3 + $0x94] sm:$0xf]
        %v608 = vld [vmem:[%s3 + $0x98] sm:$0xf]
        %v609 = vld [vmem:[%s3 + $0x9c] sm:$0xf]
        %v610 = vld [vmem:[%s3 + $0xa0] sm:$0xf]
        %v611 = vld [vmem:[%s3 + $0xa4] sm:$0xf]
        %v612 = vld [vmem:[%s3 + $0xa8] sm:$0xf]
        %v613 = vld [vmem:[%s3 + $0xac] sm:$0xf]
        %v614 = vld [vmem:[%s3 + $0xb0] sm:$0xf]
        %v615 = vld [vmem:[%s3 + $0xb4] sm:$0xf]
        %v616 = vld [vmem:[%s3 + $0xb8] sm:$0xf]
        %v617 = vld [vmem:[%s3 + $0xbc] sm:$0xf]
        %v618 = vld [vmem:[%s3 + $0xc0] sm:$0xf]
        %v619 = vld [vmem:[%s3 + $0xc4] sm:$0xf]
        %v620 = vld [vmem:[%s3 + $0xc8] sm:$0xf]
        %v621 = vld [vmem:[%s3 + $0xcc] sm:$0xf]
        %v622 = vld [vmem:[%s3 + $0xd0] sm:$0xf]
        %v623 = vld [vmem:[%s3 + $0xd4] sm:$0xf]
        %v624 = vld [vmem:[%s3 + $0xd8] sm:$0xf]
        %v625 = vld [vmem:[%s3 + $0xdc] sm:$0xf]
        %v626 = vld [vmem:[%s3 + $0xe0] sm:$0xf]
        %v627 = vld [vmem:[%s3 + $0xe4] sm:$0xf]
        %v628 = vld [vmem:[%s3 + $0xe8] sm:$0xf]
        %v629 = vld [vmem:[%s3 + $0xec] sm:$0xf]
        %v630 = vld [vmem:[%s3 + $0xf0] sm:$0xf]
        %v631 = vld [vmem:[%s3 + $0xf4] sm:$0xf]
        %v632 = vld [vmem:[%s3 + $0xf8] sm:$0xf]
        %v633 = vld [vmem:[%s3 + $0xfc] sm:$0xf]
        %v634 = vld [vmem:[%s3 + $0x100] sm:$0xf]
        %v635 = vld [vmem:[%s3 + $0x104] sm:$0xf]
        %v636 = vld [vmem:[%s3 + $0x108] sm:$0xf]
        %v637 = vld [vmem:[%s3 + $0x10c] sm:$0xf]
        %v638 = vld [vmem:[%s3 + $0x110] sm:$0xf]
        %v639 = vld [vmem:[%s3 + $0x114] sm:$0xf]
        %v640 = vld [vmem:[%s3 + $0x118] sm:$0xf]
        %v641 = vld [vmem:[%s3 + $0x11c] sm:$0xf]
        %v642 = vld [vmem:[%s3 + $0x120] sm:$0xf]
        %v643 = vld [vmem:[%s3 + $0x124] sm:$0xf]
        %v644 = vld [vmem:[%s3 + $0x128] sm:$0xf]
        %v645 = vld [vmem:[%s3 + $0x12c] sm:$0xf]
        %v646 = vld [vmem:[%s3 + $0x130] sm:$0xf]
        %v647 = vld [vmem:[%s3 + $0x134] sm:$0xf]
        %v648 = vld [vmem:[%s3 + $0x138] sm:$0xf]
        %v649 = vld [vmem:[%s3 + $0x13c] sm:$0xf]
        %v650 = vld [vmem:[%s3 + $0x140] sm:$0xf]
        %v651 = vld [vmem:[%s3 + $0x144] sm:$0xf]
        %v652 = vld [vmem:[%s3 + $0x148] sm:$0xf]
        %v653 = vld [vmem:[%s3 + $0x14c] sm:$0xf]
        %v654 = vld [vmem:[%s3 + $0x150] sm:$0xf]
        %v655 = vld [vmem:[%s3 + $0x154] sm:$0xf]
        %v656 = vld [vmem:[%s3 + $0x158] sm:$0xf]
        %v657 = vld [vmem:[%s3 + $0x15c] sm:$0xf]
        %v658 = vld [vmem:[%s3 + $0x160] sm:$0xf]
        %v659 = vld [vmem:[%s3 + $0x164] sm:$0xf]
        %v660 = vld [vmem:[%s3 + $0x168] sm:$0xf]
        %v661 = vld [vmem:[%s3 + $0x16c] sm:$0xf]
        %v662 = vld [vmem:[%s3 + $0x170] sm:$0xf]
        %v663 = vld [vmem:[%s3 + $0x174] sm:$0xf]
        %v664 = vld [vmem:[%s3 + $0x178] sm:$0xf]
        %v665 = vld [vmem:[%s3 + $0x17c] sm:$0xf]
        %v666 = vld [vmem:[%s3 + $0x180] sm:$0xf]
        %v667 = vld [vmem:[%s3 + $0x184] sm:$0xf]
        %v668 = vld [vmem:[%s3 + $0x188] sm:$0xf]
        %v669 = vld [vmem:[%s3 + $0x18c] sm:$0xf]
        %v670 = vld [vmem:[%s3 + $0x190] sm:$0xf]
        %v671 = vld [vmem:[%s3 + $0x194] sm:$0xf]
        %v672 = vld [vmem:[%s3 + $0x198] sm:$0xf]
        %v673 = vld [vmem:[%s3 + $0x19c] sm:$0xf]
        %v674 = vld [vmem:[%s3 + $0x1a0] sm:$0xf]
        %v675 = vld [vmem:[%s3 + $0x1a4] sm:$0xf]
        %v676 = vld [vmem:[%s3 + $0x1a8] sm:$0xf]
        %v677 = vld [vmem:[%s3 + $0x1ac] sm:$0xf]
        %v678 = vld [vmem:[%s3 + $0x1b0] sm:$0xf]
        %v679 = vld [vmem:[%s3 + $0x1b4] sm:$0xf]
        %v680 = vld [vmem:[%s3 + $0x1b8] sm:$0xf]
        %v681 = vld [vmem:[%s3 + $0x1bc] sm:$0xf]
        %v682 = vld [vmem:[%s3 + $0x1c0] sm:$0xf]
        %v683 = vld [vmem:[%s3 + $0x1c4] sm:$0xf]
        %v684 = vld [vmem:[%s3 + $0x1c8] sm:$0xf]
        %v685 = vld [vmem:[%s3 + $0x1cc] sm:$0xf]
        %v686 = vld [vmem:[%s3 + $0x1d0] sm:$0xf]
        %v687 = vld [vmem:[%s3 + $0x1d4] sm:$0xf]
        %v688 = vld [vmem:[%s3 + $0x1d8] sm:$0xf]
        %v689 = vld [vmem:[%s3 + $0x1dc] sm:$0xf]
        %v690 = vld [vmem:[%s3 + $0x1e0] sm:$0xf]
        %v691 = vld [vmem:[%s3 + $0x1e4] sm:$0xf]
        %v692 = vld [vmem:[%s3 + $0x1e8] sm:$0xf]
        %v693 = vld [vmem:[%s3 + $0x1ec] sm:$0xf]
        %v694 = vld [vmem:[%s3 + $0x1f0] sm:$0xf]
        %v695 = vld [vmem:[%s3 + $0x1f4] sm:$0xf]
        %v696 = vld [vmem:[%s3 + $0x1f8] sm:$0xf]
        %v697 = vld [vmem:[%s3 + $0x1fc] sm:$0xf]
        %v698 = vld [vmem:[%s3 + $0x200] sm:$0xf]
        %v699 = vld [vmem:[%s3 + $0x204] sm:$0xf]
        %v700 = vld [vmem:[%s3 + $0x208] sm:$0xf]
        %v701 = vld [vmem:[%s3 + $0x20c] sm:$0xf]
        %v702 = vld [vmem:[%s3 + $0x210] sm:$0xf]
        %v703 = vld [vmem:[%s3 + $0x214] sm:$0xf]
        %v704 = vld [vmem:[%s3 + $0x218] sm:$0xf]
        %v705 = vld [vmem:[%s3 + $0x21c] sm:$0xf]
        %v706 = vld [vmem:[%s3 + $0x220] sm:$0xf]
        %v707 = vld [vmem:[%s3 + $0x224] sm:$0xf]
        %v708 = vld [vmem:[%s3 + $0x228] sm:$0xf]
        %v709 = vld [vmem:[%s3 + $0x22c] sm:$0xf]
        %v710 = vld [vmem:[%s3 + $0x230] sm:$0xf]
        %v711 = vld [vmem:[%s3 + $0x234] sm:$0xf]
        %v712 = vld [vmem:[%s3 + $0x238] sm:$0xf]
        %v713 = vld [vmem:[%s3 + $0x23c] sm:$0xf]
        %v714 = vld [vmem:[%s3 + $0x240] sm:$0xf]
        %v715 = vld [vmem:[%s3 + $0x244] sm:$0xf]
        %v716 = vld [vmem:[%s3 + $0x248] sm:$0xf]
        %v717 = vld [vmem:[%s3 + $0x24c] sm:$0xf]
        %v718 = vld [vmem:[%s3 + $0x250] sm:$0xf]
        %v719 = vld [vmem:[%s3 + $0x254] sm:$0xf]
        %v720 = vld [vmem:[%s3 + $0x258] sm:$0xf]
        %v721 = vld [vmem:[%s3 + $0x25c] sm:$0xf]
        %v722 = vld [vmem:[%s3 + $0x260] sm:$0xf]
        %v723 = vld [vmem:[%s3 + $0x264] sm:$0xf]
        %v724 = vld [vmem:[%s3 + $0x268] sm:$0xf]
        %v725 = vld [vmem:[%s3 + $0x26c] sm:$0xf]
        %v726 = vld [vmem:[%s3 + $0x270] sm:$0xf]
        %v727 = vld [vmem:[%s3 + $0x274] sm:$0xf]
        %v728 = vld [vmem:[%s3 + $0x278] sm:$0xf]
        %v729 = vld [vmem:[%s3 + $0x27c] sm:$0xf]
        %v730 = vld [vmem:[%s3 + $0x280] sm:$0xf]
        %v731 = vld [vmem:[%s3 + $0x284] sm:$0xf]
        %v732 = vld [vmem:[%s3 + $0x288] sm:$0xf]
        %v733 = vld [vmem:[%s3 + $0x28c] sm:$0xf]
        %v734 = vld [vmem:[%s3 + $0x290] sm:$0xf]
        %v735 = vld [vmem:[%s3 + $0x294] sm:$0xf]
        %v736 = vld [vmem:[%s3 + $0x298] sm:$0xf]
        %v737 = vld [vmem:[%s3 + $0x29c] sm:$0xf]
        %v738 = vld [vmem:[%s3 + $0x2a0] sm:$0xf]
        %v739 = vld [vmem:[%s3 + $0x2a4] sm:$0xf]
        %v740 = vld [vmem:[%s3 + $0x2a8] sm:$0xf]
        %v741 = vld [vmem:[%s3 + $0x2ac] sm:$0xf]
        %v742 = vld [vmem:[%s3 + $0x2b0] sm:$0xf]
        %v743 = vld [vmem:[%s3 + $0x2b4] sm:$0xf]
        %v744 = vld [vmem:[%s3 + $0x2b8] sm:$0xf]
        %v745 = vld [vmem:[%s3 + $0x2bc] sm:$0xf]
        %v746 = vld [vmem:[%s3 + $0x2c0] sm:$0xf]
        %v747 = vld [vmem:[%s3 + $0x2c4] sm:$0xf]
        %v748 = vld [vmem:[%s3 + $0x2c8] sm:$0xf]
        %v749 = vld [vmem:[%s3 + $0x2cc] sm:$0xf]
        %v750 = vld [vmem:[%s3 + $0x2d0] sm:$0xf]
        %v751 = vld [vmem:[%s3 + $0x2d4] sm:$0xf]
        %v752 = vld [vmem:[%s3 + $0x2d8] sm:$0xf]
        %v753 = vld [vmem:[%s3 + $0x2dc] sm:$0xf]
        %v754 = vld [vmem:[%s3 + $0x2e0] sm:$0xf]
        %v755 = vld [vmem:[%s3 + $0x2e4] sm:$0xf]
        %v756 = vld [vmem:[%s3 + $0x2e8] sm:$0xf]
        %v757 = vld [vmem:[%s3 + $0x2ec] sm:$0xf]
        %v758 = vld [vmem:[%s3 + $0x2f0] sm:$0xf]
        %v759 = vld [vmem:[%s3 + $0x2f4] sm:$0xf]
        %v760 = vld [vmem:[%s3 + $0x2f8] sm:$0xf]
        %v761 = vld [vmem:[%s3 + $0x2fc] sm:$0xf]
        %v762 = vld [vmem:[%s3 + $0x300] sm:$0xf]
        %v763 = vld [vmem:[%s3 + $0x304] sm:$0xf]
        %v764 = vld [vmem:[%s3 + $0x308] sm:$0xf]
        %v765 = vld [vmem:[%s3 + $0x30c] sm:$0xf]
        %v766 = vld [vmem:[%s3 + $0x310] sm:$0xf]
        %v767 = vld [vmem:[%s3 + $0x314] sm:$0xf]
        %v768 = vld [vmem:[%s3 + $0x318] sm:$0xf]
        %v769 = vld [vmem:[%s3 + $0x31c] sm:$0xf]
        %v770 = vld [vmem:[%s3 + $0x320] sm:$0xf]
        %v771 = vld [vmem:[%s3 + $0x324] sm:$0xf]
        %v772 = vld [vmem:[%s3 + $0x328] sm:$0xf]
        %v773 = vld [vmem:[%s3 + $0x32c] sm:$0xf]
        %v774 = vld [vmem:[%s3 + $0x330] sm:$0xf]
        %v775 = vld [vmem:[%s3 + $0x334] sm:$0xf]
        %v776 = vld [vmem:[%s3 + $0x338] sm:$0xf]
        %v777 = vld [vmem:[%s3 + $0x33c] sm:$0xf]
        %v778 = vld [vmem:[%s3 + $0x340] sm:$0xf]
        %v779 = vld [vmem:[%s3 + $0x344] sm:$0xf]
        %v780 = vld [vmem:[%s3 + $0x348] sm:$0xf]
        %v781 = vld [vmem:[%s3 + $0x34c] sm:$0xf]
        %v782 = vld [vmem:[%s3 + $0x350] sm:$0xf]
        %v783 = vld [vmem:[%s3 + $0x354] sm:$0xf]
        %v784 = vld [vmem:[%s3 + $0x358] sm:$0xf]
        %v785 = vld [vmem:[%s3 + $0x35c] sm:$0xf]
        %v786 = vld [vmem:[%s3 + $0x360] sm:$0xf]
        %v787 = vld [vmem:[%s3 + $0x364] sm:$0xf]
        %v788 = vld [vmem:[%s3 + $0x368] sm:$0xf]
        %v789 = vld [vmem:[%s3 + $0x36c] sm:$0xf]
        %v790 = vld [vmem:[%s3 + $0x370] sm:$0xf]
        %v791 = vld [vmem:[%s3 + $0x374] sm:$0xf]
        %v792 = vld [vmem:[%s3 + $0x378] sm:$0xf]
        %v793 = vld [vmem:[%s3 + $0x37c] sm:$0xf]
        %v794 = vld [vmem:[%s3 + $0x380] sm:$0xf]
        %v795 = vld [vmem:[%s3 + $0x384] sm:$0xf]
        %v796 = vld [vmem:[%s3 + $0x388] sm:$0xf]
        %v797 = vld [vmem:[%s3 + $0x38c] sm:$0xf]
        %v798 = vld [vmem:[%s3 + $0x390] sm:$0xf]
        %v799 = vld [vmem:[%s3 + $0x394] sm:$0xf]
        %v800 = vld [vmem:[%s3 + $0x398] sm:$0xf]
        %v801 = vld [vmem:[%s3 + $0x39c] sm:$0xf]
        %v802 = vld [vmem:[%s3 + $0x3a0] sm:$0xf]
        %v803 = vld [vmem:[%s3 + $0x3a4] sm:$0xf]
        %v804 = vld [vmem:[%s3 + $0x3a8] sm:$0xf]
        %v805 = vld [vmem:[%s3 + $0x3ac] sm:$0xf]
        %v806 = vld [vmem:[%s3 + $0x3b0] sm:$0xf]
        %v807 = vld [vmem:[%s3 + $0x3b4] sm:$0xf]
        %v808 = vld [vmem:[%s3 + $0x3b8] sm:$0xf]
        %v809 = vld [vmem:[%s3 + $0x3bc] sm:$0xf]
        %v810 = vld [vmem:[%s3 + $0x3c0] sm:$0xf]
        %v811 = vld [vmem:[%s3 + $0x3c4] sm:$0xf]
        %v812 = vld [vmem:[%s3 + $0x3c8] sm:$0xf]
        %v813 = vld [vmem:[%s3 + $0x3cc] sm:$0xf]
        %v814 = vld [vmem:[%s3 + $0x3d0] sm:$0xf]
        %v815 = vld [vmem:[%s3 + $0x3d4] sm:$0xf]
        %v816 = vld [vmem:[%s3 + $0x3d8] sm:$0xf]
        %v817 = vld [vmem:[%s3 + $0x3dc] sm:$0xf]
        %v818 = vld [vmem:[%s3 + $0x3e0] sm:$0xf]
        %v819 = vld [vmem:[%s3 + $0x3e4] sm:$0xf]
        %v820 = vld [vmem:[%s3 + $0x3e8] sm:$0xf]
        %v821 = vld [vmem:[%s3 + $0x3ec] sm:$0xf]
        %v822 = vld [vmem:[%s3 + $0x3f0] sm:$0xf]
        %v823 = vld [vmem:[%s3 + $0x3f4] sm:$0xf]
        %v824 = vld [vmem:[%s3 + $0x3f8] sm:$0xf]
        %v825 = vld [vmem:[%s3 + $0x3fc] sm:$0xf]
        %v826 = vld [vmem:[%s545] sm:$0xff]
        %v827 = vld [vmem:[%s545 + $0x8] sm:$0xff]
        %v828 = vld [vmem:[%s545 + $0x10] sm:$0xff]
        %v829 = vld [vmem:[%s545 + $0x18] sm:$0xff]
        %v830 = vld [vmem:[%s545 + $0x20] sm:$0xff]
        %v831 = vld [vmem:[%s545 + $0x28] sm:$0xff]
        %v832 = vld [vmem:[%s545 + $0x30] sm:$0xff]
        %v833 = vld [vmem:[%s545 + $0x38] sm:$0xff]
        %v834 = vld [vmem:[%s545 + $0x40] sm:$0xff]
        %v835 = vld [vmem:[%s545 + $0x48] sm:$0xff]
        %v836 = vld [vmem:[%s545 + $0x50] sm:$0xff]
        %v837 = vld [vmem:[%s545 + $0x58] sm:$0xff]
        %v838 = vld [vmem:[%s545 + $0x60] sm:$0xff]
        %v839 = vld [vmem:[%s545 + $0x68] sm:$0xff]
        %v840 = vld [vmem:[%s545 + $0x70] sm:$0xff]
        %v841 = vld [vmem:[%s545 + $0x78] sm:$0xff]
        %v842 = vld [vmem:[%s4] sm:$0xf]
        %v843 = vld [vmem:[%s4 + $0x4] sm:$0xf]
        %v844 = vld [vmem:[%s4 + $0x8] sm:$0xf]
        %v845 = vld [vmem:[%s4 + $0xc] sm:$0xf]
        %v846 = vld [vmem:[%s4 + $0x10] sm:$0xf]
        %v847 = vld [vmem:[%s4 + $0x14] sm:$0xf]
        %v848 = vld [vmem:[%s4 + $0x18] sm:$0xf]
        %v849 = vld [vmem:[%s4 + $0x1c] sm:$0xf]
        %v850 = vld [vmem:[%s4 + $0x20] sm:$0xf]
        %v851 = vld [vmem:[%s4 + $0x24] sm:$0xf]
        %v852 = vld [vmem:[%s4 + $0x28] sm:$0xf]
        %v853 = vld [vmem:[%s4 + $0x2c] sm:$0xf]
        %v854 = vld [vmem:[%s4 + $0x30] sm:$0xf]
        %v855 = vld [vmem:[%s4 + $0x34] sm:$0xf]
        %v856 = vld [vmem:[%s4 + $0x38] sm:$0xf]
        %v857 = vld [vmem:[%s4 + $0x3c] sm:$0xf]
        %v858 = vld [vmem:[%s4 + $0x40] sm:$0xf]
        %v859 = vld [vmem:[%s4 + $0x44] sm:$0xf]
        %v860 = vld [vmem:[%s4 + $0x48] sm:$0xf]
        %v861 = vld [vmem:[%s4 + $0x4c] sm:$0xf]
        %v862 = vld [vmem:[%s4 + $0x50] sm:$0xf]
        %v863 = vld [vmem:[%s4 + $0x54] sm:$0xf]
        %v864 = vld [vmem:[%s4 + $0x58] sm:$0xf]
        %v865 = vld [vmem:[%s4 + $0x5c] sm:$0xf]
        %v866 = vld [vmem:[%s4 + $0x60] sm:$0xf]
        %v867 = vld [vmem:[%s4 + $0x64] sm:$0xf]
        %v868 = vld [vmem:[%s4 + $0x68] sm:$0xf]
        %v869 = vld [vmem:[%s4 + $0x6c] sm:$0xf]
        %v870 = vld [vmem:[%s4 + $0x70] sm:$0xf]
        %v871 = vld [vmem:[%s4 + $0x74] sm:$0xf]
        %v872 = vld [vmem:[%s4 + $0x78] sm:$0xf]
        %v873 = vld [vmem:[%s4 + $0x7c] sm:$0xf]
        %v874 = vld [vmem:[%s4 + $0x80] sm:$0xf]
        %v875 = vld [vmem:[%s4 + $0x84] sm:$0xf]
        %v876 = vld [vmem:[%s4 + $0x88] sm:$0xf]
        %v877 = vld [vmem:[%s4 + $0x8c] sm:$0xf]
        %v878 = vld [vmem:[%s4 + $0x90] sm:$0xf]
        %v879 = vld [vmem:[%s4 + $0x94] sm:$0xf]
        %v880 = vld [vmem:[%s4 + $0x98] sm:$0xf]
        %v881 = vld [vmem:[%s4 + $0x9c] sm:$0xf]
        %v882 = vld [vmem:[%s4 + $0xa0] sm:$0xf]
        %v883 = vld [vmem:[%s4 + $0xa4] sm:$0xf]
        %v884 = vld [vmem:[%s4 + $0xa8] sm:$0xf]
        %v885 = vld [vmem:[%s4 + $0xac] sm:$0xf]
        %v886 = vld [vmem:[%s4 + $0xb0] sm:$0xf]
        %v887 = vld [vmem:[%s4 + $0xb4] sm:$0xf]
        %v888 = vld [vmem:[%s4 + $0xb8] sm:$0xf]
        %v889 = vld [vmem:[%s4 + $0xbc] sm:$0xf]
        %v890 = vld [vmem:[%s4 + $0xc0] sm:$0xf]
        %v891 = vld [vmem:[%s4 + $0xc4] sm:$0xf]
        %v892 = vld [vmem:[%s4 + $0xc8] sm:$0xf]
        %v893 = vld [vmem:[%s4 + $0xcc] sm:$0xf]
        %v894 = vld [vmem:[%s4 + $0xd0] sm:$0xf]
        %v895 = vld [vmem:[%s4 + $0xd4] sm:$0xf]
        %v896 = vld [vmem:[%s4 + $0xd8] sm:$0xf]
        %v897 = vld [vmem:[%s4 + $0xdc] sm:$0xf]
        %v898 = vld [vmem:[%s4 + $0xe0] sm:$0xf]
        %v899 = vld [vmem:[%s4 + $0xe4] sm:$0xf]
        %v900 = vld [vmem:[%s4 + $0xe8] sm:$0xf]
        %v901 = vld [vmem:[%s4 + $0xec] sm:$0xf]
        %v902 = vld [vmem:[%s4 + $0xf0] sm:$0xf]
        %v903 = vld [vmem:[%s4 + $0xf4] sm:$0xf]
        %v904 = vld [vmem:[%s4 + $0xf8] sm:$0xf]
        %v905 = vld [vmem:[%s4 + $0xfc] sm:$0xf]
        %v906 = vld [vmem:[%s4 + $0x100] sm:$0xf]
        %v907 = vld [vmem:[%s4 + $0x104] sm:$0xf]
        %v908 = vld [vmem:[%s4 + $0x108] sm:$0xf]
        %v909 = vld [vmem:[%s4 + $0x10c] sm:$0xf]
        %v910 = vld [vmem:[%s4 + $0x110] sm:$0xf]
        %v911 = vld [vmem:[%s4 + $0x114] sm:$0xf]
        %v912 = vld [vmem:[%s4 + $0x118] sm:$0xf]
        %v913 = vld [vmem:[%s4 + $0x11c] sm:$0xf]
        %v914 = vld [vmem:[%s4 + $0x120] sm:$0xf]
        %v915 = vld [vmem:[%s4 + $0x124] sm:$0xf]
        %v916 = vld [vmem:[%s4 + $0x128] sm:$0xf]
        %v917 = vld [vmem:[%s4 + $0x12c] sm:$0xf]
        %v918 = vld [vmem:[%s4 + $0x130] sm:$0xf]
        %v919 = vld [vmem:[%s4 + $0x134] sm:$0xf]
        %v920 = vld [vmem:[%s4 + $0x138] sm:$0xf]
        %v921 = vld [vmem:[%s4 + $0x13c] sm:$0xf]
        %v922 = vld [vmem:[%s4 + $0x140] sm:$0xf]
        %v923 = vld [vmem:[%s4 + $0x144] sm:$0xf]
        %v924 = vld [vmem:[%s4 + $0x148] sm:$0xf]
        %v925 = vld [vmem:[%s4 + $0x14c] sm:$0xf]
        %v926 = vld [vmem:[%s4 + $0x150] sm:$0xf]
        %v927 = vld [vmem:[%s4 + $0x154] sm:$0xf]
        %v928 = vld [vmem:[%s4 + $0x158] sm:$0xf]
        %v929 = vld [vmem:[%s4 + $0x15c] sm:$0xf]
        %v930 = vld [vmem:[%s4 + $0x160] sm:$0xf]
        %v931 = vld [vmem:[%s4 + $0x164] sm:$0xf]
        %v932 = vld [vmem:[%s4 + $0x168] sm:$0xf]
        %v933 = vld [vmem:[%s4 + $0x16c] sm:$0xf]
        %v934 = vld [vmem:[%s4 + $0x170] sm:$0xf]
        %v935 = vld [vmem:[%s4 + $0x174] sm:$0xf]
        %v936 = vld [vmem:[%s4 + $0x178] sm:$0xf]
        %v937 = vld [vmem:[%s4 + $0x17c] sm:$0xf]
        %v938 = vld [vmem:[%s4 + $0x180] sm:$0xf]
        %v939 = vld [vmem:[%s4 + $0x184] sm:$0xf]
        %v940 = vld [vmem:[%s4 + $0x188] sm:$0xf]
        %v941 = vld [vmem:[%s4 + $0x18c] sm:$0xf]
        %v942 = vld [vmem:[%s4 + $0x190] sm:$0xf]
        %v943 = vld [vmem:[%s4 + $0x194] sm:$0xf]
        %v944 = vld [vmem:[%s4 + $0x198] sm:$0xf]
        %v945 = vld [vmem:[%s4 + $0x19c] sm:$0xf]
        %v946 = vld [vmem:[%s4 + $0x1a0] sm:$0xf]
        %v947 = vld [vmem:[%s4 + $0x1a4] sm:$0xf]
        %v948 = vld [vmem:[%s4 + $0x1a8] sm:$0xf]
        %v949 = vld [vmem:[%s4 + $0x1ac] sm:$0xf]
        %v950 = vld [vmem:[%s4 + $0x1b0] sm:$0xf]
        %v951 = vld [vmem:[%s4 + $0x1b4] sm:$0xf]
        %v952 = vld [vmem:[%s4 + $0x1b8] sm:$0xf]
        %v953 = vld [vmem:[%s4 + $0x1bc] sm:$0xf]
        %v954 = vld [vmem:[%s4 + $0x1c0] sm:$0xf]
        %v955 = vld [vmem:[%s4 + $0x1c4] sm:$0xf]
        %v956 = vld [vmem:[%s4 + $0x1c8] sm:$0xf]
        %v957 = vld [vmem:[%s4 + $0x1cc] sm:$0xf]
        %v958 = vld [vmem:[%s4 + $0x1d0] sm:$0xf]
        %v959 = vld [vmem:[%s4 + $0x1d4] sm:$0xf]
        %v960 = vld [vmem:[%s4 + $0x1d8] sm:$0xf]
        %v961 = vld [vmem:[%s4 + $0x1dc] sm:$0xf]
        %v962 = vld [vmem:[%s4 + $0x1e0] sm:$0xf]
        %v963 = vld [vmem:[%s4 + $0x1e4] sm:$0xf]
        %v964 = vld [vmem:[%s4 + $0x1e8] sm:$0xf]
        %v965 = vld [vmem:[%s4 + $0x1ec] sm:$0xf]
        %v966 = vld [vmem:[%s4 + $0x1f0] sm:$0xf]
        %v967 = vld [vmem:[%s4 + $0x1f4] sm:$0xf]
        %v968 = vld [vmem:[%s4 + $0x1f8] sm:$0xf]
        %v969 = vld [vmem:[%s4 + $0x1fc] sm:$0xf]
        %v970 = vld [vmem:[%s4 + $0x200] sm:$0xf]
        %v971 = vld [vmem:[%s4 + $0x204] sm:$0xf]
        %v972 = vld [vmem:[%s4 + $0x208] sm:$0xf]
        %v973 = vld [vmem:[%s4 + $0x20c] sm:$0xf]
        %v974 = vld [vmem:[%s4 + $0x210] sm:$0xf]
        %v975 = vld [vmem:[%s4 + $0x214] sm:$0xf]
        %v976 = vld [vmem:[%s4 + $0x218] sm:$0xf]
        %v977 = vld [vmem:[%s4 + $0x21c] sm:$0xf]
        %v978 = vld [vmem:[%s4 + $0x220] sm:$0xf]
        %v979 = vld [vmem:[%s4 + $0x224] sm:$0xf]
        %v980 = vld [vmem:[%s4 + $0x228] sm:$0xf]
        %v981 = vld [vmem:[%s4 + $0x22c] sm:$0xf]
        %v982 = vld [vmem:[%s4 + $0x230] sm:$0xf]
        %v983 = vld [vmem:[%s4 + $0x234] sm:$0xf]
        %v984 = vld [vmem:[%s4 + $0x238] sm:$0xf]
        %v985 = vld [vmem:[%s4 + $0x23c] sm:$0xf]
        %v986 = vld [vmem:[%s4 + $0x240] sm:$0xf]
        %v987 = vld [vmem:[%s4 + $0x244] sm:$0xf]
        %v988 = vld [vmem:[%s4 + $0x248] sm:$0xf]
        %v989 = vld [vmem:[%s4 + $0x24c] sm:$0xf]
        %v990 = vld [vmem:[%s4 + $0x250] sm:$0xf]
        %v991 = vld [vmem:[%s4 + $0x254] sm:$0xf]
        %v992 = vld [vmem:[%s4 + $0x258] sm:$0xf]
        %v993 = vld [vmem:[%s4 + $0x25c] sm:$0xf]
        %v994 = vld [vmem:[%s4 + $0x260] sm:$0xf]
        %v995 = vld [vmem:[%s4 + $0x264] sm:$0xf]
        %v996 = vld [vmem:[%s4 + $0x268] sm:$0xf]
        %v997 = vld [vmem:[%s4 + $0x26c] sm:$0xf]
        %v998 = vld [vmem:[%s4 + $0x270] sm:$0xf]
        %v999 = vld [vmem:[%s4 + $0x274] sm:$0xf]
        %v1000 = vld [vmem:[%s4 + $0x278] sm:$0xf]
        %v1001 = vld [vmem:[%s4 + $0x27c] sm:$0xf]
        %v1002 = vld [vmem:[%s4 + $0x280] sm:$0xf]
        %v1003 = vld [vmem:[%s4 + $0x284] sm:$0xf]
        %v1004 = vld [vmem:[%s4 + $0x288] sm:$0xf]
        %v1005 = vld [vmem:[%s4 + $0x28c] sm:$0xf]
        %v1006 = vld [vmem:[%s4 + $0x290] sm:$0xf]
        %v1007 = vld [vmem:[%s4 + $0x294] sm:$0xf]
        %v1008 = vld [vmem:[%s4 + $0x298] sm:$0xf]
        %v1009 = vld [vmem:[%s4 + $0x29c] sm:$0xf]
        %v1010 = vld [vmem:[%s4 + $0x2a0] sm:$0xf]
        %v1011 = vld [vmem:[%s4 + $0x2a4] sm:$0xf]
        %v1012 = vld [vmem:[%s4 + $0x2a8] sm:$0xf]
        %v1013 = vld [vmem:[%s4 + $0x2ac] sm:$0xf]
        %v1014 = vld [vmem:[%s4 + $0x2b0] sm:$0xf]
        %v1015 = vld [vmem:[%s4 + $0x2b4] sm:$0xf]
        %v1016 = vld [vmem:[%s4 + $0x2b8] sm:$0xf]
        %v1017 = vld [vmem:[%s4 + $0x2bc] sm:$0xf]
        %v1018 = vld [vmem:[%s4 + $0x2c0] sm:$0xf]
        %v1019 = vld [vmem:[%s4 + $0x2c4] sm:$0xf]
        %v1020 = vld [vmem:[%s4 + $0x2c8] sm:$0xf]
        %v1021 = vld [vmem:[%s4 + $0x2cc] sm:$0xf]
        %v1022 = vld [vmem:[%s4 + $0x2d0] sm:$0xf]
        %v1023 = vld [vmem:[%s4 + $0x2d4] sm:$0xf]
        %v1024 = vld [vmem:[%s4 + $0x2d8] sm:$0xf]
        %v1025 = vld [vmem:[%s4 + $0x2dc] sm:$0xf]
        %v1026 = vld [vmem:[%s4 + $0x2e0] sm:$0xf]
        %v1027 = vld [vmem:[%s4 + $0x2e4] sm:$0xf]
        %v1028 = vld [vmem:[%s4 + $0x2e8] sm:$0xf]
        %v1029 = vld [vmem:[%s4 + $0x2ec] sm:$0xf]
        %v1030 = vld [vmem:[%s4 + $0x2f0] sm:$0xf]
        %v1031 = vld [vmem:[%s4 + $0x2f4] sm:$0xf]
        %v1032 = vld [vmem:[%s4 + $0x2f8] sm:$0xf]
        %v1033 = vld [vmem:[%s4 + $0x2fc] sm:$0xf]
        %v1034 = vld [vmem:[%s4 + $0x300] sm:$0xf]
        %v1035 = vld [vmem:[%s4 + $0x304] sm:$0xf]
        %v1036 = vld [vmem:[%s4 + $0x308] sm:$0xf]
        %v1037 = vld [vmem:[%s4 + $0x30c] sm:$0xf]
        %v1038 = vld [vmem:[%s4 + $0x310] sm:$0xf]
        %v1039 = vld [vmem:[%s4 + $0x314] sm:$0xf]
        %v1040 = vld [vmem:[%s4 + $0x318] sm:$0xf]
        %v1041 = vld [vmem:[%s4 + $0x31c] sm:$0xf]
        %v1042 = vld [vmem:[%s4 + $0x320] sm:$0xf]
        %v1043 = vld [vmem:[%s4 + $0x324] sm:$0xf]
        %v1044 = vld [vmem:[%s4 + $0x328] sm:$0xf]
        %v1045 = vld [vmem:[%s4 + $0x32c] sm:$0xf]
        %v1046 = vld [vmem:[%s4 + $0x330] sm:$0xf]
        %v1047 = vld [vmem:[%s4 + $0x334] sm:$0xf]
        %v1048 = vld [vmem:[%s4 + $0x338] sm:$0xf]
        %v1049 = vld [vmem:[%s4 + $0x33c] sm:$0xf]
        %v1050 = vld [vmem:[%s4 + $0x340] sm:$0xf]
        %v1051 = vld [vmem:[%s4 + $0x344] sm:$0xf]
        %v1052 = vld [vmem:[%s4 + $0x348] sm:$0xf]
        %v1053 = vld [vmem:[%s4 + $0x34c] sm:$0xf]
        %v1054 = vld [vmem:[%s4 + $0x350] sm:$0xf]
        %v1055 = vld [vmem:[%s4 + $0x354] sm:$0xf]
        %v1056 = vld [vmem:[%s4 + $0x358] sm:$0xf]
        %v1057 = vld [vmem:[%s4 + $0x35c] sm:$0xf]
        %v1058 = vld [vmem:[%s4 + $0x360] sm:$0xf]
        %v1059 = vld [vmem:[%s4 + $0x364] sm:$0xf]
        %v1060 = vld [vmem:[%s4 + $0x368] sm:$0xf]
        %v1061 = vld [vmem:[%s4 + $0x36c] sm:$0xf]
        %v1062 = vld [vmem:[%s4 + $0x370] sm:$0xf]
        %v1063 = vld [vmem:[%s4 + $0x374] sm:$0xf]
        %v1064 = vld [vmem:[%s4 + $0x378] sm:$0xf]
        %v1065 = vld [vmem:[%s4 + $0x37c] sm:$0xf]
        %v1066 = vld [vmem:[%s4 + $0x380] sm:$0xf]
        %v1067 = vld [vmem:[%s4 + $0x384] sm:$0xf]
        %v1068 = vld [vmem:[%s4 + $0x388] sm:$0xf]
        %v1069 = vld [vmem:[%s4 + $0x38c] sm:$0xf]
        %v1070 = vld [vmem:[%s4 + $0x390] sm:$0xf]
        %v1071 = vld [vmem:[%s4 + $0x394] sm:$0xf]
        %v1072 = vld [vmem:[%s4 + $0x398] sm:$0xf]
        %v1073 = vld [vmem:[%s4 + $0x39c] sm:$0xf]
        %v1074 = vld [vmem:[%s4 + $0x3a0] sm:$0xf]
        %v1075 = vld [vmem:[%s4 + $0x3a4] sm:$0xf]
        %v1076 = vld [vmem:[%s4 + $0x3a8] sm:$0xf]
        %v1077 = vld [vmem:[%s4 + $0x3ac] sm:$0xf]
        %v1078 = vld [vmem:[%s4 + $0x3b0] sm:$0xf]
        %v1079 = vld [vmem:[%s4 + $0x3b4] sm:$0xf]
        %v1080 = vld [vmem:[%s4 + $0x3b8] sm:$0xf]
        %v1081 = vld [vmem:[%s4 + $0x3bc] sm:$0xf]
        %v1082 = vld [vmem:[%s4 + $0x3c0] sm:$0xf]
        %v1083 = vld [vmem:[%s4 + $0x3c4] sm:$0xf]
        %v1084 = vld [vmem:[%s4 + $0x3c8] sm:$0xf]
        %v1085 = vld [vmem:[%s4 + $0x3cc] sm:$0xf]
        %v1086 = vld [vmem:[%s4 + $0x3d0] sm:$0xf]
        %v1087 = vld [vmem:[%s4 + $0x3d4] sm:$0xf]
        %v1088 = vld [vmem:[%s4 + $0x3d8] sm:$0xf]
        %v1089 = vld [vmem:[%s4 + $0x3dc] sm:$0xf]
        %v1090 = vld [vmem:[%s4 + $0x3e0] sm:$0xf]
        %v1091 = vld [vmem:[%s4 + $0x3e4] sm:$0xf]
        %v1092 = vld [vmem:[%s4 + $0x3e8] sm:$0xf]
        %v1093 = vld [vmem:[%s4 + $0x3ec] sm:$0xf]
        %v1094 = vld [vmem:[%s4 + $0x3f0] sm:$0xf]
        %v1095 = vld [vmem:[%s4 + $0x3f4] sm:$0xf]
        %v1096 = vld [vmem:[%s4 + $0x3f8] sm:$0xf]
        %v1097 = vld [vmem:[%s4 + $0x3fc] sm:$0xf]
        %v1114 = vunpack.c.l.b16 %v826
        %v1115 = vunpack.c.h.b16 %v826
        %v1116 = vunpack.c.l.b16 %v827
        %v1117 = vunpack.c.h.b16 %v827
        %v1118 = vunpack.c.l.b16 %v828
        %v1119 = vunpack.c.h.b16 %v828
        %v1120 = vunpack.c.l.b16 %v829
        %v1121 = vunpack.c.h.b16 %v829
        %v1122 = vunpack.c.l.b16 %v830
        %v1123 = vunpack.c.h.b16 %v830
        %v1124 = vunpack.c.l.b16 %v831
        %v1125 = vunpack.c.h.b16 %v831
        %v1126 = vunpack.c.l.b16 %v832
        %v1127 = vunpack.c.h.b16 %v832
        %v1128 = vunpack.c.l.b16 %v833
        %v1129 = vunpack.c.h.b16 %v833
        %v1130 = vunpack.c.l.b16 %v834
        %v1131 = vunpack.c.h.b16 %v834
        %v1132 = vunpack.c.l.b16 %v835
        %v1133 = vunpack.c.h.b16 %v835
        %v1134 = vunpack.c.l.b16 %v836
        %v1135 = vunpack.c.h.b16 %v836
        %v1136 = vunpack.c.l.b16 %v837
        %v1137 = vunpack.c.h.b16 %v837
        %v1138 = vunpack.c.l.b16 %v838
        %v1139 = vunpack.c.h.b16 %v838
        %v1140 = vunpack.c.l.b16 %v839
        %v1141 = vunpack.c.h.b16 %v839
        %v1142 = vunpack.c.l.b16 %v840
        %v1143 = vunpack.c.h.b16 %v840
        %v1144 = vunpack.c.l.b16 %v841
        %v1145 = vunpack.c.h.b16 %v841
        %v1146 = vpack.c.b16 %v1130, %v1114
        %v1147 = vpack.c.b16 %v1131, %v1115
        %v1148 = vpack.c.b16 %v1132, %v1116
        %v1149 = vpack.c.b16 %v1133, %v1117
        %v1150 = vpack.c.b16 %v1134, %v1118
        %v1151 = vpack.c.b16 %v1135, %v1119
        %v1152 = vpack.c.b16 %v1136, %v1120
        %v1153 = vpack.c.b16 %v1137, %v1121
        %v1154 = vpack.c.b16 %v1138, %v1122
        %v1155 = vpack.c.b16 %v1139, %v1123
        %v1156 = vpack.c.b16 %v1140, %v1124
        %v1157 = vpack.c.b16 %v1141, %v1125
        %v1158 = vpack.c.b16 %v1142, %v1126
        %v1159 = vpack.c.b16 %v1143, %v1127
        %v1160 = vpack.c.b16 %v1144, %v1128
        %v1161 = vpack.c.b16 %v1145, %v1129
        %v1434 = vunpack.c.l.b16 %v842
        %v1435 = vunpack.c.l.b16 %v843
        %v1436 = vunpack.c.l.b16 %v844
        %v1437 = vunpack.c.l.b16 %v845
        %v1438 = vunpack.c.l.b16 %v846
        %v1439 = vunpack.c.l.b16 %v847
        %v1440 = vunpack.c.l.b16 %v848
        %v1441 = vunpack.c.l.b16 %v849
        %v1442 = vunpack.c.l.b16 %v850
        %v1443 = vunpack.c.l.b16 %v851
        %v1444 = vunpack.c.l.b16 %v852
        %v1445 = vunpack.c.l.b16 %v853
        %v1446 = vunpack.c.l.b16 %v854
        %v1447 = vunpack.c.l.b16 %v855
        %v1448 = vunpack.c.l.b16 %v856
        %v1449 = vunpack.c.l.b16 %v857
        %v1450 = vunpack.c.l.b16 %v858
        %v1451 = vunpack.c.l.b16 %v859
        %v1452 = vunpack.c.l.b16 %v860
        %v1453 = vunpack.c.l.b16 %v861
        %v1454 = vunpack.c.l.b16 %v862
        %v1455 = vunpack.c.l.b16 %v863
        %v1456 = vunpack.c.l.b16 %v864
        %v1457 = vunpack.c.l.b16 %v865
        %v1458 = vunpack.c.l.b16 %v866
        %v1459 = vunpack.c.l.b16 %v867
        %v1460 = vunpack.c.l.b16 %v868
        %v1461 = vunpack.c.l.b16 %v869
        %v1462 = vunpack.c.l.b16 %v870
        %v1463 = vunpack.c.l.b16 %v871
        %v1464 = vunpack.c.l.b16 %v872
        %v1465 = vunpack.c.l.b16 %v873
        %v1466 = vunpack.c.l.b16 %v874
        %v1467 = vunpack.c.l.b16 %v875
        %v1468 = vunpack.c.l.b16 %v876
        %v1469 = vunpack.c.l.b16 %v877
        %v1470 = vunpack.c.l.b16 %v878
        %v1471 = vunpack.c.l.b16 %v879
        %v1472 = vunpack.c.l.b16 %v880
        %v1473 = vunpack.c.l.b16 %v881
        %v1474 = vunpack.c.l.b16 %v882
        %v1475 = vunpack.c.l.b16 %v883
        %v1476 = vunpack.c.l.b16 %v884
        %v1477 = vunpack.c.l.b16 %v885
        %v1478 = vunpack.c.l.b16 %v886
        %v1479 = vunpack.c.l.b16 %v887
        %v1480 = vunpack.c.l.b16 %v888
        %v1481 = vunpack.c.l.b16 %v889
        %v1482 = vunpack.c.l.b16 %v890
        %v1483 = vunpack.c.l.b16 %v891
        %v1484 = vunpack.c.l.b16 %v892
        %v1485 = vunpack.c.l.b16 %v893
        %v1486 = vunpack.c.l.b16 %v894
        %v1487 = vunpack.c.l.b16 %v895
        %v1488 = vunpack.c.l.b16 %v896
        %v1489 = vunpack.c.l.b16 %v897
        %v1490 = vunpack.c.l.b16 %v898
        %v1491 = vunpack.c.l.b16 %v899
        %v1492 = vunpack.c.l.b16 %v900
        %v1493 = vunpack.c.l.b16 %v901
        %v1494 = vunpack.c.l.b16 %v902
        %v1495 = vunpack.c.l.b16 %v903
        %v1496 = vunpack.c.l.b16 %v904
        %v1497 = vunpack.c.l.b16 %v905
        %v1498 = vunpack.c.l.b16 %v906
        %v1499 = vunpack.c.l.b16 %v907
        %v1500 = vunpack.c.l.b16 %v908
        %v1501 = vunpack.c.l.b16 %v909
        %v1502 = vunpack.c.l.b16 %v910
        %v1503 = vunpack.c.l.b16 %v911
        %v1504 = vunpack.c.l.b16 %v912
        %v1505 = vunpack.c.l.b16 %v913
        %v1506 = vunpack.c.l.b16 %v914
        %v1507 = vunpack.c.l.b16 %v915
        %v1508 = vunpack.c.l.b16 %v916
        %v1509 = vunpack.c.l.b16 %v917
        %v1510 = vunpack.c.l.b16 %v918
        %v1511 = vunpack.c.l.b16 %v919
        %v1512 = vunpack.c.l.b16 %v920
        %v1513 = vunpack.c.l.b16 %v921
        %v1514 = vunpack.c.l.b16 %v922
        %v1515 = vunpack.c.l.b16 %v923
        %v1516 = vunpack.c.l.b16 %v924
        %v1517 = vunpack.c.l.b16 %v925
        %v1518 = vunpack.c.l.b16 %v926
        %v1519 = vunpack.c.l.b16 %v927
        %v1520 = vunpack.c.l.b16 %v928
        %v1521 = vunpack.c.l.b16 %v929
        %v1522 = vunpack.c.l.b16 %v930
        %v1523 = vunpack.c.l.b16 %v931
        %v1524 = vunpack.c.l.b16 %v932
        %v1525 = vunpack.c.l.b16 %v933
        %v1526 = vunpack.c.l.b16 %v934
        %v1527 = vunpack.c.l.b16 %v935
        %v1528 = vunpack.c.l.b16 %v936
        %v1529 = vunpack.c.l.b16 %v937
        %v1530 = vunpack.c.l.b16 %v938
        %v1531 = vunpack.c.l.b16 %v939
        %v1532 = vunpack.c.l.b16 %v940
        %v1533 = vunpack.c.l.b16 %v941
        %v1534 = vunpack.c.l.b16 %v942
        %v1535 = vunpack.c.l.b16 %v943
        %v1536 = vunpack.c.l.b16 %v944
        %v1537 = vunpack.c.l.b16 %v945
        %v1538 = vunpack.c.l.b16 %v946
        %v1539 = vunpack.c.l.b16 %v947
        %v1540 = vunpack.c.l.b16 %v948
        %v1541 = vunpack.c.l.b16 %v949
        %v1542 = vunpack.c.l.b16 %v950
        %v1543 = vunpack.c.l.b16 %v951
        %v1544 = vunpack.c.l.b16 %v952
        %v1545 = vunpack.c.l.b16 %v953
        %v1546 = vunpack.c.l.b16 %v954
        %v1547 = vunpack.c.l.b16 %v955
        %v1548 = vunpack.c.l.b16 %v956
        %v1549 = vunpack.c.l.b16 %v957
        %v1550 = vunpack.c.l.b16 %v958
        %v1551 = vunpack.c.l.b16 %v959
        %v1552 = vunpack.c.l.b16 %v960
        %v1553 = vunpack.c.l.b16 %v961
        %v1554 = vunpack.c.l.b16 %v962
        %v1555 = vunpack.c.l.b16 %v963
        %v1556 = vunpack.c.l.b16 %v964
        %v1557 = vunpack.c.l.b16 %v965
        %v1558 = vunpack.c.l.b16 %v966
        %v1559 = vunpack.c.l.b16 %v967
        %v1560 = vunpack.c.l.b16 %v968
        %v1561 = vunpack.c.l.b16 %v969
        %v1562 = vunpack.c.l.b16 %v970
        %v1563 = vunpack.c.l.b16 %v971
        %v1564 = vunpack.c.l.b16 %v972
        %v1565 = vunpack.c.l.b16 %v973
        %v1566 = vunpack.c.l.b16 %v974
        %v1567 = vunpack.c.l.b16 %v975
        %v1568 = vunpack.c.l.b16 %v976
        %v1569 = vunpack.c.l.b16 %v977
        %v1570 = vunpack.c.l.b16 %v978
        %v1571 = vunpack.c.l.b16 %v979
        %v1572 = vunpack.c.l.b16 %v980
        %v1573 = vunpack.c.l.b16 %v981
        %v1574 = vunpack.c.l.b16 %v982
        %v1575 = vunpack.c.l.b16 %v983
        %v1576 = vunpack.c.l.b16 %v984
        %v1577 = vunpack.c.l.b16 %v985
        %v1578 = vunpack.c.l.b16 %v986
        %v1579 = vunpack.c.l.b16 %v987
        %v1580 = vunpack.c.l.b16 %v988
        %v1581 = vunpack.c.l.b16 %v989
        %v1582 = vunpack.c.l.b16 %v990
        %v1583 = vunpack.c.l.b16 %v991
        %v1584 = vunpack.c.l.b16 %v992
        %v1585 = vunpack.c.l.b16 %v993
        %v1586 = vunpack.c.l.b16 %v994
        %v1587 = vunpack.c.l.b16 %v995
        %v1588 = vunpack.c.l.b16 %v996
        %v1589 = vunpack.c.l.b16 %v997
        %v1590 = vunpack.c.l.b16 %v998
        %v1591 = vunpack.c.l.b16 %v999
        %v1592 = vunpack.c.l.b16 %v1000
        %v1593 = vunpack.c.l.b16 %v1001
        %v1594 = vunpack.c.l.b16 %v1002
        %v1595 = vunpack.c.l.b16 %v1003
        %v1596 = vunpack.c.l.b16 %v1004
        %v1597 = vunpack.c.l.b16 %v1005
        %v1598 = vunpack.c.l.b16 %v1006
        %v1599 = vunpack.c.l.b16 %v1007
        %v1600 = vunpack.c.l.b16 %v1008
        %v1601 = vunpack.c.l.b16 %v1009
        %v1602 = vunpack.c.l.b16 %v1010
        %v1603 = vunpack.c.l.b16 %v1011
        %v1604 = vunpack.c.l.b16 %v1012
        %v1605 = vunpack.c.l.b16 %v1013
        %v1606 = vunpack.c.l.b16 %v1014
        %v1607 = vunpack.c.l.b16 %v1015
        %v1608 = vunpack.c.l.b16 %v1016
        %v1609 = vunpack.c.l.b16 %v1017
        %v1610 = vunpack.c.l.b16 %v1018
        %v1611 = vunpack.c.l.b16 %v1019
        %v1612 = vunpack.c.l.b16 %v1020
        %v1613 = vunpack.c.l.b16 %v1021
        %v1614 = vunpack.c.l.b16 %v1022
        %v1615 = vunpack.c.l.b16 %v1023
        %v1616 = vunpack.c.l.b16 %v1024
        %v1617 = vunpack.c.l.b16 %v1025
        %v1618 = vunpack.c.l.b16 %v1026
        %v1619 = vunpack.c.l.b16 %v1027
        %v1620 = vunpack.c.l.b16 %v1028
        %v1621 = vunpack.c.l.b16 %v1029
        %v1622 = vunpack.c.l.b16 %v1030
        %v1623 = vunpack.c.l.b16 %v1031
        %v1624 = vunpack.c.l.b16 %v1032
        %v1625 = vunpack.c.l.b16 %v1033
        %v1626 = vunpack.c.l.b16 %v1034
        %v1627 = vunpack.c.l.b16 %v1035
        %v1628 = vunpack.c.l.b16 %v1036
        %v1629 = vunpack.c.l.b16 %v1037
        %v1630 = vunpack.c.l.b16 %v1038
        %v1631 = vunpack.c.l.b16 %v1039
        %v1632 = vunpack.c.l.b16 %v1040
        %v1633 = vunpack.c.l.b16 %v1041
        %v1634 = vunpack.c.l.b16 %v1042
        %v1635 = vunpack.c.l.b16 %v1043
        %v1636 = vunpack.c.l.b16 %v1044
        %v1637 = vunpack.c.l.b16 %v1045
        %v1638 = vunpack.c.l.b16 %v1046
        %v1639 = vunpack.c.l.b16 %v1047
        %v1640 = vunpack.c.l.b16 %v1048
        %v1641 = vunpack.c.l.b16 %v1049
        %v1642 = vunpack.c.l.b16 %v1050
        %v1643 = vunpack.c.l.b16 %v1051
        %v1644 = vunpack.c.l.b16 %v1052
        %v1645 = vunpack.c.l.b16 %v1053
        %v1646 = vunpack.c.l.b16 %v1054
        %v1647 = vunpack.c.l.b16 %v1055
        %v1648 = vunpack.c.l.b16 %v1056
        %v1649 = vunpack.c.l.b16 %v1057
        %v1650 = vunpack.c.l.b16 %v1058
        %v1651 = vunpack.c.l.b16 %v1059
        %v1652 = vunpack.c.l.b16 %v1060
        %v1653 = vunpack.c.l.b16 %v1061
        %v1654 = vunpack.c.l.b16 %v1062
        %v1655 = vunpack.c.l.b16 %v1063
        %v1656 = vunpack.c.l.b16 %v1064
        %v1657 = vunpack.c.l.b16 %v1065
        %v1658 = vunpack.c.l.b16 %v1066
        %v1659 = vunpack.c.l.b16 %v1067
        %v1660 = vunpack.c.l.b16 %v1068
        %v1661 = vunpack.c.l.b16 %v1069
        %v1662 = vunpack.c.l.b16 %v1070
        %v1663 = vunpack.c.l.b16 %v1071
        %v1664 = vunpack.c.l.b16 %v1072
        %v1665 = vunpack.c.l.b16 %v1073
        %v1666 = vunpack.c.l.b16 %v1074
        %v1667 = vunpack.c.l.b16 %v1075
        %v1668 = vunpack.c.l.b16 %v1076
        %v1669 = vunpack.c.l.b16 %v1077
        %v1670 = vunpack.c.l.b16 %v1078
        %v1671 = vunpack.c.l.b16 %v1079
        %v1672 = vunpack.c.l.b16 %v1080
        %v1673 = vunpack.c.l.b16 %v1081
        %v1674 = vunpack.c.l.b16 %v1082
        %v1675 = vunpack.c.l.b16 %v1083
        %v1676 = vunpack.c.l.b16 %v1084
        %v1677 = vunpack.c.l.b16 %v1085
        %v1678 = vunpack.c.l.b16 %v1086
        %v1679 = vunpack.c.l.b16 %v1087
        %v1680 = vunpack.c.l.b16 %v1088
        %v1681 = vunpack.c.l.b16 %v1089
        %v1682 = vunpack.c.l.b16 %v1090
        %v1683 = vunpack.c.l.b16 %v1091
        %v1684 = vunpack.c.l.b16 %v1092
        %v1685 = vunpack.c.l.b16 %v1093
        %v1686 = vunpack.c.l.b16 %v1094
        %v1687 = vunpack.c.l.b16 %v1095
        %v1688 = vunpack.c.l.b16 %v1096
        %v1689 = vunpack.c.l.b16 %v1097
        %v1690 = vpack.c.b16 %v1435, %v1434
        %v1691 = vpack.c.b16 %v1437, %v1436
        %v1692 = vpack.c.b16 %v1439, %v1438
        %v1693 = vpack.c.b16 %v1441, %v1440
        %v1694 = vpack.c.b16 %v1443, %v1442
        %v1695 = vpack.c.b16 %v1445, %v1444
        %v1696 = vpack.c.b16 %v1447, %v1446
        %v1697 = vpack.c.b16 %v1449, %v1448
        %v1698 = vpack.c.b16 %v1451, %v1450
        %v1699 = vpack.c.b16 %v1453, %v1452
        %v1700 = vpack.c.b16 %v1455, %v1454
        %v1701 = vpack.c.b16 %v1457, %v1456
        %v1702 = vpack.c.b16 %v1459, %v1458
        %v1703 = vpack.c.b16 %v1461, %v1460
        %v1704 = vpack.c.b16 %v1463, %v1462
        %v1705 = vpack.c.b16 %v1465, %v1464
        %v1706 = vpack.c.b16 %v1467, %v1466
        %v1707 = vpack.c.b16 %v1469, %v1468
        %v1708 = vpack.c.b16 %v1471, %v1470
        %v1709 = vpack.c.b16 %v1473, %v1472
        %v1710 = vpack.c.b16 %v1475, %v1474
        %v1711 = vpack.c.b16 %v1477, %v1476
        %v1712 = vpack.c.b16 %v1479, %v1478
        %v1713 = vpack.c.b16 %v1481, %v1480
        %v1714 = vpack.c.b16 %v1483, %v1482
        %v1715 = vpack.c.b16 %v1485, %v1484
        %v1716 = vpack.c.b16 %v1487, %v1486
        %v1717 = vpack.c.b16 %v1489, %v1488
        %v1718 = vpack.c.b16 %v1491, %v1490
        %v1719 = vpack.c.b16 %v1493, %v1492
        %v1720 = vpack.c.b16 %v1495, %v1494
        %v1721 = vpack.c.b16 %v1497, %v1496
        %v1722 = vpack.c.b16 %v1499, %v1498
        %v1723 = vpack.c.b16 %v1501, %v1500
        %v1724 = vpack.c.b16 %v1503, %v1502
        %v1725 = vpack.c.b16 %v1505, %v1504
        %v1726 = vpack.c.b16 %v1507, %v1506
        %v1727 = vpack.c.b16 %v1509, %v1508
        %v1728 = vpack.c.b16 %v1511, %v1510
        %v1729 = vpack.c.b16 %v1513, %v1512
        %v1730 = vpack.c.b16 %v1515, %v1514
        %v1731 = vpack.c.b16 %v1517, %v1516
        %v1732 = vpack.c.b16 %v1519, %v1518
        %v1733 = vpack.c.b16 %v1521, %v1520
        %v1734 = vpack.c.b16 %v1523, %v1522
        %v1735 = vpack.c.b16 %v1525, %v1524
        %v1736 = vpack.c.b16 %v1527, %v1526
        %v1737 = vpack.c.b16 %v1529, %v1528
        %v1738 = vpack.c.b16 %v1531, %v1530
        %v1739 = vpack.c.b16 %v1533, %v1532
        %v1740 = vpack.c.b16 %v1535, %v1534
        %v1741 = vpack.c.b16 %v1537, %v1536
        %v1742 = vpack.c.b16 %v1539, %v1538
        %v1743 = vpack.c.b16 %v1541, %v1540
        %v1744 = vpack.c.b16 %v1543, %v1542
        %v1745 = vpack.c.b16 %v1545, %v1544
        %v1746 = vpack.c.b16 %v1547, %v1546
        %v1747 = vpack.c.b16 %v1549, %v1548
        %v1748 = vpack.c.b16 %v1551, %v1550
        %v1749 = vpack.c.b16 %v1553, %v1552
        %v1750 = vpack.c.b16 %v1555, %v1554
        %v1751 = vpack.c.b16 %v1557, %v1556
        %v1752 = vpack.c.b16 %v1559, %v1558
        %v1753 = vpack.c.b16 %v1561, %v1560
        %v1754 = vpack.c.b16 %v1563, %v1562
        %v1755 = vpack.c.b16 %v1565, %v1564
        %v1756 = vpack.c.b16 %v1567, %v1566
        %v1757 = vpack.c.b16 %v1569, %v1568
        %v1758 = vpack.c.b16 %v1571, %v1570
        %v1759 = vpack.c.b16 %v1573, %v1572
        %v1760 = vpack.c.b16 %v1575, %v1574
        %v1761 = vpack.c.b16 %v1577, %v1576
        %v1762 = vpack.c.b16 %v1579, %v1578
        %v1763 = vpack.c.b16 %v1581, %v1580
        %v1764 = vpack.c.b16 %v1583, %v1582
        %v1765 = vpack.c.b16 %v1585, %v1584
        %v1766 = vpack.c.b16 %v1587, %v1586
        %v1767 = vpack.c.b16 %v1589, %v1588
        %v1768 = vpack.c.b16 %v1591, %v1590
        %v1769 = vpack.c.b16 %v1593, %v1592
        %v1770 = vpack.c.b16 %v1595, %v1594
        %v1771 = vpack.c.b16 %v1597, %v1596
        %v1772 = vpack.c.b16 %v1599, %v1598
        %v1773 = vpack.c.b16 %v1601, %v1600
        %v1774 = vpack.c.b16 %v1603, %v1602
        %v1775 = vpack.c.b16 %v1605, %v1604
        %v1776 = vpack.c.b16 %v1607, %v1606
        %v1777 = vpack.c.b16 %v1609, %v1608
        %v1778 = vpack.c.b16 %v1611, %v1610
        %v1779 = vpack.c.b16 %v1613, %v1612
        %v1780 = vpack.c.b16 %v1615, %v1614
        %v1781 = vpack.c.b16 %v1617, %v1616
        %v1782 = vpack.c.b16 %v1619, %v1618
        %v1783 = vpack.c.b16 %v1621, %v1620
        %v1784 = vpack.c.b16 %v1623, %v1622
        %v1785 = vpack.c.b16 %v1625, %v1624
        %v1786 = vpack.c.b16 %v1627, %v1626
        %v1787 = vpack.c.b16 %v1629, %v1628
        %v1788 = vpack.c.b16 %v1631, %v1630
        %v1789 = vpack.c.b16 %v1633, %v1632
        %v1790 = vpack.c.b16 %v1635, %v1634
        %v1791 = vpack.c.b16 %v1637, %v1636
        %v1792 = vpack.c.b16 %v1639, %v1638
        %v1793 = vpack.c.b16 %v1641, %v1640
        %v1794 = vpack.c.b16 %v1643, %v1642
        %v1795 = vpack.c.b16 %v1645, %v1644
        %v1796 = vpack.c.b16 %v1647, %v1646
        %v1797 = vpack.c.b16 %v1649, %v1648
        %v1798 = vpack.c.b16 %v1651, %v1650
        %v1799 = vpack.c.b16 %v1653, %v1652
        %v1800 = vpack.c.b16 %v1655, %v1654
        %v1801 = vpack.c.b16 %v1657, %v1656
        %v1802 = vpack.c.b16 %v1659, %v1658
        %v1803 = vpack.c.b16 %v1661, %v1660
        %v1804 = vpack.c.b16 %v1663, %v1662
        %v1805 = vpack.c.b16 %v1665, %v1664
        %v1806 = vpack.c.b16 %v1667, %v1666
        %v1807 = vpack.c.b16 %v1669, %v1668
        %v1808 = vpack.c.b16 %v1671, %v1670
        %v1809 = vpack.c.b16 %v1673, %v1672
        %v1810 = vpack.c.b16 %v1675, %v1674
        %v1811 = vpack.c.b16 %v1677, %v1676
        %v1812 = vpack.c.b16 %v1679, %v1678
        %v1813 = vpack.c.b16 %v1681, %v1680
        %v1814 = vpack.c.b16 %v1683, %v1682
        %v1815 = vpack.c.b16 %v1685, %v1684
        %v1816 = vpack.c.b16 %v1687, %v1686
        %v1817 = vpack.c.b16 %v1689, %v1688
        %1946 = vmatprep.subr.bf16.mxu0 0
        %1947 = vmatpush1.bf16.msra.mxu0 %v1690
        %1948 = vmatprep.subr.bf16.mxu0 0
        %1949 = vmatpush1.bf16.msra.mxu0 %v1691
        %1950 = vmatprep.subr.bf16.mxu0 0
        %1951 = vmatpush1.bf16.msra.mxu0 %v1692
        %1952 = vmatprep.subr.bf16.mxu0 0
        %1953 = vmatpush1.bf16.msra.mxu0 %v1693
        %1954 = vmatprep.subr.bf16.mxu0 0
        %1955 = vmatpush1.bf16.msra.mxu0 %v1694
        %1956 = vmatprep.subr.bf16.mxu0 0
        %1957 = vmatpush1.bf16.msra.mxu0 %v1695
        %1958 = vmatprep.subr.bf16.mxu0 0
        %1959 = vmatpush1.bf16.msra.mxu0 %v1696
        %1960 = vmatprep.subr.bf16.mxu0 0
        %1961 = vmatpush1.bf16.msra.mxu0 %v1697
        %1962 = vmatprep.subr.bf16.mxu0 0
        %1963 = vmatpush1.bf16.msra.mxu0 %v1698
        %1964 = vmatprep.subr.bf16.mxu0 0
        %1965 = vmatpush1.bf16.msra.mxu0 %v1699
        %1966 = vmatprep.subr.bf16.mxu0 0
        %1967 = vmatpush1.bf16.msra.mxu0 %v1700
        %1968 = vmatprep.subr.bf16.mxu0 0
        %1969 = vmatpush1.bf16.msra.mxu0 %v1701
        %1970 = vmatprep.subr.bf16.mxu0 0
        %1971 = vmatpush1.bf16.msra.mxu0 %v1702
        %1972 = vmatprep.subr.bf16.mxu0 0
        %1973 = vmatpush1.bf16.msra.mxu0 %v1703
        %1974 = vmatprep.subr.bf16.mxu0 0
        %1975 = vmatpush1.bf16.msra.mxu0 %v1704
        %1976 = vmatprep.subr.bf16.mxu0 0
        %1977 = vmatpush1.bf16.msra.mxu0 %v1705
        %1978 = vmatprep.mubr.bf16.mxu0 %v1147
        %1979 = vmatmul.mubr.bf16.gmra.mrb[0].mxu0 %v1146
        %v1980 = vpop.f32.mrb[0].mxu0
        %v1981 = vadd.f32 0.0, %v1980
        %v1982 = vpop.f32.mrb[0].mxu0
        %v1983 = vpop.f32.mrb[0].mxu0
        %v1984 = vadd.f32 0.0, %v1983
        %v1985 = vpop.f32.mrb[0].mxu0
        %1986 = vdwg.mxu0
        %1987 = vmatprep.subr.bf16.mxu0 0
        %1988 = vmatpush1.bf16.msra.mxu0 %v1706
        %1989 = vmatprep.subr.bf16.mxu0 0
        %1990 = vmatpush1.bf16.msra.mxu0 %v1707
        %1991 = vmatprep.subr.bf16.mxu0 0
        %1992 = vmatpush1.bf16.msra.mxu0 %v1708
        %1993 = vmatprep.subr.bf16.mxu0 0
        %1994 = vmatpush1.bf16.msra.mxu0 %v1709
        %1995 = vmatprep.subr.bf16.mxu0 0
        %1996 = vmatpush1.bf16.msra.mxu0 %v1710
        %1997 = vmatprep.subr.bf16.mxu0 0
        %1998 = vmatpush1.bf16.msra.mxu0 %v1711
        %1999 = vmatprep.subr.bf16.mxu0 0
        %2000 = vmatpush1.bf16.msra.mxu0 %v1712
        %2001 = vmatprep.subr.bf16.mxu0 0
        %2002 = vmatpush1.bf16.msra.mxu0 %v1713
        %2003 = vmatprep.subr.bf16.mxu0 0
        %2004 = vmatpush1.bf16.msra.mxu0 %v1714
        %2005 = vmatprep.subr.bf16.mxu0 0
        %2006 = vmatpush1.bf16.msra.mxu0 %v1715
        %2007 = vmatprep.subr.bf16.mxu0 0
        %2008 = vmatpush1.bf16.msra.mxu0 %v1716
        %2009 = vmatprep.subr.bf16.mxu0 0
        %2010 = vmatpush1.bf16.msra.mxu0 %v1717
        %2011 = vmatprep.subr.bf16.mxu0 0
        %2012 = vmatpush1.bf16.msra.mxu0 %v1718
        %2013 = vmatprep.subr.bf16.mxu0 0
        %2014 = vmatpush1.bf16.msra.mxu0 %v1719
        %2015 = vmatprep.subr.bf16.mxu0 0
        %2016 = vmatpush1.bf16.msra.mxu0 %v1720
        %2017 = vmatprep.subr.bf16.mxu0 0
        %2018 = vmatpush1.bf16.msra.mxu0 %v1721
        %2019 = vmatprep.mubr.bf16.mxu0 %v1149
        %2020 = vmatmul.mubr.bf16.gmra.mrb[0].mxu0 %v1148
        %v2021 = vpop.f32.mrb[0].mxu0
        %v2022 = vadd.f32 %v1981, %v2021
        %v2023 = vpop.f32.mrb[0].mxu0
        %v2024 = vpop.f32.mrb[0].mxu0
        %v2025 = vadd.f32 %v1984, %v2024
        %v2026 = vpop.f32.mrb[0].mxu0
        %2027 = vdwg.mxu0
        %2028 = vmatprep.subr.bf16.mxu0 0
        %2029 = vmatpush1.bf16.msra.mxu0 %v1722
        %2030 = vmatprep.subr.bf16.mxu0 0
        %2031 = vmatpush1.bf16.msra.mxu0 %v1723
        %2032 = vmatprep.subr.bf16.mxu0 0
        %2033 = vmatpush1.bf16.msra.mxu0 %v1724
        %2034 = vmatprep.subr.bf16.mxu0 0
        %2035 = vmatpush1.bf16.msra.mxu0 %v1725
        %2036 = vmatprep.subr.bf16.mxu0 0
        %2037 = vmatpush1.bf16.msra.mxu0 %v1726
        %2038 = vmatprep.subr.bf16.mxu0 0
        %2039 = vmatpush1.bf16.msra.mxu0 %v1727
        %2040 = vmatprep.subr.bf16.mxu0 0
        %2041 = vmatpush1.bf16.msra.mxu0 %v1728
        %2042 = vmatprep.subr.bf16.mxu0 0
        %2043 = vmatpush1.bf16.msra.mxu0 %v1729
        %2044 = vmatprep.subr.bf16.mxu0 0
        %2045 = vmatpush1.bf16.msra.mxu0 %v1730
        %2046 = vmatprep.subr.bf16.mxu0 0
        %2047 = vmatpush1.bf16.msra.mxu0 %v1731
        %2048 = vmatprep.subr.bf16.mxu0 0
        %2049 = vmatpush1.bf16.msra.mxu0 %v1732
        %2050 = vmatprep.subr.bf16.mxu0 0
        %2051 = vmatpush1.bf16.msra.mxu0 %v1733
        %2052 = vmatprep.subr.bf16.mxu0 0
        %2053 = vmatpush1.bf16.msra.mxu0 %v1734
        %2054 = vmatprep.subr.bf16.mxu0 0
        %2055 = vmatpush1.bf16.msra.mxu0 %v1735
        %2056 = vmatprep.subr.bf16.mxu0 0
        %2057 = vmatpush1.bf16.msra.mxu0 %v1736
        %2058 = vmatprep.subr.bf16.mxu0 0
        %2059 = vmatpush1.bf16.msra.mxu0 %v1737
        %2060 = vmatprep.mubr.bf16.mxu0 %v1151
        %2061 = vmatmul.mubr.bf16.gmra.mrb[0].mxu0 %v1150
        %v2062 = vpop.f32.mrb[0].mxu0
        %v2063 = vadd.f32 %v2022, %v2062
        %v2064 = vpop.f32.mrb[0].mxu0
        %v2065 = vpop.f32.mrb[0].mxu0
        %v2066 = vadd.f32 %v2025, %v2065
        %v2067 = vpop.f32.mrb[0].mxu0
        %2068 = vdwg.mxu0
        %2069 = vmatprep.subr.bf16.mxu0 0
        %2070 = vmatpush1.bf16.msra.mxu0 %v1738
        %2071 = vmatprep.subr.bf16.mxu0 0
        %2072 = vmatpush1.bf16.msra.mxu0 %v1739
        %2073 = vmatprep.subr.bf16.mxu0 0
        %2074 = vmatpush1.bf16.msra.mxu0 %v1740
        %2075 = vmatprep.subr.bf16.mxu0 0
        %2076 = vmatpush1.bf16.msra.mxu0 %v1741
        %2077 = vmatprep.subr.bf16.mxu0 0
        %2078 = vmatpush1.bf16.msra.mxu0 %v1742
        %2079 = vmatprep.subr.bf16.mxu0 0
        %2080 = vmatpush1.bf16.msra.mxu0 %v1743
        %2081 = vmatprep.subr.bf16.mxu0 0
        %2082 = vmatpush1.bf16.msra.mxu0 %v1744
        %2083 = vmatprep.subr.bf16.mxu0 0
        %2084 = vmatpush1.bf16.msra.mxu0 %v1745
        %2085 = vmatprep.subr.bf16.mxu0 0
        %2086 = vmatpush1.bf16.msra.mxu0 %v1746
        %2087 = vmatprep.subr.bf16.mxu0 0
        %2088 = vmatpush1.bf16.msra.mxu0 %v1747
        %2089 = vmatprep.subr.bf16.mxu0 0
        %2090 = vmatpush1.bf16.msra.mxu0 %v1748
        %2091 = vmatprep.subr.bf16.mxu0 0
        %2092 = vmatpush1.bf16.msra.mxu0 %v1749
        %2093 = vmatprep.subr.bf16.mxu0 0
        %2094 = vmatpush1.bf16.msra.mxu0 %v1750
        %2095 = vmatprep.subr.bf16.mxu0 0
        %2096 = vmatpush1.bf16.msra.mxu0 %v1751
        %2097 = vmatprep.subr.bf16.mxu0 0
        %2098 = vmatpush1.bf16.msra.mxu0 %v1752
        %2099 = vmatprep.subr.bf16.mxu0 0
        %2100 = vmatpush1.bf16.msra.mxu0 %v1753
        %2101 = vmatprep.mubr.bf16.mxu0 %v1153
        %2102 = vmatmul.mubr.bf16.gmra.mrb[0].mxu0 %v1152
        %v2103 = vpop.f32.mrb[0].mxu0
        %v2104 = vadd.f32 %v2063, %v2103
        %v2105 = vpop.f32.mrb[0].mxu0
        %v2106 = vpop.f32.mrb[0].mxu0
        %v2107 = vadd.f32 %v2066, %v2106
        %v2108 = vpop.f32.mrb[0].mxu0
        %2109 = vdwg.mxu0
        %2110 = vmatprep.subr.bf16.mxu0 0
        %2111 = vmatpush1.bf16.msra.mxu0 %v1754
        %2112 = vmatprep.subr.bf16.mxu0 0
        %2113 = vmatpush1.bf16.msra.mxu0 %v1755
        %2114 = vmatprep.subr.bf16.mxu0 0
        %2115 = vmatpush1.bf16.msra.mxu0 %v1756
        %2116 = vmatprep.subr.bf16.mxu0 0
        %2117 = vmatpush1.bf16.msra.mxu0 %v1757
        %2118 = vmatprep.subr.bf16.mxu0 0
        %2119 = vmatpush1.bf16.msra.mxu0 %v1758
        %2120 = vmatprep.subr.bf16.mxu0 0
        %2121 = vmatpush1.bf16.msra.mxu0 %v1759
        %2122 = vmatprep.subr.bf16.mxu0 0
        %2123 = vmatpush1.bf16.msra.mxu0 %v1760
        %2124 = vmatprep.subr.bf16.mxu0 0
        %2125 = vmatpush1.bf16.msra.mxu0 %v1761
        %2126 = vmatprep.subr.bf16.mxu0 0
        %2127 = vmatpush1.bf16.msra.mxu0 %v1762
        %2128 = vmatprep.subr.bf16.mxu0 0
        %2129 = vmatpush1.bf16.msra.mxu0 %v1763
        %2130 = vmatprep.subr.bf16.mxu0 0
        %2131 = vmatpush1.bf16.msra.mxu0 %v1764
        %2132 = vmatprep.subr.bf16.mxu0 0
        %2133 = vmatpush1.bf16.msra.mxu0 %v1765
        %2134 = vmatprep.subr.bf16.mxu0 0
        %2135 = vmatpush1.bf16.msra.mxu0 %v1766
        %2136 = vmatprep.subr.bf16.mxu0 0
        %2137 = vmatpush1.bf16.msra.mxu0 %v1767
        %2138 = vmatprep.subr.bf16.mxu0 0
        %2139 = vmatpush1.bf16.msra.mxu0 %v1768
        %2140 = vmatprep.subr.bf16.mxu0 0
        %2141 = vmatpush1.bf16.msra.mxu0 %v1769
        %2142 = vmatprep.mubr.bf16.mxu0 %v1155
        %2143 = vmatmul.mubr.bf16.gmra.mrb[0].mxu0 %v1154
        %v2144 = vpop.f32.mrb[0].mxu0
        %v2145 = vadd.f32 %v2104, %v2144
        %v2146 = vpop.f32.mrb[0].mxu0
        %v2147 = vpop.f32.mrb[0].mxu0
        %v2148 = vadd.f32 %v2107, %v2147
        %v2149 = vpop.f32.mrb[0].mxu0
        %2150 = vdwg.mxu0
        %2151 = vmatprep.subr.bf16.mxu0 0
        %2152 = vmatpush1.bf16.msra.mxu0 %v1770
        %2153 = vmatprep.subr.bf16.mxu0 0
        %2154 = vmatpush1.bf16.msra.mxu0 %v1771
        %2155 = vmatprep.subr.bf16.mxu0 0
        %2156 = vmatpush1.bf16.msra.mxu0 %v1772
        %2157 = vmatprep.subr.bf16.mxu0 0
        %2158 = vmatpush1.bf16.msra.mxu0 %v1773
        %2159 = vmatprep.subr.bf16.mxu0 0
        %2160 = vmatpush1.bf16.msra.mxu0 %v1774
        %2161 = vmatprep.subr.bf16.mxu0 0
        %2162 = vmatpush1.bf16.msra.mxu0 %v1775
        %2163 = vmatprep.subr.bf16.mxu0 0
        %2164 = vmatpush1.bf16.msra.mxu0 %v1776
        %2165 = vmatprep.subr.bf16.mxu0 0
        %2166 = vmatpush1.bf16.msra.mxu0 %v1777
        %2167 = vmatprep.subr.bf16.mxu0 0
        %2168 = vmatpush1.bf16.msra.mxu0 %v1778
        %2169 = vmatprep.subr.bf16.mxu0 0
        %2170 = vmatpush1.bf16.msra.mxu0 %v1779
        %2171 = vmatprep.subr.bf16.mxu0 0
        %2172 = vmatpush1.bf16.msra.mxu0 %v1780
        %2173 = vmatprep.subr.bf16.mxu0 0
        %2174 = vmatpush1.bf16.msra.mxu0 %v1781
        %2175 = vmatprep.subr.bf16.mxu0 0
        %2176 = vmatpush1.bf16.msra.mxu0 %v1782
        %2177 = vmatprep.subr.bf16.mxu0 0
        %2178 = vmatpush1.bf16.msra.mxu0 %v1783
        %2179 = vmatprep.subr.bf16.mxu0 0
        %2180 = vmatpush1.bf16.msra.mxu0 %v1784
        %2181 = vmatprep.subr.bf16.mxu0 0
        %2182 = vmatpush1.bf16.msra.mxu0 %v1785
        %2183 = vmatprep.mubr.bf16.mxu0 %v1157
        %2184 = vmatmul.mubr.bf16.gmra.mrb[0].mxu0 %v1156
        %v2185 = vpop.f32.mrb[0].mxu0
        %v2186 = vadd.f32 %v2145, %v2185
        %v2187 = vpop.f32.mrb[0].mxu0
        %v2188 = vpop.f32.mrb[0].mxu0
        %v2189 = vadd.f32 %v2148, %v2188
        %v2190 = vpop.f32.mrb[0].mxu0
        %2191 = vdwg.mxu0
        %2192 = vmatprep.subr.bf16.mxu0 0
        %2193 = vmatpush1.bf16.msra.mxu0 %v1786
        %2194 = vmatprep.subr.bf16.mxu0 0
        %2195 = vmatpush1.bf16.msra.mxu0 %v1787
        %2196 = vmatprep.subr.bf16.mxu0 0
        %2197 = vmatpush1.bf16.msra.mxu0 %v1788
        %2198 = vmatprep.subr.bf16.mxu0 0
        %2199 = vmatpush1.bf16.msra.mxu0 %v1789
        %2200 = vmatprep.subr.bf16.mxu0 0
        %2201 = vmatpush1.bf16.msra.mxu0 %v1790
        %2202 = vmatprep.subr.bf16.mxu0 0
        %2203 = vmatpush1.bf16.msra.mxu0 %v1791
        %2204 = vmatprep.subr.bf16.mxu0 0
        %2205 = vmatpush1.bf16.msra.mxu0 %v1792
        %2206 = vmatprep.subr.bf16.mxu0 0
        %2207 = vmatpush1.bf16.msra.mxu0 %v1793
        %2208 = vmatprep.subr.bf16.mxu0 0
        %2209 = vmatpush1.bf16.msra.mxu0 %v1794
        %2210 = vmatprep.subr.bf16.mxu0 0
        %2211 = vmatpush1.bf16.msra.mxu0 %v1795
        %2212 = vmatprep.subr.bf16.mxu0 0
        %2213 = vmatpush1.bf16.msra.mxu0 %v1796
        %2214 = vmatprep.subr.bf16.mxu0 0
        %2215 = vmatpush1.bf16.msra.mxu0 %v1797
        %2216 = vmatprep.subr.bf16.mxu0 0
        %2217 = vmatpush1.bf16.msra.mxu0 %v1798
        %2218 = vmatprep.subr.bf16.mxu0 0
        %2219 = vmatpush1.bf16.msra.mxu0 %v1799
        %2220 = vmatprep.subr.bf16.mxu0 0
        %2221 = vmatpush1.bf16.msra.mxu0 %v1800
        %2222 = vmatprep.subr.bf16.mxu0 0
        %2223 = vmatpush1.bf16.msra.mxu0 %v1801
        %2224 = vmatprep.mubr.bf16.mxu0 %v1159
        %2225 = vmatmul.mubr.bf16.gmra.mrb[0].mxu0 %v1158
        %v2226 = vpop.f32.mrb[0].mxu0
        %v2227 = vadd.f32 %v2186, %v2226
        %v2228 = vpop.f32.mrb[0].mxu0
        %v2229 = vpop.f32.mrb[0].mxu0
        %v2230 = vadd.f32 %v2189, %v2229
        %v2231 = vpop.f32.mrb[0].mxu0
        %2232 = vdwg.mxu0
        %2233 = vmatprep.subr.bf16.mxu0 0
        %2234 = vmatpush1.bf16.msra.mxu0 %v1802
        %2235 = vmatprep.subr.bf16.mxu0 0
        %2236 = vmatpush1.bf16.msra.mxu0 %v1803
        %2237 = vmatprep.subr.bf16.mxu0 0
        %2238 = vmatpush1.bf16.msra.mxu0 %v1804
        %2239 = vmatprep.subr.bf16.mxu0 0
        %2240 = vmatpush1.bf16.msra.mxu0 %v1805
        %2241 = vmatprep.subr.bf16.mxu0 0
        %2242 = vmatpush1.bf16.msra.mxu0 %v1806
        %2243 = vmatprep.subr.bf16.mxu0 0
        %2244 = vmatpush1.bf16.msra.mxu0 %v1807
        %2245 = vmatprep.subr.bf16.mxu0 0
        %2246 = vmatpush1.bf16.msra.mxu0 %v1808
        %2247 = vmatprep.subr.bf16.mxu0 0
        %2248 = vmatpush1.bf16.msra.mxu0 %v1809
        %2249 = vmatprep.subr.bf16.mxu0 0
        %2250 = vmatpush1.bf16.msra.mxu0 %v1810
        %2251 = vmatprep.subr.bf16.mxu0 0
        %2252 = vmatpush1.bf16.msra.mxu0 %v1811
        %2253 = vmatprep.subr.bf16.mxu0 0
        %2254 = vmatpush1.bf16.msra.mxu0 %v1812
        %2255 = vmatprep.subr.bf16.mxu0 0
        %2256 = vmatpush1.bf16.msra.mxu0 %v1813
        %2257 = vmatprep.subr.bf16.mxu0 0
        %2258 = vmatpush1.bf16.msra.mxu0 %v1814
        %2259 = vmatprep.subr.bf16.mxu0 0
        %2260 = vmatpush1.bf16.msra.mxu0 %v1815
        %2261 = vmatprep.subr.bf16.mxu0 0
        %2262 = vmatpush1.bf16.msra.mxu0 %v1816
        %2263 = vmatprep.subr.bf16.mxu0 0
        %2264 = vmatpush1.bf16.msra.mxu0 %v1817
        %2265 = vmatprep.mubr.bf16.mxu0 %v1161
        %2266 = vmatmul.mubr.bf16.gmra.mrb[0].mxu0 %v1160
        %v2267 = vpop.f32.mrb[0].mxu0
        %v2268 = vadd.f32 %v2227, %v2267
        %v2269 = vpop.f32.mrb[0].mxu0
        %v2270 = vpop.f32.mrb[0].mxu0
        %v2271 = vadd.f32 %v2230, %v2270
        %v2272 = vpop.f32.mrb[0].mxu0
        %2273 = vdwg.mxu0
        %v2290 = vunpack.c.l.b16 %v554
        %v2291 = vunpack.c.h.b16 %v554
        %v2292 = vunpack.c.l.b16 %v555
        %v2293 = vunpack.c.h.b16 %v555
        %v2294 = vunpack.c.l.b16 %v556
        %v2295 = vunpack.c.h.b16 %v556
        %v2296 = vunpack.c.l.b16 %v557
        %v2297 = vunpack.c.h.b16 %v557
        %v2298 = vunpack.c.l.b16 %v558
        %v2299 = vunpack.c.h.b16 %v558
        %v2300 = vunpack.c.l.b16 %v559
        %v2301 = vunpack.c.h.b16 %v559
        %v2302 = vunpack.c.l.b16 %v560
        %v2303 = vunpack.c.h.b16 %v560
        %v2304 = vunpack.c.l.b16 %v561
        %v2305 = vunpack.c.h.b16 %v561
        %v2306 = vunpack.c.l.b16 %v562
        %v2307 = vunpack.c.h.b16 %v562
        %v2308 = vunpack.c.l.b16 %v563
        %v2309 = vunpack.c.h.b16 %v563
        %v2310 = vunpack.c.l.b16 %v564
        %v2311 = vunpack.c.h.b16 %v564
        %v2312 = vunpack.c.l.b16 %v565
        %v2313 = vunpack.c.h.b16 %v565
        %v2314 = vunpack.c.l.b16 %v566
        %v2315 = vunpack.c.h.b16 %v566
        %v2316 = vunpack.c.l.b16 %v567
        %v2317 = vunpack.c.h.b16 %v567
        %v2318 = vunpack.c.l.b16 %v568
        %v2319 = vunpack.c.h.b16 %v568
        %v2320 = vunpack.c.l.b16 %v569
        %v2321 = vunpack.c.h.b16 %v569
        %v2322 = vpack.c.b16 %v2306, %v2290
        %v2323 = vpack.c.b16 %v2307, %v2291
        %v2324 = vpack.c.b16 %v2308, %v2292
        %v2325 = vpack.c.b16 %v2309, %v2293
        %v2326 = vpack.c.b16 %v2310, %v2294
        %v2327 = vpack.c.b16 %v2311, %v2295
        %v2328 = vpack.c.b16 %v2312, %v2296
        %v2329 = vpack.c.b16 %v2313, %v2297
        %v2330 = vpack.c.b16 %v2314, %v2298
        %v2331 = vpack.c.b16 %v2315, %v2299
        %v2332 = vpack.c.b16 %v2316, %v2300
        %v2333 = vpack.c.b16 %v2317, %v2301
        %v2334 = vpack.c.b16 %v2318, %v2302
        %v2335 = vpack.c.b16 %v2319, %v2303
        %v2336 = vpack.c.b16 %v2320, %v2304
        %v2337 = vpack.c.b16 %v2321, %v2305
        %v2610 = vunpack.c.l.b16 %v570
        %v2611 = vunpack.c.l.b16 %v571
        %v2612 = vunpack.c.l.b16 %v572
        %v2613 = vunpack.c.l.b16 %v573
        %v2614 = vunpack.c.l.b16 %v574
        %v2615 = vunpack.c.l.b16 %v575
        %v2616 = vunpack.c.l.b16 %v576
        %v2617 = vunpack.c.l.b16 %v577
        %v2618 = vunpack.c.l.b16 %v578
        %v2619 = vunpack.c.l.b16 %v579
        %v2620 = vunpack.c.l.b16 %v580
        %v2621 = vunpack.c.l.b16 %v581
        %v2622 = vunpack.c.l.b16 %v582
        %v2623 = vunpack.c.l.b16 %v583
        %v2624 = vunpack.c.l.b16 %v584
        %v2625 = vunpack.c.l.b16 %v585
        %v2626 = vunpack.c.l.b16 %v586
        %v2627 = vunpack.c.l.b16 %v587
        %v2628 = vunpack.c.l.b16 %v588
        %v2629 = vunpack.c.l.b16 %v589
        %v2630 = vunpack.c.l.b16 %v590
        %v2631 = vunpack.c.l.b16 %v591
        %v2632 = vunpack.c.l.b16 %v592
        %v2633 = vunpack.c.l.b16 %v593
        %v2634 = vunpack.c.l.b16 %v594
        %v2635 = vunpack.c.l.b16 %v595
        %v2636 = vunpack.c.l.b16 %v596
        %v2637 = vunpack.c.l.b16 %v597
        %v2638 = vunpack.c.l.b16 %v598
        %v2639 = vunpack.c.l.b16 %v599
        %v2640 = vunpack.c.l.b16 %v600
        %v2641 = vunpack.c.l.b16 %v601
        %v2642 = vunpack.c.l.b16 %v602
        %v2643 = vunpack.c.l.b16 %v603
        %v2644 = vunpack.c.l.b16 %v604
        %v2645 = vunpack.c.l.b16 %v605
        %v2646 = vunpack.c.l.b16 %v606
        %v2647 = vunpack.c.l.b16 %v607
        %v2648 = vunpack.c.l.b16 %v608
        %v2649 = vunpack.c.l.b16 %v609
        %v2650 = vunpack.c.l.b16 %v610
        %v2651 = vunpack.c.l.b16 %v611
        %v2652 = vunpack.c.l.b16 %v612
        %v2653 = vunpack.c.l.b16 %v613
        %v2654 = vunpack.c.l.b16 %v614
        %v2655 = vunpack.c.l.b16 %v615
        %v2656 = vunpack.c.l.b16 %v616
        %v2657 = vunpack.c.l.b16 %v617
        %v2658 = vunpack.c.l.b16 %v618
        %v2659 = vunpack.c.l.b16 %v619
        %v2660 = vunpack.c.l.b16 %v620
        %v2661 = vunpack.c.l.b16 %v621
        %v2662 = vunpack.c.l.b16 %v622
        %v2663 = vunpack.c.l.b16 %v623
        %v2664 = vunpack.c.l.b16 %v624
        %v2665 = vunpack.c.l.b16 %v625
        %v2666 = vunpack.c.l.b16 %v626
        %v2667 = vunpack.c.l.b16 %v627
        %v2668 = vunpack.c.l.b16 %v628
        %v2669 = vunpack.c.l.b16 %v629
        %v2670 = vunpack.c.l.b16 %v630
        %v2671 = vunpack.c.l.b16 %v631
        %v2672 = vunpack.c.l.b16 %v632
        %v2673 = vunpack.c.l.b16 %v633
        %v2674 = vunpack.c.l.b16 %v634
        %v2675 = vunpack.c.l.b16 %v635
        %v2676 = vunpack.c.l.b16 %v636
        %v2677 = vunpack.c.l.b16 %v637
        %v2678 = vunpack.c.l.b16 %v638
        %v2679 = vunpack.c.l.b16 %v639
        %v2680 = vunpack.c.l.b16 %v640
        %v2681 = vunpack.c.l.b16 %v641
        %v2682 = vunpack.c.l.b16 %v642
        %v2683 = vunpack.c.l.b16 %v643
        %v2684 = vunpack.c.l.b16 %v644
        %v2685 = vunpack.c.l.b16 %v645
        %v2686 = vunpack.c.l.b16 %v646
        %v2687 = vunpack.c.l.b16 %v647
        %v2688 = vunpack.c.l.b16 %v648
        %v2689 = vunpack.c.l.b16 %v649
        %v2690 = vunpack.c.l.b16 %v650
        %v2691 = vunpack.c.l.b16 %v651
        %v2692 = vunpack.c.l.b16 %v652
        %v2693 = vunpack.c.l.b16 %v653
        %v2694 = vunpack.c.l.b16 %v654
        %v2695 = vunpack.c.l.b16 %v655
        %v2696 = vunpack.c.l.b16 %v656
        %v2697 = vunpack.c.l.b16 %v657
        %v2698 = vunpack.c.l.b16 %v658
        %v2699 = vunpack.c.l.b16 %v659
        %v2700 = vunpack.c.l.b16 %v660
        %v2701 = vunpack.c.l.b16 %v661
        %v2702 = vunpack.c.l.b16 %v662
        %v2703 = vunpack.c.l.b16 %v663
        %v2704 = vunpack.c.l.b16 %v664
        %v2705 = vunpack.c.l.b16 %v665
        %v2706 = vunpack.c.l.b16 %v666
        %v2707 = vunpack.c.l.b16 %v667
        %v2708 = vunpack.c.l.b16 %v668
        %v2709 = vunpack.c.l.b16 %v669
        %v2710 = vunpack.c.l.b16 %v670
        %v2711 = vunpack.c.l.b16 %v671
        %v2712 = vunpack.c.l.b16 %v672
        %v2713 = vunpack.c.l.b16 %v673
        %v2714 = vunpack.c.l.b16 %v674
        %v2715 = vunpack.c.l.b16 %v675
        %v2716 = vunpack.c.l.b16 %v676
        %v2717 = vunpack.c.l.b16 %v677
        %v2718 = vunpack.c.l.b16 %v678
        %v2719 = vunpack.c.l.b16 %v679
        %v2720 = vunpack.c.l.b16 %v680
        %v2721 = vunpack.c.l.b16 %v681
        %v2722 = vunpack.c.l.b16 %v682
        %v2723 = vunpack.c.l.b16 %v683
        %v2724 = vunpack.c.l.b16 %v684
        %v2725 = vunpack.c.l.b16 %v685
        %v2726 = vunpack.c.l.b16 %v686
        %v2727 = vunpack.c.l.b16 %v687
        %v2728 = vunpack.c.l.b16 %v688
        %v2729 = vunpack.c.l.b16 %v689
        %v2730 = vunpack.c.l.b16 %v690
        %v2731 = vunpack.c.l.b16 %v691
        %v2732 = vunpack.c.l.b16 %v692
        %v2733 = vunpack.c.l.b16 %v693
        %v2734 = vunpack.c.l.b16 %v694
        %v2735 = vunpack.c.l.b16 %v695
        %v2736 = vunpack.c.l.b16 %v696
        %v2737 = vunpack.c.l.b16 %v697
        %v2738 = vunpack.c.l.b16 %v698
        %v2739 = vunpack.c.l.b16 %v699
        %v2740 = vunpack.c.l.b16 %v700
        %v2741 = vunpack.c.l.b16 %v701
        %v2742 = vunpack.c.l.b16 %v702
        %v2743 = vunpack.c.l.b16 %v703
        %v2744 = vunpack.c.l.b16 %v704
        %v2745 = vunpack.c.l.b16 %v705
        %v2746 = vunpack.c.l.b16 %v706
        %v2747 = vunpack.c.l.b16 %v707
        %v2748 = vunpack.c.l.b16 %v708
        %v2749 = vunpack.c.l.b16 %v709
        %v2750 = vunpack.c.l.b16 %v710
        %v2751 = vunpack.c.l.b16 %v711
        %v2752 = vunpack.c.l.b16 %v712
        %v2753 = vunpack.c.l.b16 %v713
        %v2754 = vunpack.c.l.b16 %v714
        %v2755 = vunpack.c.l.b16 %v715
        %v2756 = vunpack.c.l.b16 %v716
        %v2757 = vunpack.c.l.b16 %v717
        %v2758 = vunpack.c.l.b16 %v718
        %v2759 = vunpack.c.l.b16 %v719
        %v2760 = vunpack.c.l.b16 %v720
        %v2761 = vunpack.c.l.b16 %v721
        %v2762 = vunpack.c.l.b16 %v722
        %v2763 = vunpack.c.l.b16 %v723
        %v2764 = vunpack.c.l.b16 %v724
        %v2765 = vunpack.c.l.b16 %v725
        %v2766 = vunpack.c.l.b16 %v726
        %v2767 = vunpack.c.l.b16 %v727
        %v2768 = vunpack.c.l.b16 %v728
        %v2769 = vunpack.c.l.b16 %v729
        %v2770 = vunpack.c.l.b16 %v730
        %v2771 = vunpack.c.l.b16 %v731
        %v2772 = vunpack.c.l.b16 %v732
        %v2773 = vunpack.c.l.b16 %v733
        %v2774 = vunpack.c.l.b16 %v734
        %v2775 = vunpack.c.l.b16 %v735
        %v2776 = vunpack.c.l.b16 %v736
        %v2777 = vunpack.c.l.b16 %v737
        %v2778 = vunpack.c.l.b16 %v738
        %v2779 = vunpack.c.l.b16 %v739
        %v2780 = vunpack.c.l.b16 %v740
        %v2781 = vunpack.c.l.b16 %v741
        %v2782 = vunpack.c.l.b16 %v742
        %v2783 = vunpack.c.l.b16 %v743
        %v2784 = vunpack.c.l.b16 %v744
        %v2785 = vunpack.c.l.b16 %v745
        %v2786 = vunpack.c.l.b16 %v746
        %v2787 = vunpack.c.l.b16 %v747
        %v2788 = vunpack.c.l.b16 %v748
        %v2789 = vunpack.c.l.b16 %v749
        %v2790 = vunpack.c.l.b16 %v750
        %v2791 = vunpack.c.l.b16 %v751
        %v2792 = vunpack.c.l.b16 %v752
        %v2793 = vunpack.c.l.b16 %v753
        %v2794 = vunpack.c.l.b16 %v754
        %v2795 = vunpack.c.l.b16 %v755
        %v2796 = vunpack.c.l.b16 %v756
        %v2797 = vunpack.c.l.b16 %v757
        %v2798 = vunpack.c.l.b16 %v758
        %v2799 = vunpack.c.l.b16 %v759
        %v2800 = vunpack.c.l.b16 %v760
        %v2801 = vunpack.c.l.b16 %v761
        %v2802 = vunpack.c.l.b16 %v762
        %v2803 = vunpack.c.l.b16 %v763
        %v2804 = vunpack.c.l.b16 %v764
        %v2805 = vunpack.c.l.b16 %v765
        %v2806 = vunpack.c.l.b16 %v766
        %v2807 = vunpack.c.l.b16 %v767
        %v2808 = vunpack.c.l.b16 %v768
        %v2809 = vunpack.c.l.b16 %v769
        %v2810 = vunpack.c.l.b16 %v770
        %v2811 = vunpack.c.l.b16 %v771
        %v2812 = vunpack.c.l.b16 %v772
        %v2813 = vunpack.c.l.b16 %v773
        %v2814 = vunpack.c.l.b16 %v774
        %v2815 = vunpack.c.l.b16 %v775
        %v2816 = vunpack.c.l.b16 %v776
        %v2817 = vunpack.c.l.b16 %v777
        %v2818 = vunpack.c.l.b16 %v778
        %v2819 = vunpack.c.l.b16 %v779
        %v2820 = vunpack.c.l.b16 %v780
        %v2821 = vunpack.c.l.b16 %v781
        %v2822 = vunpack.c.l.b16 %v782
        %v2823 = vunpack.c.l.b16 %v783
        %v2824 = vunpack.c.l.b16 %v784
        %v2825 = vunpack.c.l.b16 %v785
        %v2826 = vunpack.c.l.b16 %v786
        %v2827 = vunpack.c.l.b16 %v787
        %v2828 = vunpack.c.l.b16 %v788
        %v2829 = vunpack.c.l.b16 %v789
        %v2830 = vunpack.c.l.b16 %v790
        %v2831 = vunpack.c.l.b16 %v791
        %v2832 = vunpack.c.l.b16 %v792
        %v2833 = vunpack.c.l.b16 %v793
        %v2834 = vunpack.c.l.b16 %v794
        %v2835 = vunpack.c.l.b16 %v795
        %v2836 = vunpack.c.l.b16 %v796
        %v2837 = vunpack.c.l.b16 %v797
        %v2838 = vunpack.c.l.b16 %v798
        %v2839 = vunpack.c.l.b16 %v799
        %v2840 = vunpack.c.l.b16 %v800
        %v2841 = vunpack.c.l.b16 %v801
        %v2842 = vunpack.c.l.b16 %v802
        %v2843 = vunpack.c.l.b16 %v803
        %v2844 = vunpack.c.l.b16 %v804
        %v2845 = vunpack.c.l.b16 %v805
        %v2846 = vunpack.c.l.b16 %v806
        %v2847 = vunpack.c.l.b16 %v807
        %v2848 = vunpack.c.l.b16 %v808
        %v2849 = vunpack.c.l.b16 %v809
        %v2850 = vunpack.c.l.b16 %v810
        %v2851 = vunpack.c.l.b16 %v811
        %v2852 = vunpack.c.l.b16 %v812
        %v2853 = vunpack.c.l.b16 %v813
        %v2854 = vunpack.c.l.b16 %v814
        %v2855 = vunpack.c.l.b16 %v815
        %v2856 = vunpack.c.l.b16 %v816
        %v2857 = vunpack.c.l.b16 %v817
        %v2858 = vunpack.c.l.b16 %v818
        %v2859 = vunpack.c.l.b16 %v819
        %v2860 = vunpack.c.l.b16 %v820
        %v2861 = vunpack.c.l.b16 %v821
        %v2862 = vunpack.c.l.b16 %v822
        %v2863 = vunpack.c.l.b16 %v823
        %v2864 = vunpack.c.l.b16 %v824
        %v2865 = vunpack.c.l.b16 %v825
        %v2866 = vpack.c.b16 %v2611, %v2610
        %v2867 = vpack.c.b16 %v2613, %v2612
        %v2868 = vpack.c.b16 %v2615, %v2614
        %v2869 = vpack.c.b16 %v2617, %v2616
        %v2870 = vpack.c.b16 %v2619, %v2618
        %v2871 = vpack.c.b16 %v2621, %v2620
        %v2872 = vpack.c.b16 %v2623, %v2622
        %v2873 = vpack.c.b16 %v2625, %v2624
        %v2874 = vpack.c.b16 %v2627, %v2626
        %v2875 = vpack.c.b16 %v2629, %v2628
        %v2876 = vpack.c.b16 %v2631, %v2630
        %v2877 = vpack.c.b16 %v2633, %v2632
        %v2878 = vpack.c.b16 %v2635, %v2634
        %v2879 = vpack.c.b16 %v2637, %v2636
        %v2880 = vpack.c.b16 %v2639, %v2638
        %v2881 = vpack.c.b16 %v2641, %v2640
        %v2882 = vpack.c.b16 %v2643, %v2642
        %v2883 = vpack.c.b16 %v2645, %v2644
        %v2884 = vpack.c.b16 %v2647, %v2646
        %v2885 = vpack.c.b16 %v2649, %v2648
        %v2886 = vpack.c.b16 %v2651, %v2650
        %v2887 = vpack.c.b16 %v2653, %v2652
        %v2888 = vpack.c.b16 %v2655, %v2654
        %v2889 = vpack.c.b16 %v2657, %v2656
        %v2890 = vpack.c.b16 %v2659, %v2658
        %v2891 = vpack.c.b16 %v2661, %v2660
        %v2892 = vpack.c.b16 %v2663, %v2662
        %v2893 = vpack.c.b16 %v2665, %v2664
        %v2894 = vpack.c.b16 %v2667, %v2666
        %v2895 = vpack.c.b16 %v2669, %v2668
        %v2896 = vpack.c.b16 %v2671, %v2670
        %v2897 = vpack.c.b16 %v2673, %v2672
        %v2898 = vpack.c.b16 %v2675, %v2674
        %v2899 = vpack.c.b16 %v2677, %v2676
        %v2900 = vpack.c.b16 %v2679, %v2678
        %v2901 = vpack.c.b16 %v2681, %v2680
        %v2902 = vpack.c.b16 %v2683, %v2682
        %v2903 = vpack.c.b16 %v2685, %v2684
        %v2904 = vpack.c.b16 %v2687, %v2686
        %v2905 = vpack.c.b16 %v2689, %v2688
        %v2906 = vpack.c.b16 %v2691, %v2690
        %v2907 = vpack.c.b16 %v2693, %v2692
        %v2908 = vpack.c.b16 %v2695, %v2694
        %v2909 = vpack.c.b16 %v2697, %v2696
        %v2910 = vpack.c.b16 %v2699, %v2698
        %v2911 = vpack.c.b16 %v2701, %v2700
        %v2912 = vpack.c.b16 %v2703, %v2702
        %v2913 = vpack.c.b16 %v2705, %v2704
        %v2914 = vpack.c.b16 %v2707, %v2706
        %v2915 = vpack.c.b16 %v2709, %v2708
        %v2916 = vpack.c.b16 %v2711, %v2710
        %v2917 = vpack.c.b16 %v2713, %v2712
        %v2918 = vpack.c.b16 %v2715, %v2714
        %v2919 = vpack.c.b16 %v2717, %v2716
        %v2920 = vpack.c.b16 %v2719, %v2718
        %v2921 = vpack.c.b16 %v2721, %v2720
        %v2922 = vpack.c.b16 %v2723, %v2722
        %v2923 = vpack.c.b16 %v2725, %v2724
        %v2924 = vpack.c.b16 %v2727, %v2726
        %v2925 = vpack.c.b16 %v2729, %v2728
        %v2926 = vpack.c.b16 %v2731, %v2730
        %v2927 = vpack.c.b16 %v2733, %v2732
        %v2928 = vpack.c.b16 %v2735, %v2734
        %v2929 = vpack.c.b16 %v2737, %v2736
        %v2930 = vpack.c.b16 %v2739, %v2738
        %v2931 = vpack.c.b16 %v2741, %v2740
        %v2932 = vpack.c.b16 %v2743, %v2742
        %v2933 = vpack.c.b16 %v2745, %v2744
        %v2934 = vpack.c.b16 %v2747, %v2746
        %v2935 = vpack.c.b16 %v2749, %v2748
        %v2936 = vpack.c.b16 %v2751, %v2750
        %v2937 = vpack.c.b16 %v2753, %v2752
        %v2938 = vpack.c.b16 %v2755, %v2754
        %v2939 = vpack.c.b16 %v2757, %v2756
        %v2940 = vpack.c.b16 %v2759, %v2758
        %v2941 = vpack.c.b16 %v2761, %v2760
        %v2942 = vpack.c.b16 %v2763, %v2762
        %v2943 = vpack.c.b16 %v2765, %v2764
        %v2944 = vpack.c.b16 %v2767, %v2766
        %v2945 = vpack.c.b16 %v2769, %v2768
        %v2946 = vpack.c.b16 %v2771, %v2770
        %v2947 = vpack.c.b16 %v2773, %v2772
        %v2948 = vpack.c.b16 %v2775, %v2774
        %v2949 = vpack.c.b16 %v2777, %v2776
        %v2950 = vpack.c.b16 %v2779, %v2778
        %v2951 = vpack.c.b16 %v2781, %v2780
        %v2952 = vpack.c.b16 %v2783, %v2782
        %v2953 = vpack.c.b16 %v2785, %v2784
        %v2954 = vpack.c.b16 %v2787, %v2786
        %v2955 = vpack.c.b16 %v2789, %v2788
        %v2956 = vpack.c.b16 %v2791, %v2790
        %v2957 = vpack.c.b16 %v2793, %v2792
        %v2958 = vpack.c.b16 %v2795, %v2794
        %v2959 = vpack.c.b16 %v2797, %v2796
        %v2960 = vpack.c.b16 %v2799, %v2798
        %v2961 = vpack.c.b16 %v2801, %v2800
        %v2962 = vpack.c.b16 %v2803, %v2802
        %v2963 = vpack.c.b16 %v2805, %v2804
        %v2964 = vpack.c.b16 %v2807, %v2806
        %v2965 = vpack.c.b16 %v2809, %v2808
        %v2966 = vpack.c.b16 %v2811, %v2810
        %v2967 = vpack.c.b16 %v2813, %v2812
        %v2968 = vpack.c.b16 %v2815, %v2814
        %v2969 = vpack.c.b16 %v2817, %v2816
        %v2970 = vpack.c.b16 %v2819, %v2818
        %v2971 = vpack.c.b16 %v2821, %v2820
        %v2972 = vpack.c.b16 %v2823, %v2822
        %v2973 = vpack.c.b16 %v2825, %v2824
        %v2974 = vpack.c.b16 %v2827, %v2826
        %v2975 = vpack.c.b16 %v2829, %v2828
        %v2976 = vpack.c.b16 %v2831, %v2830
        %v2977 = vpack.c.b16 %v2833, %v2832
        %v2978 = vpack.c.b16 %v2835, %v2834
        %v2979 = vpack.c.b16 %v2837, %v2836
        %v2980 = vpack.c.b16 %v2839, %v2838
        %v2981 = vpack.c.b16 %v2841, %v2840
        %v2982 = vpack.c.b16 %v2843, %v2842
        %v2983 = vpack.c.b16 %v2845, %v2844
        %v2984 = vpack.c.b16 %v2847, %v2846
        %v2985 = vpack.c.b16 %v2849, %v2848
        %v2986 = vpack.c.b16 %v2851, %v2850
        %v2987 = vpack.c.b16 %v2853, %v2852
        %v2988 = vpack.c.b16 %v2855, %v2854
        %v2989 = vpack.c.b16 %v2857, %v2856
        %v2990 = vpack.c.b16 %v2859, %v2858
        %v2991 = vpack.c.b16 %v2861, %v2860
        %v2992 = vpack.c.b16 %v2863, %v2862
        %v2993 = vpack.c.b16 %v2865, %v2864
        %3122 = vmatprep.subr.bf16.mxu0 0
        %3123 = vmatpush1.bf16.msra.mxu0 %v2866
        %3124 = vmatprep.subr.bf16.mxu0 0
        %3125 = vmatpush1.bf16.msra.mxu0 %v2867
        %3126 = vmatprep.subr.bf16.mxu0 0
        %3127 = vmatpush1.bf16.msra.mxu0 %v2868
        %3128 = vmatprep.subr.bf16.mxu0 0
        %3129 = vmatpush1.bf16.msra.mxu0 %v2869
        %3130 = vmatprep.subr.bf16.mxu0 0
        %3131 = vmatpush1.bf16.msra.mxu0 %v2870
        %3132 = vmatprep.subr.bf16.mxu0 0
        %3133 = vmatpush1.bf16.msra.mxu0 %v2871
        %3134 = vmatprep.subr.bf16.mxu0 0
        %3135 = vmatpush1.bf16.msra.mxu0 %v2872
        %3136 = vmatprep.subr.bf16.mxu0 0
        %3137 = vmatpush1.bf16.msra.mxu0 %v2873
        %3138 = vmatprep.subr.bf16.mxu0 0
        %3139 = vmatpush1.bf16.msra.mxu0 %v2874
        %3140 = vmatprep.subr.bf16.mxu0 0
        %3141 = vmatpush1.bf16.msra.mxu0 %v2875
        %3142 = vmatprep.subr.bf16.mxu0 0
        %3143 = vmatpush1.bf16.msra.mxu0 %v2876
        %3144 = vmatprep.subr.bf16.mxu0 0
        %3145 = vmatpush1.bf16.msra.mxu0 %v2877
        %3146 = vmatprep.subr.bf16.mxu0 0
        %3147 = vmatpush1.bf16.msra.mxu0 %v2878
        %3148 = vmatprep.subr.bf16.mxu0 0
        %3149 = vmatpush1.bf16.msra.mxu0 %v2879
        %3150 = vmatprep.subr.bf16.mxu0 0
        %3151 = vmatpush1.bf16.msra.mxu0 %v2880
        %3152 = vmatprep.subr.bf16.mxu0 0
        %3153 = vmatpush1.bf16.msra.mxu0 %v2881
        %3154 = vmatprep.mubr.bf16.mxu0 %v2323
        %3155 = vmatmul.mubr.bf16.gmra.mrb[0].mxu0 %v2322
        %v3156 = vpop.f32.mrb[0].mxu0
        %v3157 = vadd.f32 %v2268, %v3156
        %v3158 = vpop.f32.mrb[0].mxu0
        %v3159 = vpop.f32.mrb[0].mxu0
        %v3160 = vadd.f32 %v2271, %v3159
        %v3161 = vpop.f32.mrb[0].mxu0
        %3162 = vdwg.mxu0
        %3163 = vmatprep.subr.bf16.mxu0 0
        %3164 = vmatpush1.bf16.msra.mxu0 %v2882
        %3165 = vmatprep.subr.bf16.mxu0 0
        %3166 = vmatpush1.bf16.msra.mxu0 %v2883
        %3167 = vmatprep.subr.bf16.mxu0 0
        %3168 = vmatpush1.bf16.msra.mxu0 %v2884
        %3169 = vmatprep.subr.bf16.mxu0 0
        %3170 = vmatpush1.bf16.msra.mxu0 %v2885
        %3171 = vmatprep.subr.bf16.mxu0 0
        %3172 = vmatpush1.bf16.msra.mxu0 %v2886
        %3173 = vmatprep.subr.bf16.mxu0 0
        %3174 = vmatpush1.bf16.msra.mxu0 %v2887
        %3175 = vmatprep.subr.bf16.mxu0 0
        %3176 = vmatpush1.bf16.msra.mxu0 %v2888
        %3177 = vmatprep.subr.bf16.mxu0 0
        %3178 = vmatpush1.bf16.msra.mxu0 %v2889
        %3179 = vmatprep.subr.bf16.mxu0 0
        %3180 = vmatpush1.bf16.msra.mxu0 %v2890
        %3181 = vmatprep.subr.bf16.mxu0 0
        %3182 = vmatpush1.bf16.msra.mxu0 %v2891
        %3183 = vmatprep.subr.bf16.mxu0 0
        %3184 = vmatpush1.bf16.msra.mxu0 %v2892
        %3185 = vmatprep.subr.bf16.mxu0 0
        %3186 = vmatpush1.bf16.msra.mxu0 %v2893
        %3187 = vmatprep.subr.bf16.mxu0 0
        %3188 = vmatpush1.bf16.msra.mxu0 %v2894
        %3189 = vmatprep.subr.bf16.mxu0 0
        %3190 = vmatpush1.bf16.msra.mxu0 %v2895
        %3191 = vmatprep.subr.bf16.mxu0 0
        %3192 = vmatpush1.bf16.msra.mxu0 %v2896
        %3193 = vmatprep.subr.bf16.mxu0 0
        %3194 = vmatpush1.bf16.msra.mxu0 %v2897
        %3195 = vmatprep.mubr.bf16.mxu0 %v2325
        %3196 = vmatmul.mubr.bf16.gmra.mrb[0].mxu0 %v2324
        %v3197 = vpop.f32.mrb[0].mxu0
        %v3198 = vadd.f32 %v3157, %v3197
        %v3199 = vpop.f32.mrb[0].mxu0
        %v3200 = vpop.f32.mrb[0].mxu0
        %v3201 = vadd.f32 %v3160, %v3200
        %v3202 = vpop.f32.mrb[0].mxu0
        %3203 = vdwg.mxu0
        %3204 = vmatprep.subr.bf16.mxu0 0
        %3205 = vmatpush1.bf16.msra.mxu0 %v2898
        %3206 = vmatprep.subr.bf16.mxu0 0
        %3207 = vmatpush1.bf16.msra.mxu0 %v2899
        %3208 = vmatprep.subr.bf16.mxu0 0
        %3209 = vmatpush1.bf16.msra.mxu0 %v2900
        %3210 = vmatprep.subr.bf16.mxu0 0
        %3211 = vmatpush1.bf16.msra.mxu0 %v2901
        %3212 = vmatprep.subr.bf16.mxu0 0
        %3213 = vmatpush1.bf16.msra.mxu0 %v2902
        %3214 = vmatprep.subr.bf16.mxu0 0
        %3215 = vmatpush1.bf16.msra.mxu0 %v2903
        %3216 = vmatprep.subr.bf16.mxu0 0
        %3217 = vmatpush1.bf16.msra.mxu0 %v2904
        %3218 = vmatprep.subr.bf16.mxu0 0
        %3219 = vmatpush1.bf16.msra.mxu0 %v2905
        %3220 = vmatprep.subr.bf16.mxu0 0
        %3221 = vmatpush1.bf16.msra.mxu0 %v2906
        %3222 = vmatprep.subr.bf16.mxu0 0
        %3223 = vmatpush1.bf16.msra.mxu0 %v2907
        %3224 = vmatprep.subr.bf16.mxu0 0
        %3225 = vmatpush1.bf16.msra.mxu0 %v2908
        %3226 = vmatprep.subr.bf16.mxu0 0
        %3227 = vmatpush1.bf16.msra.mxu0 %v2909
        %3228 = vmatprep.subr.bf16.mxu0 0
        %3229 = vmatpush1.bf16.msra.mxu0 %v2910
        %3230 = vmatprep.subr.bf16.mxu0 0
        %3231 = vmatpush1.bf16.msra.mxu0 %v2911
        %3232 = vmatprep.subr.bf16.mxu0 0
        %3233 = vmatpush1.bf16.msra.mxu0 %v2912
        %3234 = vmatprep.subr.bf16.mxu0 0
        %3235 = vmatpush1.bf16.msra.mxu0 %v2913
        %3236 = vmatprep.mubr.bf16.mxu0 %v2327
        %3237 = vmatmul.mubr.bf16.gmra.mrb[0].mxu0 %v2326
        %v3238 = vpop.f32.mrb[0].mxu0
        %v3239 = vadd.f32 %v3198, %v3238
        %v3240 = vpop.f32.mrb[0].mxu0
        %v3241 = vpop.f32.mrb[0].mxu0
        %v3242 = vadd.f32 %v3201, %v3241
        %v3243 = vpop.f32.mrb[0].mxu0
        %3244 = vdwg.mxu0
        %3245 = vmatprep.subr.bf16.mxu0 0
        %3246 = vmatpush1.bf16.msra.mxu0 %v2914
        %3247 = vmatprep.subr.bf16.mxu0 0
        %3248 = vmatpush1.bf16.msra.mxu0 %v2915
        %3249 = vmatprep.subr.bf16.mxu0 0
        %3250 = vmatpush1.bf16.msra.mxu0 %v2916
        %3251 = vmatprep.subr.bf16.mxu0 0
        %3252 = vmatpush1.bf16.msra.mxu0 %v2917
        %3253 = vmatprep.subr.bf16.mxu0 0
        %3254 = vmatpush1.bf16.msra.mxu0 %v2918
        %3255 = vmatprep.subr.bf16.mxu0 0
        %3256 = vmatpush1.bf16.msra.mxu0 %v2919
        %3257 = vmatprep.subr.bf16.mxu0 0
        %3258 = vmatpush1.bf16.msra.mxu0 %v2920
        %3259 = vmatprep.subr.bf16.mxu0 0
        %3260 = vmatpush1.bf16.msra.mxu0 %v2921
        %3261 = vmatprep.subr.bf16.mxu0 0
        %3262 = vmatpush1.bf16.msra.mxu0 %v2922
        %3263 = vmatprep.subr.bf16.mxu0 0
        %3264 = vmatpush1.bf16.msra.mxu0 %v2923
        %3265 = vmatprep.subr.bf16.mxu0 0
        %3266 = vmatpush1.bf16.msra.mxu0 %v2924
        %3267 = vmatprep.subr.bf16.mxu0 0
        %3268 = vmatpush1.bf16.msra.mxu0 %v2925
        %3269 = vmatprep.subr.bf16.mxu0 0
        %3270 = vmatpush1.bf16.msra.mxu0 %v2926
        %3271 = vmatprep.subr.bf16.mxu0 0
        %3272 = vmatpush1.bf16.msra.mxu0 %v2927
        %3273 = vmatprep.subr.bf16.mxu0 0
        %3274 = vmatpush1.bf16.msra.mxu0 %v2928
        %3275 = vmatprep.subr.bf16.mxu0 0
        %3276 = vmatpush1.bf16.msra.mxu0 %v2929
        %3277 = vmatprep.mubr.bf16.mxu0 %v2329
        %3278 = vmatmul.mubr.bf16.gmra.mrb[0].mxu0 %v2328
        %v3279 = vpop.f32.mrb[0].mxu0
        %v3280 = vadd.f32 %v3239, %v3279
        %v3281 = vpop.f32.mrb[0].mxu0
        %v3282 = vpop.f32.mrb[0].mxu0
        %v3283 = vadd.f32 %v3242, %v3282
        %v3284 = vpop.f32.mrb[0].mxu0
        %3285 = vdwg.mxu0
        %3286 = vmatprep.subr.bf16.mxu0 0
        %3287 = vmatpush1.bf16.msra.mxu0 %v2930
        %3288 = vmatprep.subr.bf16.mxu0 0
        %3289 = vmatpush1.bf16.msra.mxu0 %v2931
        %3290 = vmatprep.subr.bf16.mxu0 0
        %3291 = vmatpush1.bf16.msra.mxu0 %v2932
        %3292 = vmatprep.subr.bf16.mxu0 0
        %3293 = vmatpush1.bf16.msra.mxu0 %v2933
        %3294 = vmatprep.subr.bf16.mxu0 0
        %3295 = vmatpush1.bf16.msra.mxu0 %v2934
        %3296 = vmatprep.subr.bf16.mxu0 0
        %3297 = vmatpush1.bf16.msra.mxu0 %v2935
        %3298 = vmatprep.subr.bf16.mxu0 0
        %3299 = vmatpush1.bf16.msra.mxu0 %v2936
        %3300 = vmatprep.subr.bf16.mxu0 0
        %3301 = vmatpush1.bf16.msra.mxu0 %v2937
        %3302 = vmatprep.subr.bf16.mxu0 0
        %3303 = vmatpush1.bf16.msra.mxu0 %v2938
        %3304 = vmatprep.subr.bf16.mxu0 0
        %3305 = vmatpush1.bf16.msra.mxu0 %v2939
        %3306 = vmatprep.subr.bf16.mxu0 0
        %3307 = vmatpush1.bf16.msra.mxu0 %v2940
        %3308 = vmatprep.subr.bf16.mxu0 0
        %3309 = vmatpush1.bf16.msra.mxu0 %v2941
        %3310 = vmatprep.subr.bf16.mxu0 0
        %3311 = vmatpush1.bf16.msra.mxu0 %v2942
        %3312 = vmatprep.subr.bf16.mxu0 0
        %3313 = vmatpush1.bf16.msra.mxu0 %v2943
        %3314 = vmatprep.subr.bf16.mxu0 0
        %3315 = vmatpush1.bf16.msra.mxu0 %v2944
        %3316 = vmatprep.subr.bf16.mxu0 0
        %3317 = vmatpush1.bf16.msra.mxu0 %v2945
        %3318 = vmatprep.mubr.bf16.mxu0 %v2331
        %3319 = vmatmul.mubr.bf16.gmra.mrb[0].mxu0 %v2330
        %v3320 = vpop.f32.mrb[0].mxu0
        %v3321 = vadd.f32 %v3280, %v3320
        %v3322 = vpop.f32.mrb[0].mxu0
        %v3323 = vpop.f32.mrb[0].mxu0
        %v3324 = vadd.f32 %v3283, %v3323
        %v3325 = vpop.f32.mrb[0].mxu0
        %3326 = vdwg.mxu0
        %3327 = vmatprep.subr.bf16.mxu0 0
        %3328 = vmatpush1.bf16.msra.mxu0 %v2946
        %3329 = vmatprep.subr.bf16.mxu0 0
        %3330 = vmatpush1.bf16.msra.mxu0 %v2947
        %3331 = vmatprep.subr.bf16.mxu0 0
        %3332 = vmatpush1.bf16.msra.mxu0 %v2948
        %3333 = vmatprep.subr.bf16.mxu0 0
        %3334 = vmatpush1.bf16.msra.mxu0 %v2949
        %3335 = vmatprep.subr.bf16.mxu0 0
        %3336 = vmatpush1.bf16.msra.mxu0 %v2950
        %3337 = vmatprep.subr.bf16.mxu0 0
        %3338 = vmatpush1.bf16.msra.mxu0 %v2951
        %3339 = vmatprep.subr.bf16.mxu0 0
        %3340 = vmatpush1.bf16.msra.mxu0 %v2952
        %3341 = vmatprep.subr.bf16.mxu0 0
        %3342 = vmatpush1.bf16.msra.mxu0 %v2953
        %3343 = vmatprep.subr.bf16.mxu0 0
        %3344 = vmatpush1.bf16.msra.mxu0 %v2954
        %3345 = vmatprep.subr.bf16.mxu0 0
        %3346 = vmatpush1.bf16.msra.mxu0 %v2955
        %3347 = vmatprep.subr.bf16.mxu0 0
        %3348 = vmatpush1.bf16.msra.mxu0 %v2956
        %3349 = vmatprep.subr.bf16.mxu0 0
        %3350 = vmatpush1.bf16.msra.mxu0 %v2957
        %3351 = vmatprep.subr.bf16.mxu0 0
        %3352 = vmatpush1.bf16.msra.mxu0 %v2958
        %3353 = vmatprep.subr.bf16.mxu0 0
        %3354 = vmatpush1.bf16.msra.mxu0 %v2959
        %3355 = vmatprep.subr.bf16.mxu0 0
        %3356 = vmatpush1.bf16.msra.mxu0 %v2960
        %3357 = vmatprep.subr.bf16.mxu0 0
        %3358 = vmatpush1.bf16.msra.mxu0 %v2961
        %3359 = vmatprep.mubr.bf16.mxu0 %v2333
        %3360 = vmatmul.mubr.bf16.gmra.mrb[0].mxu0 %v2332
        %v3361 = vpop.f32.mrb[0].mxu0
        %v3362 = vadd.f32 %v3321, %v3361
        %v3363 = vpop.f32.mrb[0].mxu0
        %v3364 = vpop.f32.mrb[0].mxu0
        %v3365 = vadd.f32 %v3324, %v3364
        %v3366 = vpop.f32.mrb[0].mxu0
        %3367 = vdwg.mxu0
        %3368 = vmatprep.subr.bf16.mxu0 0
        %3369 = vmatpush1.bf16.msra.mxu0 %v2962
        %3370 = vmatprep.subr.bf16.mxu0 0
        %3371 = vmatpush1.bf16.msra.mxu0 %v2963
        %3372 = vmatprep.subr.bf16.mxu0 0
        %3373 = vmatpush1.bf16.msra.mxu0 %v2964
        %3374 = vmatprep.subr.bf16.mxu0 0
        %3375 = vmatpush1.bf16.msra.mxu0 %v2965
        %3376 = vmatprep.subr.bf16.mxu0 0
        %3377 = vmatpush1.bf16.msra.mxu0 %v2966
        %3378 = vmatprep.subr.bf16.mxu0 0
        %3379 = vmatpush1.bf16.msra.mxu0 %v2967
        %3380 = vmatprep.subr.bf16.mxu0 0
        %3381 = vmatpush1.bf16.msra.mxu0 %v2968
        %3382 = vmatprep.subr.bf16.mxu0 0
        %3383 = vmatpush1.bf16.msra.mxu0 %v2969
        %3384 = vmatprep.subr.bf16.mxu0 0
        %3385 = vmatpush1.bf16.msra.mxu0 %v2970
        %3386 = vmatprep.subr.bf16.mxu0 0
        %3387 = vmatpush1.bf16.msra.mxu0 %v2971
        %3388 = vmatprep.subr.bf16.mxu0 0
        %3389 = vmatpush1.bf16.msra.mxu0 %v2972
        %3390 = vmatprep.subr.bf16.mxu0 0
        %3391 = vmatpush1.bf16.msra.mxu0 %v2973
        %3392 = vmatprep.subr.bf16.mxu0 0
        %3393 = vmatpush1.bf16.msra.mxu0 %v2974
        %3394 = vmatprep.subr.bf16.mxu0 0
        %3395 = vmatpush1.bf16.msra.mxu0 %v2975
        %3396 = vmatprep.subr.bf16.mxu0 0
        %3397 = vmatpush1.bf16.msra.mxu0 %v2976
        %3398 = vmatprep.subr.bf16.mxu0 0
        %3399 = vmatpush1.bf16.msra.mxu0 %v2977
        %3400 = vmatprep.mubr.bf16.mxu0 %v2335
        %3401 = vmatmul.mubr.bf16.gmra.mrb[0].mxu0 %v2334
        %v3402 = vpop.f32.mrb[0].mxu0
        %v3403 = vadd.f32 %v3362, %v3402
        %v3404 = vpop.f32.mrb[0].mxu0
        %v3405 = vpop.f32.mrb[0].mxu0
        %v3406 = vadd.f32 %v3365, %v3405
        %v3407 = vpop.f32.mrb[0].mxu0
        %3408 = vdwg.mxu0
        %3409 = vmatprep.subr.bf16.mxu0 0
        %3410 = vmatpush1.bf16.msra.mxu0 %v2978
        %3411 = vmatprep.subr.bf16.mxu0 0
        %3412 = vmatpush1.bf16.msra.mxu0 %v2979
        %3413 = vmatprep.subr.bf16.mxu0 0
        %3414 = vmatpush1.bf16.msra.mxu0 %v2980
        %3415 = vmatprep.subr.bf16.mxu0 0
        %3416 = vmatpush1.bf16.msra.mxu0 %v2981
        %3417 = vmatprep.subr.bf16.mxu0 0
        %3418 = vmatpush1.bf16.msra.mxu0 %v2982
        %3419 = vmatprep.subr.bf16.mxu0 0
        %3420 = vmatpush1.bf16.msra.mxu0 %v2983
        %3421 = vmatprep.subr.bf16.mxu0 0
        %3422 = vmatpush1.bf16.msra.mxu0 %v2984
        %3423 = vmatprep.subr.bf16.mxu0 0
        %3424 = vmatpush1.bf16.msra.mxu0 %v2985
        %3425 = vmatprep.subr.bf16.mxu0 0
        %3426 = vmatpush1.bf16.msra.mxu0 %v2986
        %3427 = vmatprep.subr.bf16.mxu0 0
        %3428 = vmatpush1.bf16.msra.mxu0 %v2987
        %3429 = vmatprep.subr.bf16.mxu0 0
        %3430 = vmatpush1.bf16.msra.mxu0 %v2988
        %3431 = vmatprep.subr.bf16.mxu0 0
        %3432 = vmatpush1.bf16.msra.mxu0 %v2989
        %3433 = vmatprep.subr.bf16.mxu0 0
        %3434 = vmatpush1.bf16.msra.mxu0 %v2990
        %3435 = vmatprep.subr.bf16.mxu0 0
        %3436 = vmatpush1.bf16.msra.mxu0 %v2991
        %3437 = vmatprep.subr.bf16.mxu0 0
        %3438 = vmatpush1.bf16.msra.mxu0 %v2992
        %3439 = vmatprep.subr.bf16.mxu0 0
        %3440 = vmatpush1.bf16.msra.mxu0 %v2993
        %3441 = vmatprep.mubr.bf16.mxu0 %v2337
        %3442 = vmatmul.mubr.bf16.gmra.mrb[0].mxu0 %v2336
        %v3443 = vpop.f32.mrb[0].mxu0
        %v3444 = vadd.f32 %v3403, %v3443
        %v3445 = vpop.f32.mrb[0].mxu0
        %v3446 = vpop.f32.mrb[0].mxu0
        %v3447 = vadd.f32 %v3406, %v3446
        %v3448 = vpop.f32.mrb[0].mxu0
        %3449 = vdwg.mxu0
        %v3450 = vlaneseq
        %v3451 = vshrl.u32 %v3450, 7
        %v3452 = vsub.s32 0, %v3451
        %v3453 = vrot.slane %v551, %v3452
        %v3454 = vadd.f32 %v3444, %v3453
        %v3455 = vadd.f32 %v3447, %v3453
        %v3456 = vmul.f32 %v3454, 0.5
        %v3457 = vmul.f32 %v3455, 0.5
        %v3458 = vmul.f32 %v3454, 0.70710677
        %v3459 = vmul.f32 %v3455, 0.70710677
        %v3460 = verf.f32.pop %v3458
        %v3461 = verf.f32.pop %v3459
        %v3462 = vadd.f32 %v3460, 1.0
        %v3463 = vadd.f32 %v3461, 1.0
        %v3464 = vmul.f32 %v3456, %v3462
        %v3465 = vmul.f32 %v3457, %v3463
        %vm3466 = vcmask 523264
        %v3467 = vsel %vm3466, %v3464, 0.0
        %3468 = vadd.xlane.f32.xlu0 %v3467
        %v3469 = vpop.xlane.xlu0 %3468
        %v3470 = vsel %vm3466, %v3465, 0.0
        %3471 = vadd.xlane.f32.xlu0 %v3470
        %v3472 = vpop.xlane.xlu0 %3471
        %v3473 = vrcp.pop 64.0
        %v3474 = vmul.f32 %v3469, %v3473
        %v3475 = vmul.f32 %v3472, %v3473
        %v3476 = vsub.f32 %v3464, %v3474
        %v3477 = vsub.f32 %v3465, %v3475
        %v3478 = vmul.f32 %v3476, %v3476
        %v3479 = vmul.f32 %v3477, %v3477
        %v3480 = vsel %vm3466, %v3478, 0.0
        %3481 = vadd.xlane.f32.xlu0 %v3480
        %v3482 = vpop.xlane.xlu0 %3481
        %v3483 = vsel %vm3466, %v3479, 0.0
        %3484 = vadd.xlane.f32.xlu0 %v3483
        %v3485 = vpop.xlane.xlu0 %3484
        %v3486 = vmul.f32 %v3482, %v3473
        %v3487 = vmul.f32 %v3485, %v3473
        %v3488 = vadd.f32 %v3486, 1e-05
        %v3489 = vadd.f32 %v3487, 1e-05
        %v3490 = vrsqrt.pop %v3488
        %v3491 = vrsqrt.pop %v3489
        %v3492 = vmul.f32 %v3476, %v3490
        %v3493 = vmul.f32 %v3477, %v3491
        %v3494 = vlaneseq
        %v3495 = vshrl.u32 %v3494, 7
        %v3496 = vsub.s32 1, %v3495
        %v3497 = vrot.slane %v551, %v3496
        %v3498 = vmul.f32 %v3492, %v3497
        %v3499 = vmul.f32 %v3493, %v3497
        %v3500 = vlaneseq
        %v3501 = vshrl.u32 %v3500, 7
        %v3502 = vsub.s32 2, %v3501
        %v3503 = vrot.slane %v551, %v3502
        %v3504 = vadd.f32 %v3498, %v3503
        %v3505 = vadd.f32 %v3499, %v3503
        %v3506 = vld [vmem:[%s475] sm:$0xff]
        %v3507 = vld [vmem:[%s475 + $0x8] sm:$0xff]
        %v3508 = vpack.c.bf16 %v3505, %v3504
        %v3509 = vld [vmem:[%s5] sm:$0xff]
        %v3510 = vld [vmem:[%s5 + $0x8] sm:$0xf]
        %v3511 = vld [vmem:[%s5 + $0xc] sm:$0xff]
        %v3512 = vld [vmem:[%s5 + $0x14] sm:$0xf]
        %v3513 = vld [vmem:[%s5 + $0x18] sm:$0xff]
        %v3514 = vld [vmem:[%s5 + $0x20] sm:$0xf]
        %v3515 = vld [vmem:[%s5 + $0x24] sm:$0xff]
        %v3516 = vld [vmem:[%s5 + $0x2c] sm:$0xf]
        %v3517 = vld [vmem:[%s5 + $0x30] sm:$0xff]
        %v3518 = vld [vmem:[%s5 + $0x38] sm:$0xf]
        %v3519 = vld [vmem:[%s5 + $0x3c] sm:$0xff]
        %v3520 = vld [vmem:[%s5 + $0x44] sm:$0xf]
        %v3521 = vld [vmem:[%s5 + $0x48] sm:$0xff]
        %v3522 = vld [vmem:[%s5 + $0x50] sm:$0xf]
        %v3523 = vld [vmem:[%s5 + $0x54] sm:$0xff]
        %v3524 = vld [vmem:[%s5 + $0x5c] sm:$0xf]
        %v3525 = vlaneseq
        %v3526 = vshrl.u32 %v3525, 7
        %v3527 = vsub.s32 3, %v3526
        %v3528 = vrot.slane %v551, %v3527
        %v3529 = vlaneseq
        %v3530 = vshrl.u32 %v3529, 7
        %v3531 = vsub.s32 3, %v3530
        %v3532 = vrot.slane %v552, %v3531
        %v3533 = vlaneseq
        %v3534 = vshrl.u32 %v3533, 7
        %v3535 = vsub.s32 3, %v3534
        %v3536 = vrot.slane %v553, %v3535
        %v3553 = vunpack.c.l.b16 %v3509
        %v3554 = vunpack.c.h.b16 %v3509
        %v3555 = vunpack.c.l.b16 %v3510
        %v3556 = vunpack.c.l.b16 %v3511
        %v3557 = vunpack.c.h.b16 %v3511
        %v3558 = vunpack.c.l.b16 %v3512
        %v3559 = vunpack.c.l.b16 %v3513
        %v3560 = vunpack.c.h.b16 %v3513
        %v3561 = vunpack.c.l.b16 %v3514
        %v3562 = vunpack.c.l.b16 %v3515
        %v3563 = vunpack.c.h.b16 %v3515
        %v3564 = vunpack.c.l.b16 %v3516
        %v3565 = vunpack.c.l.b16 %v3517
        %v3566 = vunpack.c.h.b16 %v3517
        %v3567 = vunpack.c.l.b16 %v3518
        %v3568 = vunpack.c.l.b16 %v3519
        %v3569 = vunpack.c.h.b16 %v3519
        %v3570 = vunpack.c.l.b16 %v3520
        %v3571 = vunpack.c.l.b16 %v3521
        %v3572 = vunpack.c.h.b16 %v3521
        %v3573 = vunpack.c.l.b16 %v3522
        %v3574 = vunpack.c.l.b16 %v3523
        %v3575 = vunpack.c.h.b16 %v3523
        %v3576 = vunpack.c.l.b16 %v3524
        %v3577 = vpack.c.b16 %v3556, %v3553
        %v3578 = vpack.c.b16 %v3557, %v3554
        %v3579 = vpack.c.b16 %v3558, %v3555
        %v3580 = vpack.c.b16 %v3562, %v3559
        %v3581 = vpack.c.b16 %v3563, %v3560
        %v3582 = vpack.c.b16 %v3564, %v3561
        %v3583 = vpack.c.b16 %v3568, %v3565
        %v3584 = vpack.c.b16 %v3569, %v3566
        %v3585 = vpack.c.b16 %v3570, %v3567
        %v3586 = vpack.c.b16 %v3574, %v3571
        %v3587 = vpack.c.b16 %v3575, %v3572
        %v3588 = vpack.c.b16 %v3576, %v3573
        %v3602 = vsel %vm3466, %v3508, 0
        %3604 = vmatprep.subr.bf16.mxu0 %v3578
        %3605 = vmatpush1.bf16.msra.mxu0 %v3577
        %3606 = vmatprep.subr.bf16.mxu0 %v3581
        %3607 = vmatpush1.bf16.msra.mxu0 %v3580
        %3608 = vmatprep.subr.bf16.mxu0 %v3584
        %3609 = vmatpush1.bf16.msra.mxu0 %v3583
        %3610 = vmatprep.subr.bf16.mxu0 %v3587
        %3611 = vmatpush1.bf16.msra.mxu0 %v3586
        %3612 = vmatprep.subr.bf16.mxu0 0
        %3613 = vmatpush1.bf16.msra.mxu0 0
        %3614 = vmatprep.subr.bf16.mxu0 0
        %3615 = vmatpush1.bf16.msra.mxu0 0
        %3616 = vmatprep.subr.bf16.mxu0 0
        %3617 = vmatpush1.bf16.msra.mxu0 0
        %3618 = vmatprep.subr.bf16.mxu0 0
        %3619 = vmatpush1.bf16.msra.mxu0 0
        %3620 = vmatprep.subr.bf16.mxu0 0
        %3621 = vmatpush1.bf16.msra.mxu0 0
        %3622 = vmatprep.subr.bf16.mxu0 0
        %3623 = vmatpush1.bf16.msra.mxu0 0
        %3624 = vmatprep.subr.bf16.mxu0 0
        %3625 = vmatpush1.bf16.msra.mxu0 0
        %3626 = vmatprep.subr.bf16.mxu0 0
        %3627 = vmatpush1.bf16.msra.mxu0 0
        %3628 = vmatprep.subr.bf16.mxu0 0
        %3629 = vmatpush1.bf16.msra.mxu0 0
        %3630 = vmatprep.subr.bf16.mxu0 0
        %3631 = vmatpush1.bf16.msra.mxu0 0
        %3632 = vmatprep.subr.bf16.mxu0 0
        %3633 = vmatpush1.bf16.msra.mxu0 0
        %3634 = vmatprep.subr.bf16.mxu0 0
        %3635 = vmatpush1.bf16.msra.mxu0 0
        %3636 = vmatprep.mubr.bf16.mxu0 0
        %3637 = vmatmul.mubr.bf16.gmra.mrb[0].mxu0 %v3602
        %v3638 = vpop.f32.mrb[0].mxu0
        %v3639 = vadd.f32 %v3528, %v3638
        %v3640 = vpop.f32.mrb[0].mxu0
        %v3641 = vadd.f32 %v3532, %v3640
        %v3642 = vpop.f32.mrb[0].mxu0
        %v3643 = vadd.f32 %v3528, %v3642
        %v3644 = vpop.f32.mrb[0].mxu0
        %v3645 = vadd.f32 %v3532, %v3644
        %3646 = vdwg.mxu0
        %3647 = vmatprep.subr.bf16.mxu0 0
        %3648 = vmatpush1.bf16.msra.mxu0 %v3579
        %3649 = vmatprep.subr.bf16.mxu0 0
        %3650 = vmatpush1.bf16.msra.mxu0 %v3582
        %3651 = vmatprep.subr.bf16.mxu0 0
        %3652 = vmatpush1.bf16.msra.mxu0 %v3585
        %3653 = vmatprep.subr.bf16.mxu0 0
        %3654 = vmatpush1.bf16.msra.mxu0 %v3588
        %3655 = vmatprep.subr.bf16.mxu0 0
        %3656 = vmatpush1.bf16.msra.mxu0 0
        %3657 = vmatprep.subr.bf16.mxu0 0
        %3658 = vmatpush1.bf16.msra.mxu0 0
        %3659 = vmatprep.subr.bf16.mxu0 0
        %3660 = vmatpush1.bf16.msra.mxu0 0
        %3661 = vmatprep.subr.bf16.mxu0 0
        %3662 = vmatpush1.bf16.msra.mxu0 0
        %3663 = vmatprep.subr.bf16.mxu0 0
        %3664 = vmatpush1.bf16.msra.mxu0 0
        %3665 = vmatprep.subr.bf16.mxu0 0
        %3666 = vmatpush1.bf16.msra.mxu0 0
        %3667 = vmatprep.subr.bf16.mxu0 0
        %3668 = vmatpush1.bf16.msra.mxu0 0
        %3669 = vmatprep.subr.bf16.mxu0 0
        %3670 = vmatpush1.bf16.msra.mxu0 0
        %3671 = vmatprep.subr.bf16.mxu0 0
        %3672 = vmatpush1.bf16.msra.mxu0 0
        %3673 = vmatprep.subr.bf16.mxu0 0
        %3674 = vmatpush1.bf16.msra.mxu0 0
        %3675 = vmatprep.subr.bf16.mxu0 0
        %3676 = vmatpush1.bf16.msra.mxu0 0
        %3677 = vmatprep.subr.bf16.mxu0 0
        %3678 = vmatpush1.bf16.msra.mxu0 0
        %3679 = vmatprep.mubr.bf16.mxu0 0
        %3680 = vmatmul.mubr.bf16.gmra.mrb[0].mxu0 %v3602
        %v3681 = vpop.f32.mrb[0].mxu0
        %v3682 = vadd.f32 %v3536, %v3681
        %v3683 = vpop.f32.mrb[0].mxu0
        %v3684 = vpop.f32.mrb[0].mxu0
        %v3685 = vadd.f32 %v3536, %v3684
        %v3686 = vpop.f32.mrb[0].mxu0
        %3687 = vdwg.mxu0
        %v3688 = vpack.c.bf16 %v3507, %v3506
        %v3689 = vld [vmem:[%s6] sm:$0xff]
        %v3690 = vld [vmem:[%s6 + $0x8] sm:$0xf]
        %v3691 = vld [vmem:[%s6 + $0xc] sm:$0xff]
        %v3692 = vld [vmem:[%s6 + $0x14] sm:$0xf]
        %v3693 = vld [vmem:[%s6 + $0x18] sm:$0xff]
        %v3694 = vld [vmem:[%s6 + $0x20] sm:$0xf]
        %v3695 = vld [vmem:[%s6 + $0x24] sm:$0xff]
        %v3696 = vld [vmem:[%s6 + $0x2c] sm:$0xf]
        %v3697 = vld [vmem:[%s6 + $0x30] sm:$0xff]
        %v3698 = vld [vmem:[%s6 + $0x38] sm:$0xf]
        %v3699 = vld [vmem:[%s6 + $0x3c] sm:$0xff]
        %v3700 = vld [vmem:[%s6 + $0x44] sm:$0xf]
        %v3701 = vld [vmem:[%s6 + $0x48] sm:$0xff]
        %v3702 = vld [vmem:[%s6 + $0x50] sm:$0xf]
        %v3703 = vld [vmem:[%s6 + $0x54] sm:$0xff]
        %v3704 = vld [vmem:[%s6 + $0x5c] sm:$0xf]
        %v3705 = vld [vmem:[%s6 + $0x60] sm:$0xff]
        %v3706 = vld [vmem:[%s6 + $0x68] sm:$0xf]
        %v3707 = vld [vmem:[%s6 + $0x6c] sm:$0xff]
        %v3708 = vld [vmem:[%s6 + $0x74] sm:$0xf]
        %v3709 = vld [vmem:[%s6 + $0x78] sm:$0xff]
        %v3710 = vld [vmem:[%s6 + $0x80] sm:$0xf]
        %v3711 = vld [vmem:[%s6 + $0x84] sm:$0xff]
        %v3712 = vld [vmem:[%s6 + $0x8c] sm:$0xf]
        %v3713 = vld [vmem:[%s6 + $0x90] sm:$0xff]
        %v3714 = vld [vmem:[%s6 + $0x98] sm:$0xf]
        %v3715 = vld [vmem:[%s6 + $0x9c] sm:$0xff]
        %v3716 = vld [vmem:[%s6 + $0xa4] sm:$0xf]
        %v3717 = vld [vmem:[%s6 + $0xa8] sm:$0xff]
        %v3718 = vld [vmem:[%s6 + $0xb0] sm:$0xf]
        %v3719 = vld [vmem:[%s6 + $0xb4] sm:$0xff]
        %v3720 = vld [vmem:[%s6 + $0xbc] sm:$0xf]
        %v3721 = vlaneseq
        %v3722 = vshrl.u32 %v3721, 7
        %v3723 = vsub.s32 4, %v3722
        %v3724 = vrot.slane %v551, %v3723
        %v3725 = vlaneseq
        %v3726 = vshrl.u32 %v3725, 7
        %v3727 = vsub.s32 4, %v3726
        %v3728 = vrot.slane %v552, %v3727
        %v3729 = vlaneseq
        %v3730 = vshrl.u32 %v3729, 7
        %v3731 = vsub.s32 4, %v3730
        %v3732 = vrot.slane %v553, %v3731
        %v3765 = vunpack.c.l.b16 %v3689
        %v3766 = vunpack.c.h.b16 %v3689
        %v3767 = vunpack.c.l.b16 %v3690
        %v3768 = vunpack.c.l.b16 %v3691
        %v3769 = vunpack.c.h.b16 %v3691
        %v3770 = vunpack.c.l.b16 %v3692
        %v3771 = vunpack.c.l.b16 %v3693
        %v3772 = vunpack.c.h.b16 %v3693
        %v3773 = vunpack.c.l.b16 %v3694
        %v3774 = vunpack.c.l.b16 %v3695
        %v3775 = vunpack.c.h.b16 %v3695
        %v3776 = vunpack.c.l.b16 %v3696
        %v3777 = vunpack.c.l.b16 %v3697
        %v3778 = vunpack.c.h.b16 %v3697
        %v3779 = vunpack.c.l.b16 %v3698
        %v3780 = vunpack.c.l.b16 %v3699
        %v3781 = vunpack.c.h.b16 %v3699
        %v3782 = vunpack.c.l.b16 %v3700
        %v3783 = vunpack.c.l.b16 %v3701
        %v3784 = vunpack.c.h.b16 %v3701
        %v3785 = vunpack.c.l.b16 %v3702
        %v3786 = vunpack.c.l.b16 %v3703
        %v3787 = vunpack.c.h.b16 %v3703
        %v3788 = vunpack.c.l.b16 %v3704
        %v3789 = vunpack.c.l.b16 %v3705
        %v3790 = vunpack.c.h.b16 %v3705
        %v3791 = vunpack.c.l.b16 %v3706
        %v3792 = vunpack.c.l.b16 %v3707
        %v3793 = vunpack.c.h.b16 %v3707
        %v3794 = vunpack.c.l.b16 %v3708
        %v3795 = vunpack.c.l.b16 %v3709
        %v3796 = vunpack.c.h.b16 %v3709
        %v3797 = vunpack.c.l.b16 %v3710
        %v3798 = vunpack.c.l.b16 %v3711
        %v3799 = vunpack.c.h.b16 %v3711
        %v3800 = vunpack.c.l.b16 %v3712
        %v3801 = vunpack.c.l.b16 %v3713
        %v3802 = vunpack.c.h.b16 %v3713
        %v3803 = vunpack.c.l.b16 %v3714
        %v3804 = vunpack.c.l.b16 %v3715
        %v3805 = vunpack.c.h.b16 %v3715
        %v3806 = vunpack.c.l.b16 %v3716
        %v3807 = vunpack.c.l.b16 %v3717
        %v3808 = vunpack.c.h.b16 %v3717
        %v3809 = vunpack.c.l.b16 %v3718
        %v3810 = vunpack.c.l.b16 %v3719
        %v3811 = vunpack.c.h.b16 %v3719
        %v3812 = vunpack.c.l.b16 %v3720
        %v3813 = vpack.c.b16 %v3768, %v3765
        %v3814 = vpack.c.b16 %v3769, %v3766
        %v3815 = vpack.c.b16 %v3770, %v3767
        %v3816 = vpack.c.b16 %v3774, %v3771
        %v3817 = vpack.c.b16 %v3775, %v3772
        %v3818 = vpack.c.b16 %v3776, %v3773
        %v3819 = vpack.c.b16 %v3780, %v3777
        %v3820 = vpack.c.b16 %v3781, %v3778
        %v3821 = vpack.c.b16 %v3782, %v3779
        %v3822 = vpack.c.b16 %v3786, %v3783
        %v3823 = vpack.c.b16 %v3787, %v3784
        %v3824 = vpack.c.b16 %v3788, %v3785
        %v3825 = vpack.c.b16 %v3792, %v3789
        %v3826 = vpack.c.b16 %v3793, %v3790
        %v3827 = vpack.c.b16 %v3794, %v3791
        %v3828 = vpack.c.b16 %v3798, %v3795
        %v3829 = vpack.c.b16 %v3799, %v3796
        %v3830 = vpack.c.b16 %v3800, %v3797
        %v3831 = vpack.c.b16 %v3804, %v3801
        %v3832 = vpack.c.b16 %v3805, %v3802
        %v3833 = vpack.c.b16 %v3806, %v3803
        %v3834 = vpack.c.b16 %v3810, %v3807
        %v3835 = vpack.c.b16 %v3811, %v3808
        %v3836 = vpack.c.b16 %v3812, %v3809
        %3861 = vmatprep.subr.bf16.mxu0 %v3814
        %3862 = vmatpush1.bf16.msra.mxu0 %v3813
        %3863 = vmatprep.subr.bf16.mxu0 %v3817
        %3864 = vmatpush1.bf16.msra.mxu0 %v3816
        %3865 = vmatprep.subr.bf16.mxu0 %v3820
        %3866 = vmatpush1.bf16.msra.mxu0 %v3819
        %3867 = vmatprep.subr.bf16.mxu0 %v3823
        %3868 = vmatpush1.bf16.msra.mxu0 %v3822
        %3869 = vmatprep.subr.bf16.mxu0 %v3826
        %3870 = vmatpush1.bf16.msra.mxu0 %v3825
        %3871 = vmatprep.subr.bf16.mxu0 %v3829
        %3872 = vmatpush1.bf16.msra.mxu0 %v3828
        %3873 = vmatprep.subr.bf16.mxu0 %v3832
        %3874 = vmatpush1.bf16.msra.mxu0 %v3831
        %3875 = vmatprep.subr.bf16.mxu0 %v3835
        %3876 = vmatpush1.bf16.msra.mxu0 %v3834
        %3877 = vmatprep.subr.bf16.mxu0 0
        %3878 = vmatpush1.bf16.msra.mxu0 0
        %3879 = vmatprep.subr.bf16.mxu0 0
        %3880 = vmatpush1.bf16.msra.mxu0 0
        %3881 = vmatprep.subr.bf16.mxu0 0
        %3882 = vmatpush1.bf16.msra.mxu0 0
        %3883 = vmatprep.subr.bf16.mxu0 0
        %3884 = vmatpush1.bf16.msra.mxu0 0
        %3885 = vmatprep.subr.bf16.mxu0 0
        %3886 = vmatpush1.bf16.msra.mxu0 0
        %3887 = vmatprep.subr.bf16.mxu0 0
        %3888 = vmatpush1.bf16.msra.mxu0 0
        %3889 = vmatprep.subr.bf16.mxu0 0
        %3890 = vmatpush1.bf16.msra.mxu0 0
        %3891 = vmatprep.subr.bf16.mxu0 0
        %3892 = vmatpush1.bf16.msra.mxu0 0
        %3893 = vmatprep.mubr.bf16.mxu0 0
        %3894 = vmatmul.mubr.bf16.gmra.mrb[0].mxu0 %v3688
        %v3895 = vpop.f32.mrb[0].mxu0
        %v3896 = vadd.f32 %v3724, %v3895
        %v3897 = vpop.f32.mrb[0].mxu0
        %v3898 = vadd.f32 %v3728, %v3897
        %v3899 = vpop.f32.mrb[0].mxu0
        %v3900 = vadd.f32 %v3724, %v3899
        %v3901 = vpop.f32.mrb[0].mxu0
        %v3902 = vadd.f32 %v3728, %v3901
        %3903 = vdwg.mxu0
        %3904 = vmatprep.subr.bf16.mxu0 0
        %3905 = vmatpush1.bf16.msra.mxu0 %v3815
        %3906 = vmatprep.subr.bf16.mxu0 0
        %3907 = vmatpush1.bf16.msra.mxu0 %v3818
        %3908 = vmatprep.subr.bf16.mxu0 0
        %3909 = vmatpush1.bf16.msra.mxu0 %v3821
        %3910 = vmatprep.subr.bf16.mxu0 0
        %3911 = vmatpush1.bf16.msra.mxu0 %v3824
        %3912 = vmatprep.subr.bf16.mxu0 0
        %3913 = vmatpush1.bf16.msra.mxu0 %v3827
        %3914 = vmatprep.subr.bf16.mxu0 0
        %3915 = vmatpush1.bf16.msra.mxu0 %v3830
        %3916 = vmatprep.subr.bf16.mxu0 0
        %3917 = vmatpush1.bf16.msra.mxu0 %v3833
        %3918 = vmatprep.subr.bf16.mxu0 0
        %3919 = vmatpush1.bf16.msra.mxu0 %v3836
        %3920 = vmatprep.subr.bf16.mxu0 0
        %3921 = vmatpush1.bf16.msra.mxu0 0
        %3922 = vmatprep.subr.bf16.mxu0 0
        %3923 = vmatpush1.bf16.msra.mxu0 0
        %3924 = vmatprep.subr.bf16.mxu0 0
        %3925 = vmatpush1.bf16.msra.mxu0 0
        %3926 = vmatprep.subr.bf16.mxu0 0
        %3927 = vmatpush1.bf16.msra.mxu0 0
        %3928 = vmatprep.subr.bf16.mxu0 0
        %3929 = vmatpush1.bf16.msra.mxu0 0
        %3930 = vmatprep.subr.bf16.mxu0 0
        %3931 = vmatpush1.bf16.msra.mxu0 0
        %3932 = vmatprep.subr.bf16.mxu0 0
        %3933 = vmatpush1.bf16.msra.mxu0 0
        %3934 = vmatprep.subr.bf16.mxu0 0
        %3935 = vmatpush1.bf16.msra.mxu0 0
        %3936 = vmatprep.mubr.bf16.mxu0 0
        %3937 = vmatmul.mubr.bf16.gmra.mrb[0].mxu0 %v3688
        %v3938 = vpop.f32.mrb[0].mxu0
        %v3939 = vadd.f32 %v3732, %v3938
        %v3940 = vpop.f32.mrb[0].mxu0
        %v3941 = vpop.f32.mrb[0].mxu0
        %v3942 = vadd.f32 %v3732, %v3941
        %v3943 = vpop.f32.mrb[0].mxu0
        %3944 = vdwg.mxu0
        %v3945 = vadd.f32 %v3639, %v3896
        %v3946 = vadd.f32 %v3643, %v3900
        %v3947 = vxor.u32 %v3945, 2147483648
        %v3948 = vxor.u32 %v3946, 2147483648
        %v3949 = vmul.f32 %v3947, 1.442695
        %v3950 = vpow.pop %v3949
        %v3951 = vmul.f32 %v3948, 1.442695
        %v3952 = vpow.pop %v3951
        %v3953 = vadd.f32 %v3950, 1.0
        %v3954 = vadd.f32 %v3952, 1.0
        %v3955 = vrcp.pop %v3953
        %v3956 = vmul.f32 1.0, %v3955
        %v3957 = vrcp.pop %v3954
        %v3958 = vmul.f32 1.0, %v3957
        %v3959 = vadd.f32 %v3641, %v3898
        %v3960 = vadd.f32 %v3645, %v3902
        %v3961 = vxor.u32 %v3959, 2147483648
        %v3962 = vxor.u32 %v3960, 2147483648
        %v3963 = vmul.f32 %v3961, 1.442695
        %v3964 = vpow.pop %v3963
        %v3965 = vmul.f32 %v3962, 1.442695
        %v3966 = vpow.pop %v3965
        %v3967 = vadd.f32 %v3964, 1.0
        %v3968 = vadd.f32 %v3966, 1.0
        %v3969 = vrcp.pop %v3967
        %v3970 = vmul.f32 1.0, %v3969
        %v3971 = vrcp.pop %v3968
        %v3972 = vmul.f32 1.0, %v3971
        %v3973 = vmul.f32 %v3956, %v3939
        %v3974 = vmul.f32 %v3958, %v3942
        %v3975 = vadd.f32 %v3682, %v3973
        %v3976 = vadd.f32 %v3685, %v3974
        %v3977 = vtanh.pop %v3975
        %v3978 = vtanh.pop %v3976
        %v3979 = vsub.f32 1.0, %v3970
        %v3980 = vsub.f32 1.0, %v3972
        %v3981 = vmul.f32 %v3979, %v3977
        %v3982 = vmul.f32 %v3980, %v3978
        %v3983 = vmul.f32 %v3970, %v3506
        %v3984 = vmul.f32 %v3972, %v3507
        %v3985 = vadd.f32 %v3981, %v3983
        %v3986 = vadd.f32 %v3982, %v3984
        %3987 = vst [vmem:[%s532] sm:$0xff] %v3985
        %3988 = vst [vmem:[%s532 + $0x8] sm:$0xff] %v3986
        %s3989 = scalar_lea.vmem %s475, 16 [#allocation2]
        %v3990 = vld [vmem:[%s3989] sm:$0xff]
        %v3991 = vld [vmem:[%s3989 + $0x8] sm:$0xff]
        %v3992 = vpack.c.bf16 %v3986, %v3985
        %v3993 = vld [vmem:[%s7] sm:$0xff]
        %v3994 = vld [vmem:[%s7 + $0x8] sm:$0xf]
        %v3995 = vld [vmem:[%s7 + $0xc] sm:$0xff]
        %v3996 = vld [vmem:[%s7 + $0x14] sm:$0xf]
        %v3997 = vld [vmem:[%s7 + $0x18] sm:$0xff]
        %v3998 = vld [vmem:[%s7 + $0x20] sm:$0xf]
        %v3999 = vld [vmem:[%s7 + $0x24] sm:$0xff]
        %v4000 = vld [vmem:[%s7 + $0x2c] sm:$0xf]
        %v4001 = vld [vmem:[%s7 + $0x30] sm:$0xff]
        %v4002 = vld [vmem:[%s7 + $0x38] sm:$0xf]
        %v4003 = vld [vmem:[%s7 + $0x3c] sm:$0xff]
        %v4004 = vld [vmem:[%s7 + $0x44] sm:$0xf]
        %v4005 = vld [vmem:[%s7 + $0x48] sm:$0xff]
        %v4006 = vld [vmem:[%s7 + $0x50] sm:$0xf]
        %v4007 = vld [vmem:[%s7 + $0x54] sm:$0xff]
        %v4008 = vld [vmem:[%s7 + $0x5c] sm:$0xf]
        %v4009 = vld [vmem:[%s7 + $0x60] sm:$0xff]
        %v4010 = vld [vmem:[%s7 + $0x68] sm:$0xf]
        %v4011 = vld [vmem:[%s7 + $0x6c] sm:$0xff]
        %v4012 = vld [vmem:[%s7 + $0x74] sm:$0xf]
        %v4013 = vld [vmem:[%s7 + $0x78] sm:$0xff]
        %v4014 = vld [vmem:[%s7 + $0x80] sm:$0xf]
        %v4015 = vld [vmem:[%s7 + $0x84] sm:$0xff]
        %v4016 = vld [vmem:[%s7 + $0x8c] sm:$0xf]
        %v4017 = vld [vmem:[%s7 + $0x90] sm:$0xff]
        %v4018 = vld [vmem:[%s7 + $0x98] sm:$0xf]
        %v4019 = vld [vmem:[%s7 + $0x9c] sm:$0xff]
        %v4020 = vld [vmem:[%s7 + $0xa4] sm:$0xf]
        %v4021 = vld [vmem:[%s7 + $0xa8] sm:$0xff]
        %v4022 = vld [vmem:[%s7 + $0xb0] sm:$0xf]
        %v4023 = vld [vmem:[%s7 + $0xb4] sm:$0xff]
        %v4024 = vld [vmem:[%s7 + $0xbc] sm:$0xf]
        %v4025 = vlaneseq
        %v4026 = vshrl.u32 %v4025, 7
        %v4027 = vsub.s32 5, %v4026
        %v4028 = vrot.slane %v551, %v4027
        %v4029 = vlaneseq
        %v4030 = vshrl.u32 %v4029, 7
        %v4031 = vsub.s32 5, %v4030
        %v4032 = vrot.slane %v552, %v4031
        %v4033 = vlaneseq
        %v4034 = vshrl.u32 %v4033, 7
        %v4035 = vsub.s32 5, %v4034
        %v4036 = vrot.slane %v553, %v4035
        %v4069 = vunpack.c.l.b16 %v3993
        %v4070 = vunpack.c.h.b16 %v3993
        %v4071 = vunpack.c.l.b16 %v3994
        %v4072 = vunpack.c.l.b16 %v3995
        %v4073 = vunpack.c.h.b16 %v3995
        %v4074 = vunpack.c.l.b16 %v3996
        %v4075 = vunpack.c.l.b16 %v3997
        %v4076 = vunpack.c.h.b16 %v3997
        %v4077 = vunpack.c.l.b16 %v3998
        %v4078 = vunpack.c.l.b16 %v3999
        %v4079 = vunpack.c.h.b16 %v3999
        %v4080 = vunpack.c.l.b16 %v4000
        %v4081 = vunpack.c.l.b16 %v4001
        %v4082 = vunpack.c.h.b16 %v4001
        %v4083 = vunpack.c.l.b16 %v4002
        %v4084 = vunpack.c.l.b16 %v4003
        %v4085 = vunpack.c.h.b16 %v4003
        %v4086 = vunpack.c.l.b16 %v4004
        %v4087 = vunpack.c.l.b16 %v4005
        %v4088 = vunpack.c.h.b16 %v4005
        %v4089 = vunpack.c.l.b16 %v4006
        %v4090 = vunpack.c.l.b16 %v4007
        %v4091 = vunpack.c.h.b16 %v4007
        %v4092 = vunpack.c.l.b16 %v4008
        %v4093 = vunpack.c.l.b16 %v4009
        %v4094 = vunpack.c.h.b16 %v4009
        %v4095 = vunpack.c.l.b16 %v4010
        %v4096 = vunpack.c.l.b16 %v4011
        %v4097 = vunpack.c.h.b16 %v4011
        %v4098 = vunpack.c.l.b16 %v4012
        %v4099 = vunpack.c.l.b16 %v4013
        %v4100 = vunpack.c.h.b16 %v4013
        %v4101 = vunpack.c.l.b16 %v4014
        %v4102 = vunpack.c.l.b16 %v4015
        %v4103 = vunpack.c.h.b16 %v4015
        %v4104 = vunpack.c.l.b16 %v4016
        %v4105 = vunpack.c.l.b16 %v4017
        %v4106 = vunpack.c.h.b16 %v4017
        %v4107 = vunpack.c.l.b16 %v4018
        %v4108 = vunpack.c.l.b16 %v4019
        %v4109 = vunpack.c.h.b16 %v4019
        %v4110 = vunpack.c.l.b16 %v4020
        %v4111 = vunpack.c.l.b16 %v4021
        %v4112 = vunpack.c.h.b16 %v4021
        %v4113 = vunpack.c.l.b16 %v4022
        %v4114 = vunpack.c.l.b16 %v4023
        %v4115 = vunpack.c.h.b16 %v4023
        %v4116 = vunpack.c.l.b16 %v4024
        %v4117 = vpack.c.b16 %v4072, %v4069
        %v4118 = vpack.c.b16 %v4073, %v4070
        %v4119 = vpack.c.b16 %v4074, %v4071
        %v4120 = vpack.c.b16 %v4078, %v4075
        %v4121 = vpack.c.b16 %v4079, %v4076
        %v4122 = vpack.c.b16 %v4080, %v4077
        %v4123 = vpack.c.b16 %v4084, %v4081
        %v4124 = vpack.c.b16 %v4085, %v4082
        %v4125 = vpack.c.b16 %v4086, %v4083
        %v4126 = vpack.c.b16 %v4090, %v4087
        %v4127 = vpack.c.b16 %v4091, %v4088
        %v4128 = vpack.c.b16 %v4092, %v4089
        %v4129 = vpack.c.b16 %v4096, %v4093
        %v4130 = vpack.c.b16 %v4097, %v4094
        %v4131 = vpack.c.b16 %v4098, %v4095
        %v4132 = vpack.c.b16 %v4102, %v4099
        %v4133 = vpack.c.b16 %v4103, %v4100
        %v4134 = vpack.c.b16 %v4104, %v4101
        %v4135 = vpack.c.b16 %v4108, %v4105
        %v4136 = vpack.c.b16 %v4109, %v4106
        %v4137 = vpack.c.b16 %v4110, %v4107
        %v4138 = vpack.c.b16 %v4114, %v4111
        %v4139 = vpack.c.b16 %v4115, %v4112
        %v4140 = vpack.c.b16 %v4116, %v4113
        %4165 = vmatprep.subr.bf16.mxu0 %v4118
        %4166 = vmatpush1.bf16.msra.mxu0 %v4117
        %4167 = vmatprep.subr.bf16.mxu0 %v4121
        %4168 = vmatpush1.bf16.msra.mxu0 %v4120
        %4169 = vmatprep.subr.bf16.mxu0 %v4124
        %4170 = vmatpush1.bf16.msra.mxu0 %v4123
        %4171 = vmatprep.subr.bf16.mxu0 %v4127
        %4172 = vmatpush1.bf16.msra.mxu0 %v4126
        %4173 = vmatprep.subr.bf16.mxu0 %v4130
        %4174 = vmatpush1.bf16.msra.mxu0 %v4129
        %4175 = vmatprep.subr.bf16.mxu0 %v4133
        %4176 = vmatpush1.bf16.msra.mxu0 %v4132
        %4177 = vmatprep.subr.bf16.mxu0 %v4136
        %4178 = vmatpush1.bf16.msra.mxu0 %v4135
        %4179 = vmatprep.subr.bf16.mxu0 %v4139
        %4180 = vmatpush1.bf16.msra.mxu0 %v4138
        %4181 = vmatprep.subr.bf16.mxu0 0
        %4182 = vmatpush1.bf16.msra.mxu0 0
        %4183 = vmatprep.subr.bf16.mxu0 0
        %4184 = vmatpush1.bf16.msra.mxu0 0
        %4185 = vmatprep.subr.bf16.mxu0 0
        %4186 = vmatpush1.bf16.msra.mxu0 0
        %4187 = vmatprep.subr.bf16.mxu0 0
        %4188 = vmatpush1.bf16.msra.mxu0 0
        %4189 = vmatprep.subr.bf16.mxu0 0
        %4190 = vmatpush1.bf16.msra.mxu0 0
        %4191 = vmatprep.subr.bf16.mxu0 0
        %4192 = vmatpush1.bf16.msra.mxu0 0
        %4193 = vmatprep.subr.bf16.mxu0 0
        %4194 = vmatpush1.bf16.msra.mxu0 0
        %4195 = vmatprep.subr.bf16.mxu0 0
        %4196 = vmatpush1.bf16.msra.mxu0 0
        %4197 = vmatprep.mubr.bf16.mxu0 0
        %4198 = vmatmul.mubr.bf16.gmra.mrb[0].mxu0 %v3992
        %v4199 = vpop.f32.mrb[0].mxu0
        %v4200 = vadd.f32 %v4028, %v4199
        %v4201 = vpop.f32.mrb[0].mxu0
        %v4202 = vadd.f32 %v4032, %v4201
        %v4203 = vpop.f32.mrb[0].mxu0
        %v4204 = vadd.f32 %v4028, %v4203
        %v4205 = vpop.f32.mrb[0].mxu0
        %v4206 = vadd.f32 %v4032, %v4205
        %4207 = vdwg.mxu0
        %4208 = vmatprep.subr.bf16.mxu0 0
        %4209 = vmatpush1.bf16.msra.mxu0 %v4119
        %4210 = vmatprep.subr.bf16.mxu0 0
        %4211 = vmatpush1.bf16.msra.mxu0 %v4122
        %4212 = vmatprep.subr.bf16.mxu0 0
        %4213 = vmatpush1.bf16.msra.mxu0 %v4125
        %4214 = vmatprep.subr.bf16.mxu0 0
        %4215 = vmatpush1.bf16.msra.mxu0 %v4128
        %4216 = vmatprep.subr.bf16.mxu0 0
        %4217 = vmatpush1.bf16.msra.mxu0 %v4131
        %4218 = vmatprep.subr.bf16.mxu0 0
        %4219 = vmatpush1.bf16.msra.mxu0 %v4134
        %4220 = vmatprep.subr.bf16.mxu0 0
        %4221 = vmatpush1.bf16.msra.mxu0 %v4137
        %4222 = vmatprep.subr.bf16.mxu0 0
        %4223 = vmatpush1.bf16.msra.mxu0 %v4140
        %4224 = vmatprep.subr.bf16.mxu0 0
        %4225 = vmatpush1.bf16.msra.mxu0 0
        %4226 = vmatprep.subr.bf16.mxu0 0
        %4227 = vmatpush1.bf16.msra.mxu0 0
        %4228 = vmatprep.subr.bf16.mxu0 0
        %4229 = vmatpush1.bf16.msra.mxu0 0
        %4230 = vmatprep.subr.bf16.mxu0 0
        %4231 = vmatpush1.bf16.msra.mxu0 0
        %4232 = vmatprep.subr.bf16.mxu0 0
        %4233 = vmatpush1.bf16.msra.mxu0 0
        %4234 = vmatprep.subr.bf16.mxu0 0
        %4235 = vmatpush1.bf16.msra.mxu0 0
        %4236 = vmatprep.subr.bf16.mxu0 0
        %4237 = vmatpush1.bf16.msra.mxu0 0
        %4238 = vmatprep.subr.bf16.mxu0 0
        %4239 = vmatpush1.bf16.msra.mxu0 0
        %4240 = vmatprep.mubr.bf16.mxu0 0
        %4241 = vmatmul.mubr.bf16.gmra.mrb[0].mxu0 %v3992
        %v4242 = vpop.f32.mrb[0].mxu0
        %v4243 = vadd.f32 %v4036, %v4242
        %v4244 = vpop.f32.mrb[0].mxu0
        %v4245 = vpop.f32.mrb[0].mxu0
        %v4246 = vadd.f32 %v4036, %v4245
        %v4247 = vpop.f32.mrb[0].mxu0
        %4248 = vdwg.mxu0
        %v4249 = vpack.c.bf16 %v3991, %v3990
        %v4250 = vld [vmem:[%s8] sm:$0xff]
        %v4251 = vld [vmem:[%s8 + $0x8] sm:$0xf]
        %v4252 = vld [vmem:[%s8 + $0xc] sm:$0xff]
        %v4253 = vld [vmem:[%s8 + $0x14] sm:$0xf]
        %v4254 = vld [vmem:[%s8 + $0x18] sm:$0xff]
        %v4255 = vld [vmem:[%s8 + $0x20] sm:$0xf]
        %v4256 = vld [vmem:[%s8 + $0x24] sm:$0xff]
        %v4257 = vld [vmem:[%s8 + $0x2c] sm:$0xf]
        %v4258 = vld [vmem:[%s8 + $0x30] sm:$0xff]
        %v4259 = vld [vmem:[%s8 + $0x38] sm:$0xf]
        %v4260 = vld [vmem:[%s8 + $0x3c] sm:$0xff]
        %v4261 = vld [vmem:[%s8 + $0x44] sm:$0xf]
        %v4262 = vld [vmem:[%s8 + $0x48] sm:$0xff]
        %v4263 = vld [vmem:[%s8 + $0x50] sm:$0xf]
        %v4264 = vld [vmem:[%s8 + $0x54] sm:$0xff]
        %v4265 = vld [vmem:[%s8 + $0x5c] sm:$0xf]
        %v4266 = vld [vmem:[%s8 + $0x60] sm:$0xff]
        %v4267 = vld [vmem:[%s8 + $0x68] sm:$0xf]
        %v4268 = vld [vmem:[%s8 + $0x6c] sm:$0xff]
        %v4269 = vld [vmem:[%s8 + $0x74] sm:$0xf]
        %v4270 = vld [vmem:[%s8 + $0x78] sm:$0xff]
        %v4271 = vld [vmem:[%s8 + $0x80] sm:$0xf]
        %v4272 = vld [vmem:[%s8 + $0x84] sm:$0xff]
        %v4273 = vld [vmem:[%s8 + $0x8c] sm:$0xf]
        %v4274 = vld [vmem:[%s8 + $0x90] sm:$0xff]
        %v4275 = vld [vmem:[%s8 + $0x98] sm:$0xf]
        %v4276 = vld [vmem:[%s8 + $0x9c] sm:$0xff]
        %v4277 = vld [vmem:[%s8 + $0xa4] sm:$0xf]
        %v4278 = vld [vmem:[%s8 + $0xa8] sm:$0xff]
        %v4279 = vld [vmem:[%s8 + $0xb0] sm:$0xf]
        %v4280 = vld [vmem:[%s8 + $0xb4] sm:$0xff]
        %v4281 = vld [vmem:[%s8 + $0xbc] sm:$0xf]
        %v4282 = vlaneseq
        %v4283 = vshrl.u32 %v4282, 7
        %v4284 = vsub.s32 6, %v4283
        %v4285 = vrot.slane %v551, %v4284
        %v4286 = vlaneseq
        %v4287 = vshrl.u32 %v4286, 7
        %v4288 = vsub.s32 6, %v4287
        %v4289 = vrot.slane %v552, %v4288
        %v4290 = vlaneseq
        %v4291 = vshrl.u32 %v4290, 7
        %v4292 = vsub.s32 6, %v4291
        %v4293 = vrot.slane %v553, %v4292
        %v4326 = vunpack.c.l.b16 %v4250
        %v4327 = vunpack.c.h.b16 %v4250
        %v4328 = vunpack.c.l.b16 %v4251
        %v4329 = vunpack.c.l.b16 %v4252
        %v4330 = vunpack.c.h.b16 %v4252
        %v4331 = vunpack.c.l.b16 %v4253
        %v4332 = vunpack.c.l.b16 %v4254
        %v4333 = vunpack.c.h.b16 %v4254
        %v4334 = vunpack.c.l.b16 %v4255
        %v4335 = vunpack.c.l.b16 %v4256
        %v4336 = vunpack.c.h.b16 %v4256
        %v4337 = vunpack.c.l.b16 %v4257
        %v4338 = vunpack.c.l.b16 %v4258
        %v4339 = vunpack.c.h.b16 %v4258
        %v4340 = vunpack.c.l.b16 %v4259
        %v4341 = vunpack.c.l.b16 %v4260
        %v4342 = vunpack.c.h.b16 %v4260
        %v4343 = vunpack.c.l.b16 %v4261
        %v4344 = vunpack.c.l.b16 %v4262
        %v4345 = vunpack.c.h.b16 %v4262
        %v4346 = vunpack.c.l.b16 %v4263
        %v4347 = vunpack.c.l.b16 %v4264
        %v4348 = vunpack.c.h.b16 %v4264
        %v4349 = vunpack.c.l.b16 %v4265
        %v4350 = vunpack.c.l.b16 %v4266
        %v4351 = vunpack.c.h.b16 %v4266
        %v4352 = vunpack.c.l.b16 %v4267
        %v4353 = vunpack.c.l.b16 %v4268
        %v4354 = vunpack.c.h.b16 %v4268
        %v4355 = vunpack.c.l.b16 %v4269
        %v4356 = vunpack.c.l.b16 %v4270
        %v4357 = vunpack.c.h.b16 %v4270
        %v4358 = vunpack.c.l.b16 %v4271
        %v4359 = vunpack.c.l.b16 %v4272
        %v4360 = vunpack.c.h.b16 %v4272
        %v4361 = vunpack.c.l.b16 %v4273
        %v4362 = vunpack.c.l.b16 %v4274
        %v4363 = vunpack.c.h.b16 %v4274
        %v4364 = vunpack.c.l.b16 %v4275
        %v4365 = vunpack.c.l.b16 %v4276
        %v4366 = vunpack.c.h.b16 %v4276
        %v4367 = vunpack.c.l.b16 %v4277
        %v4368 = vunpack.c.l.b16 %v4278
        %v4369 = vunpack.c.h.b16 %v4278
        %v4370 = vunpack.c.l.b16 %v4279
        %v4371 = vunpack.c.l.b16 %v4280
        %v4372 = vunpack.c.h.b16 %v4280
        %v4373 = vunpack.c.l.b16 %v4281
        %v4374 = vpack.c.b16 %v4329, %v4326
        %v4375 = vpack.c.b16 %v4330, %v4327
        %v4376 = vpack.c.b16 %v4331, %v4328
        %v4377 = vpack.c.b16 %v4335, %v4332
        %v4378 = vpack.c.b16 %v4336, %v4333
        %v4379 = vpack.c.b16 %v4337, %v4334
        %v4380 = vpack.c.b16 %v4341, %v4338
        %v4381 = vpack.c.b16 %v4342, %v4339
        %v4382 = vpack.c.b16 %v4343, %v4340
        %v4383 = vpack.c.b16 %v4347, %v4344
        %v4384 = vpack.c.b16 %v4348, %v4345
        %v4385 = vpack.c.b16 %v4349, %v4346
        %v4386 = vpack.c.b16 %v4353, %v4350
        %v4387 = vpack.c.b16 %v4354, %v4351
        %v4388 = vpack.c.b16 %v4355, %v4352
        %v4389 = vpack.c.b16 %v4359, %v4356
        %v4390 = vpack.c.b16 %v4360, %v4357
        %v4391 = vpack.c.b16 %v4361, %v4358
        %v4392 = vpack.c.b16 %v4365, %v4362
        %v4393 = vpack.c.b16 %v4366, %v4363
        %v4394 = vpack.c.b16 %v4367, %v4364
        %v4395 = vpack.c.b16 %v4371, %v4368
        %v4396 = vpack.c.b16 %v4372, %v4369
        %v4397 = vpack.c.b16 %v4373, %v4370
        %4422 = vmatprep.subr.bf16.mxu0 %v4375
        %4423 = vmatpush1.bf16.msra.mxu0 %v4374
        %4424 = vmatprep.subr.bf16.mxu0 %v4378
        %4425 = vmatpush1.bf16.msra.mxu0 %v4377
        %4426 = vmatprep.subr.bf16.mxu0 %v4381
        %4427 = vmatpush1.bf16.msra.mxu0 %v4380
        %4428 = vmatprep.subr.bf16.mxu0 %v4384
        %4429 = vmatpush1.bf16.msra.mxu0 %v4383
        %4430 = vmatprep.subr.bf16.mxu0 %v4387
        %4431 = vmatpush1.bf16.msra.mxu0 %v4386
        %4432 = vmatprep.subr.bf16.mxu0 %v4390
        %4433 = vmatpush1.bf16.msra.mxu0 %v4389
        %4434 = vmatprep.subr.bf16.mxu0 %v4393
        %4435 = vmatpush1.bf16.msra.mxu0 %v4392
        %4436 = vmatprep.subr.bf16.mxu0 %v4396
        %4437 = vmatpush1.bf16.msra.mxu0 %v4395
        %4438 = vmatprep.subr.bf16.mxu0 0
        %4439 = vmatpush1.bf16.msra.mxu0 0
        %4440 = vmatprep.subr.bf16.mxu0 0
        %4441 = vmatpush1.bf16.msra.mxu0 0
        %4442 = vmatprep.subr.bf16.mxu0 0
        %4443 = vmatpush1.bf16.msra.mxu0 0
        %4444 = vmatprep.subr.bf16.mxu0 0
        %4445 = vmatpush1.bf16.msra.mxu0 0
        %4446 = vmatprep.subr.bf16.mxu0 0
        %4447 = vmatpush1.bf16.msra.mxu0 0
        %4448 = vmatprep.subr.bf16.mxu0 0
        %4449 = vmatpush1.bf16.msra.mxu0 0
        %4450 = vmatprep.subr.bf16.mxu0 0
        %4451 = vmatpush1.bf16.msra.mxu0 0
        %4452 = vmatprep.subr.bf16.mxu0 0
        %4453 = vmatpush1.bf16.msra.mxu0 0
        %4454 = vmatprep.mubr.bf16.mxu0 0
        %4455 = vmatmul.mubr.bf16.gmra.mrb[0].mxu0 %v4249
        %v4456 = vpop.f32.mrb[0].mxu0
        %v4457 = vadd.f32 %v4285, %v4456
        %v4458 = vpop.f32.mrb[0].mxu0
        %v4459 = vadd.f32 %v4289, %v4458
        %v4460 = vpop.f32.mrb[0].mxu0
        %v4461 = vadd.f32 %v4285, %v4460
        %v4462 = vpop.f32.mrb[0].mxu0
        %v4463 = vadd.f32 %v4289, %v4462
        %4464 = vdwg.mxu0
        %4465 = vmatprep.subr.bf16.mxu0 0
        %4466 = vmatpush1.bf16.msra.mxu0 %v4376
        %4467 = vmatprep.subr.bf16.mxu0 0
        %4468 = vmatpush1.bf16.msra.mxu0 %v4379
        %4469 = vmatprep.subr.bf16.mxu0 0
        %4470 = vmatpush1.bf16.msra.mxu0 %v4382
        %4471 = vmatprep.subr.bf16.mxu0 0
        %4472 = vmatpush1.bf16.msra.mxu0 %v4385
        %4473 = vmatprep.subr.bf16.mxu0 0
        %4474 = vmatpush1.bf16.msra.mxu0 %v4388
        %4475 = vmatprep.subr.bf16.mxu0 0
        %4476 = vmatpush1.bf16.msra.mxu0 %v4391
        %4477 = vmatprep.subr.bf16.mxu0 0
        %4478 = vmatpush1.bf16.msra.mxu0 %v4394
        %4479 = vmatprep.subr.bf16.mxu0 0
        %4480 = vmatpush1.bf16.msra.mxu0 %v4397
        %4481 = vmatprep.subr.bf16.mxu0 0
        %4482 = vmatpush1.bf16.msra.mxu0 0
        %4483 = vmatprep.subr.bf16.mxu0 0
        %4484 = vmatpush1.bf16.msra.mxu0 0
        %4485 = vmatprep.subr.bf16.mxu0 0
        %4486 = vmatpush1.bf16.msra.mxu0 0
        %4487 = vmatprep.subr.bf16.mxu0 0
        %4488 = vmatpush1.bf16.msra.mxu0 0
        %4489 = vmatprep.subr.bf16.mxu0 0
        %4490 = vmatpush1.bf16.msra.mxu0 0
        %4491 = vmatprep.subr.bf16.mxu0 0
        %4492 = vmatpush1.bf16.msra.mxu0 0
        %4493 = vmatprep.subr.bf16.mxu0 0
        %4494 = vmatpush1.bf16.msra.mxu0 0
        %4495 = vmatprep.subr.bf16.mxu0 0
        %4496 = vmatpush1.bf16.msra.mxu0 0
        %4497 = vmatprep.mubr.bf16.mxu0 0
        %4498 = vmatmul.mubr.bf16.gmra.mrb[0].mxu0 %v4249
        %v4499 = vpop.f32.mrb[0].mxu0
        %v4500 = vadd.f32 %v4293, %v4499
        %v4501 = vpop.f32.mrb[0].mxu0
        %v4502 = vpop.f32.mrb[0].mxu0
        %v4503 = vadd.f32 %v4293, %v4502
        %v4504 = vpop.f32.mrb[0].mxu0
        %4505 = vdwg.mxu0
        %v4506 = vadd.f32 %v4200, %v4457
        %v4507 = vadd.f32 %v4204, %v4461
        %v4508 = vxor.u32 %v4506, 2147483648
        %v4509 = vxor.u32 %v4507, 2147483648
        %v4510 = vmul.f32 %v4508, 1.442695
        %v4511 = vpow.pop %v4510
        %v4512 = vmul.f32 %v4509, 1.442695
        %v4513 = vpow.pop %v4512
        %v4514 = vadd.f32 %v4511, 1.0
        %v4515 = vadd.f32 %v4513, 1.0
        %v4516 = vrcp.pop %v4514
        %v4517 = vmul.f32 1.0, %v4516
        %v4518 = vrcp.pop %v4515
        %v4519 = vmul.f32 1.0, %v4518
        %v4520 = vadd.f32 %v4202, %v4459
        %v4521 = vadd.f32 %v4206, %v4463
        %v4522 = vxor.u32 %v4520, 2147483648
        %v4523 = vxor.u32 %v4521, 2147483648
        %v4524 = vmul.f32 %v4522, 1.442695
        %v4525 = vpow.pop %v4524
        %v4526 = vmul.f32 %v4523, 1.442695
        %v4527 = vpow.pop %v4526
        %v4528 = vadd.f32 %v4525, 1.0
        %v4529 = vadd.f32 %v4527, 1.0
        %v4530 = vrcp.pop %v4528
        %v4531 = vmul.f32 1.0, %v4530
        %v4532 = vrcp.pop %v4529
        %v4533 = vmul.f32 1.0, %v4532
        %v4534 = vmul.f32 %v4517, %v4500
        %v4535 = vmul.f32 %v4519, %v4503
        %v4536 = vadd.f32 %v4243, %v4534
        %v4537 = vadd.f32 %v4246, %v4535
        %v4538 = vtanh.pop %v4536
        %v4539 = vtanh.pop %v4537
        %v4540 = vsub.f32 1.0, %v4531
        %v4541 = vsub.f32 1.0, %v4533
        %v4542 = vmul.f32 %v4540, %v4538
        %v4543 = vmul.f32 %v4541, %v4539
        %v4544 = vmul.f32 %v4531, %v3990
        %v4545 = vmul.f32 %v4533, %v3991
        %v4546 = vadd.f32 %v4542, %v4544
        %v4547 = vadd.f32 %v4543, %v4545
        %s4548 = scalar_lea.vmem %s532, 16 [#allocation5]
        %4549 = vst [vmem:[%s4548] sm:$0xff] %v4546
        %4550 = vst [vmem:[%s4548 + $0x8] sm:$0xff] %v4547
        %v4551 = vpack.c.bf16 %v4547, %v4546
        %v4552 = vld [vmem:[%s10] sm:$0xf]
        %v4553 = vld [vmem:[%s10 + $0x4] sm:$0xf]
        %v4554 = vld [vmem:[%s10 + $0x8] sm:$0xf]
        %v4555 = vld [vmem:[%s10 + $0xc] sm:$0xf]
        %v4556 = vld [vmem:[%s10 + $0x10] sm:$0xf]
        %v4557 = vld [vmem:[%s10 + $0x14] sm:$0xf]
        %v4558 = vld [vmem:[%s10 + $0x18] sm:$0xf]
        %v4559 = vld [vmem:[%s10 + $0x1c] sm:$0xf]
        %v4560 = vld [vmem:[%s10 + $0x20] sm:$0xf]
        %v4561 = vld [vmem:[%s10 + $0x24] sm:$0xf]
        %v4562 = vld [vmem:[%s10 + $0x28] sm:$0xf]
        %v4563 = vld [vmem:[%s10 + $0x2c] sm:$0xf]
        %v4564 = vld [vmem:[%s10 + $0x30] sm:$0xf]
        %v4565 = vld [vmem:[%s10 + $0x34] sm:$0xf]
        %v4566 = vld [vmem:[%s10 + $0x38] sm:$0xf]
        %v4567 = vld [vmem:[%s10 + $0x3c] sm:$0xf]
        %v4568 = vld [vmem:[%s11] sm:$0x1]
        %v4570 = vlaneseq
        %v4571 = vshrl.u32 %v4570, 7
        %v4572 = vsub.s32 0, %v4571
        %v4573 = vrot.slane %v4568, %v4572
        %v4591 = vunpack.c.l.b16 %v4552
        %v4592 = vunpack.c.l.b16 %v4553
        %v4593 = vunpack.c.l.b16 %v4554
        %v4594 = vunpack.c.l.b16 %v4555
        %v4595 = vunpack.c.l.b16 %v4556
        %v4596 = vunpack.c.l.b16 %v4557
        %v4597 = vunpack.c.l.b16 %v4558
        %v4598 = vunpack.c.l.b16 %v4559
        %v4599 = vunpack.c.l.b16 %v4560
        %v4600 = vunpack.c.l.b16 %v4561
        %v4601 = vunpack.c.l.b16 %v4562
        %v4602 = vunpack.c.l.b16 %v4563
        %v4603 = vunpack.c.l.b16 %v4564
        %v4604 = vunpack.c.l.b16 %v4565
        %v4605 = vunpack.c.l.b16 %v4566
        %v4606 = vunpack.c.l.b16 %v4567
        %v4607 = vpack.c.b16 %v4592, %v4591
        %v4608 = vpack.c.b16 %v4594, %v4593
        %v4609 = vpack.c.b16 %v4596, %v4595
        %v4610 = vpack.c.b16 %v4598, %v4597
        %v4611 = vpack.c.b16 %v4600, %v4599
        %v4612 = vpack.c.b16 %v4602, %v4601
        %v4613 = vpack.c.b16 %v4604, %v4603
        %v4614 = vpack.c.b16 %v4606, %v4605
        %4623 = vmatprep.subr.bf16.mxu0 0
        %4624 = vmatpush1.bf16.msra.mxu0 %v4607
        %4625 = vmatprep.subr.bf16.mxu0 0
        %4626 = vmatpush1.bf16.msra.mxu0 %v4608
        %4627 = vmatprep.subr.bf16.mxu0 0
        %4628 = vmatpush1.bf16.msra.mxu0 %v4609
        %4629 = vmatprep.subr.bf16.mxu0 0
        %4630 = vmatpush1.bf16.msra.mxu0 %v4610
        %4631 = vmatprep.subr.bf16.mxu0 0
        %4632 = vmatpush1.bf16.msra.mxu0 %v4611
        %4633 = vmatprep.subr.bf16.mxu0 0
        %4634 = vmatpush1.bf16.msra.mxu0 %v4612
        %4635 = vmatprep.subr.bf16.mxu0 0
        %4636 = vmatpush1.bf16.msra.mxu0 %v4613
        %4637 = vmatprep.subr.bf16.mxu0 0
        %4638 = vmatpush1.bf16.msra.mxu0 %v4614
        %4639 = vmatprep.subr.bf16.mxu0 0
        %4640 = vmatpush1.bf16.msra.mxu0 0
        %4641 = vmatprep.subr.bf16.mxu0 0
        %4642 = vmatpush1.bf16.msra.mxu0 0
        %4643 = vmatprep.subr.bf16.mxu0 0
        %4644 = vmatpush1.bf16.msra.mxu0 0
        %4645 = vmatprep.subr.bf16.mxu0 0
        %4646 = vmatpush1.bf16.msra.mxu0 0
        %4647 = vmatprep.subr.bf16.mxu0 0
        %4648 = vmatpush1.bf16.msra.mxu0 0
        %4649 = vmatprep.subr.bf16.mxu0 0
        %4650 = vmatpush1.bf16.msra.mxu0 0
        %4651 = vmatprep.subr.bf16.mxu0 0
        %4652 = vmatpush1.bf16.msra.mxu0 0
        %4653 = vmatprep.subr.bf16.mxu0 0
        %4654 = vmatpush1.bf16.msra.mxu0 0
        %4655 = vmatprep.mubr.bf16.mxu0 0
        %4656 = vmatmul.mubr.bf16.gmra.mrb[0].mxu0 %v4551
        %v4657 = vpop.f32.mrb[0].mxu0
        %v4658 = vadd.f32 %v4573, %v4657
        %v4659 = vpop.f32.mrb[0].mxu0
        %v4660 = vpop.f32.mrb[0].mxu0
        %v4661 = vadd.f32 %v4573, %v4660
        %v4662 = vpop.f32.mrb[0].mxu0
        %4663 = vdwg.mxu0
        %4664 = vst [vmem:[%s525] sm:$0xff] %v4658
        %4665 = vst [vmem:[%s525 + $0x8] sm:$0xff] %v4661
        %s4666 = sand.u32 %s306, 1
        %s4667 = scalar_lea.sflag [#allocation4], %s4666
        %s4668 = sand.u32 %s306, 1
        %s4669 = smul.addr %s4668, 16
        %s4670 = scalar_lea.vmem [#allocation3], %s4669
        %s4671 = sand.u32 %s332, 1
        %s4672 = scalar_lea.sflag [#allocation6], %s4671
        %s4673 = sand.u32 %s332, 1
        %s4674 = smul.addr %s4673, 32
        %s4675 = scalar_lea.vmem [#allocation5], %s4674
        // Predicated region
        $region107: #{tpu_custom_call.1} parent=101 // pred_check
          %p4676 = pneg %p316
        $region108: #{tpu_custom_call.1} parent=101 // pred_check_branch
          %4678 = sbr.rel (%p4676) target = $region110
        $region109: #{tpu_custom_call.1} parent=101 // pred_region
          %s4679 = smul.u32 2, %s31
          %s4681 = ssub.s32 256, 256
          %4682 = vsyncadd %s4667, %s4681
          %s4683 = smul.addr %s4679, 128
          %s4684 = scalar_lea.hbm %s12, %s4683
          %s4685 = sshll.u32 %s4670, 4
          %s4686 = int_to_ptr.vmem [resolvable:$true] %s4685
          %4691 = dma.vmem_to_hbm [thread:$0]  %s4686, 256, %s4684, %s4667, 128, 128, 8
        $region110: #{tpu_custom_call.1} parent=101 // pred_fallthru
          _
        // Predicated region
        $region111: #{tpu_custom_call.1} parent=101 // pred_check
          %p4692 = pneg %p342
        $region112: #{tpu_custom_call.1} parent=101 // pred_check_branch
          %4694 = sbr.rel (%p4692) target = $region114
        $region113: #{tpu_custom_call.1} parent=101 // pred_region
          #allocation8 [shape = 'u32[6]{0}', space=smem, size = 0x18, scoped, tag = 'DMA stride descriptor']
          %s4695 = smul.u32 2, %s31
          %s4697 = ssub.s32 512, 512
          %4698 = vsyncadd %s4672, %s4697
          %s4699 = smul.addr %s4695, 128
          %s4700 = scalar_lea.hbm %s13, %s4699
          %s4702 = sshll.u32 1, 14
          %s4703 = sxor.u32 4294967295, %s4702
          %s4706 = sshll.u32 7, 18
          %s4707 = sxor.u32 4294967295, %s4706
          %s4708 = sand.u32 0, %s4707
          %s4710 = sor.u32 %s4708, 0
          %s4712 = sshll.u32 3, 24
          %s4713 = sxor.u32 4294967295, %s4712
          %s4714 = sand.u32 %s4710, %s4713
          %s4716 = sor.u32 %s4714, 0
          %s4717 = sshll.u32 %s4675, 4
          %s4718 = int_to_ptr.vmem [resolvable:$true] %s4717
          %4724 = sst [smem:[#allocation8]] 256
          %s4725 = scalar_lea.smem [#allocation8], 1
          %4726 = sst [smem:[%s4725]] 512
          %s4727 = scalar_lea.smem [#allocation8], 2
          %4728 = sst [smem:[%s4727]] 2
          %s4729 = scalar_lea.smem [#allocation8], 3
          %4730 = sst [smem:[%s4729]] 128
          %s4731 = scalar_lea.smem [#allocation8], 4
          %4732 = sst [smem:[%s4731]] 128
          %s4733 = scalar_lea.smem [#allocation8], 5
          %4734 = sst [smem:[%s4733]] 8
          %4736 = dma.general %s4718, 512, %s4700, %s4672, [#allocation7], [#allocation8], %s4716, 0
        $region114: #{tpu_custom_call.1} parent=101 // pred_fallthru
          _
      $region102: #{tpu_custom_call.1} parent=5 // pred_fallthru
        _
      %p4737 = scmp.le.s32.totalorder 2, %s26
      // Predicated region
      $region115: #{tpu_custom_call.1} parent=5 // pred_check
        %p4738 = pneg %p4737
      $region116: #{tpu_custom_call.1} parent=5 // pred_check_branch
        %4740 = sbr.rel (%p4738) target = $region118
      $region117: #{tpu_custom_call.1} parent=5 // pred_region
        %s4741 = ssub.s32 %s26, 2
        // Predicated region
        $region119: #{tpu_custom_call.1} parent=117 // pred_check
          %p4742 = pneg %p322
        $region120: #{tpu_custom_call.1} parent=117 // pred_check_branch
          %4744 = sbr.rel (%p4742) target = $region122
        $region121: #{tpu_custom_call.1} parent=117 // pred_region
          %s4745 = sand.u32 %s307, 1
          %s4746 = scalar_lea.sflag [#allocation4], %s4745
          %s4747 = sand.u32 %s307, 1
          %s4748 = smul.addr %s4747, 16
          %s4749 = scalar_lea.vmem [#allocation3], %s4748
          %4750 = dma.done %s4746, 256
        $region122: #{tpu_custom_call.1} parent=117 // pred_fallthru
          _
        // Predicated region
        $region123: #{tpu_custom_call.1} parent=117 // pred_check
          %p4751 = pneg %p348
        $region124: #{tpu_custom_call.1} parent=117 // pred_check_branch
          %4753 = sbr.rel (%p4751) target = $region126
        $region125: #{tpu_custom_call.1} parent=117 // pred_region
          %s4754 = sand.u32 %s333, 1
          %s4755 = scalar_lea.sflag [#allocation6], %s4754
          %s4756 = sand.u32 %s333, 1
          %s4757 = smul.addr %s4756, 32
          %s4758 = scalar_lea.vmem [#allocation5], %s4757
          %4759 = dma.done %s4755, 512
        $region126: #{tpu_custom_call.1} parent=117 // pred_fallthru
          _
      $region118: #{tpu_custom_call.1} parent=5 // pred_fallthru
        _
    $region6: #{tpu_custom_call.1} parent=1 // loop_footer
      %s30 = sadd.s32 1, %s26
    $region7: #{tpu_custom_call.1} parent=1 // loop_footer_branch
      %25 = sbr.rel target = $region3
    $region8: #{tpu_custom_call.1} parent=1 // loop_exit
      _
    %4760 = vsyncpa [#allocation4], 1
    %s4761 = scalar_lea.sflag [#allocation4], 1
    %4762 = vsyncpa %s4761, 1
    %4763 = vsyncpa [#allocation6], 1
    %s4764 = scalar_lea.sflag [#allocation6], 1
    %4765 = vsyncpa %s4764, 1

</llo_original>
